<compile_context>
chip_gen: v7x
topology: tpu7x:2x2x1
jax: 0.10.0
libtpu: 0.0.40
codegen_flags: <defaults>
</compile_context>

<pallas_src>
import functools

import jax
import jax.numpy as jnp
from jax.experimental import pallas as pl
from jax.experimental.pallas import tpu as pltpu


def _round_up(x, m):
    return ((x + m - 1) // m) * m


def _cdiv(a, b):
    return -(-a // b)


def _pick_tile_b(B):
    """Batch tile selection.

    * multiple of 16 (bf16 sublane packing),
    * >= 2 grid steps whenever B > 128 so v7x's two TensorCores both get work,
    * minimal padding waste (e.g. B=300 -> tile 160, B_pad 320),
    * capped at 256 (512 for B >= 2048) to amortize per-step overhead while
      keeping VMEM residency comfortably under the scoped limit.
    """
    b16 = _round_up(B, 16)
    if b16 <= 128:
        return b16
    cap = 512 if B >= 2048 else 256
    n_tiles = max(_cdiv(B, cap), 2)
    return _round_up(_cdiv(B, n_tiles), 16)


def _adv_net_kernel(x_ref, w1_ref, b1_ref, w2_ref, b2_ref, w3_ref, b3_ref, o_ref):
    # In-kernel f32 -> bf16 cast: VALU work hidden under the MXU, and x only crosses
    # HBM once (in f32) instead of twice.
    x = x_ref[...].astype(jnp.bfloat16)                               # (tb, F)

    # Layer 1: Linear(F -> 1024), bf16 MXU matmul with f32 accumulation, LeakyReLU(0.01).
    h1 = jnp.dot(x, w1_ref[...], preferred_element_type=jnp.float32) + b1_ref[...]
    h1 = jnp.maximum(h1, 0.01 * h1)

    # (Dropout1: identity in eval mode)

    # Layer 2: Linear(1024 -> 512) + LeakyReLU(0.01). Activations re-cast to bf16 so the
    # MXU stays on its bf16 path; accumulate in f32.
    h2 = jnp.dot(h1.astype(jnp.bfloat16), w2_ref[...],
                 preferred_element_type=jnp.float32) + b2_ref[...]
    h2 = jnp.maximum(h2, 0.01 * h2)

    # (Dropout2: identity in eval mode)

    # Layer 3: Linear(512 -> 1). Kept OFF the MXU (an N=1 matmul would waste full MXU
    # passes on the binding unit): VPU multiply + lane reduction (XLU has slack).
    # w3_ref is the (1, 512) f32 weight row.
    h3 = jnp.sum(h2 * w3_ref[...], axis=-1, keepdims=True) + b3_ref[...]   # (tb, 1)

    # Exact sigmoid: exp on the EUP + exact divide; EUP/VPU slack makes this free.
    o_ref[...] = (1.0 / (1.0 + jnp.exp(-h3))).astype(o_ref.dtype)
    # NOTE: OUT=1 means this is a masked single-lane store (~tile_b/8 vregs per step);
    # kept instead of a lane-dense transposed output -- see header comment.


def prepare_adversarial_params(w1, b1, w2, b2, w3, b3):
    """One-time conversion of PyTorch-layout params into kernel-ready layout.

    Call this ONCE (e.g. right after loading/initializing the module); the returned
    tuple is passed to `adversarial_network` on every step, so the transpose / bf16
    cast / reshape HLOs are never re-executed in the per-call path.
    """
    H1 = w1.shape[0]   # 1024
    H2 = w2.shape[0]   # 512
    OUT = w3.shape[0]  # 1
    return (
        jnp.asarray(w1, jnp.float32).T.astype(jnp.bfloat16),    # (F, H1)  bf16, MXU RHS
        jnp.asarray(b1, jnp.float32).reshape(1, H1),            # (1, H1)  f32
        jnp.asarray(w2, jnp.float32).T.astype(jnp.bfloat16),    # (H1, H2) bf16, MXU RHS
        jnp.asarray(b2, jnp.float32).reshape(1, H2),            # (1, H2)  f32
        jnp.asarray(w3, jnp.float32).reshape(1, H2),            # (1, H2)  f32, VPU row
        jnp.asarray(b3, jnp.float32).reshape(1, OUT),           # (1, 1)   f32
    )


@functools.partial(jax.jit, static_argnames=("tile_b",))
def adversarial_network(x, params, *, tile_b=None):
    """x: (B, F) float32. params: output of prepare_adversarial_params()."""
    w1t, b1r, w2t, b2r, w3r, b3r = params
    B, F = x.shape
    H1 = w1t.shape[1]
    H2 = w2t.shape[1]
    OUT = b3r.shape[1]

    if tile_b is None:
        tile_b = _pick_tile_b(B)
    B_pad = _round_up(B, tile_b)
    grid = (B_pad // tile_b,)

    # The only per-call HLO besides pallas_call: zero-pad the batch when needed.
    # Padded rows are sliced off below; they flow through the matmuls harmlessly.
    x_p = x if B_pad == B else jnp.pad(x, ((0, B_pad - B), (0, 0)))

    out = pl.pallas_call(
        _adv_net_kernel,
        out_shape=jax.ShapeDtypeStruct((B_pad, OUT), jnp.float32),
        grid_spec=pltpu.PrefetchScalarGridSpec(
            num_scalar_prefetch=0,
            grid=grid,
            in_specs=[
                pl.BlockSpec((tile_b, F), lambda i: (i, 0)),   # x tile (f32, cast in-kernel)
                pl.BlockSpec((F, H1),    lambda i: (0, 0)),    # W1^T (resident, bf16)
                pl.BlockSpec((1, H1),    lambda i: (0, 0)),    # b1
                pl.BlockSpec((H1, H2),   lambda i: (0, 0)),    # W2^T (resident, bf16)
                pl.BlockSpec((1, H2),    lambda i: (0, 0)),    # b2
                pl.BlockSpec((1, H2),    lambda i: (0, 0)),    # W3 row (f32)
                pl.BlockSpec((1, OUT),   lambda i: (0, 0)),    # b3
            ],
            out_specs=pl.BlockSpec((tile_b, OUT), lambda i: (i, 0)),
        ),
        compiler_params=pltpu.CompilerParams(
            dimension_semantics=("parallel",),
            # Budget at tile_b=512: x tile f32 ~0.5 MiB (x2 buffers), bf16 weights
            # ~1.5 MiB (x2 default buffers), f32 intermediates ~3 MiB -> well under
            # the 32 MiB scoped limit on v5e/v6e/v7x.
            vmem_limit_bytes=32 * 1024 * 1024,
        ),
    )(x_p, w1t, b1r, w2t, b2r, w3r, b3r)

    return out if B_pad == B else out[:B]


def _reference(x, w1, b1, w2, b2, w3, b3):
    h1 = x @ w1.T + b1
    h1 = jnp.where(h1 > 0, h1, 0.01 * h1)
    h2 = h1 @ w2.T + b2
    h2 = jnp.where(h2 > 0, h2, 0.01 * h2)
    h3 = h2 @ w3.T + b3
    return jax.nn.sigmoid(h3)


if __name__ == "__main__":
    # Deterministic setup consistent with the module's __init__ semantics.
    # B=300 exercises the padding + multi-tile path (tile_b=160, B_pad=320, grid=2).
    B = 300          # batch
    F = 256          # feature_size (constructor argument)
    H1, H2, OUT = 1024, 512, 1   # fixed by the module definition

    key = jax.random.PRNGKey(0)
    kx, k1, k2, k3 = jax.random.split(key, 4)

    x = jax.random.normal(kx, (B, F), dtype=jnp.float32)

    # weight.data.normal_(0, 0.01) / (0, 0.3); bias.data.fill_(0.0)
    w1 = 0.01 * jax.random.normal(k1, (H1, F), dtype=jnp.float32)
    b1 = jnp.zeros((H1,), jnp.float32)
    w2 = 0.01 * jax.random.normal(k2, (H2, H1), dtype=jnp.float32)
    b2 = jnp.zeros((H2,), jnp.float32)
    w3 = 0.3 * jax.random.normal(k3, (OUT, H2), dtype=jnp.float32)
    b3 = jnp.zeros((OUT,), jnp.float32)

    # One-time parameter prep (hoisted out of the per-call path).
    params = jax.tree_util.tree_map(jax.block_until_ready,
                                    prepare_adversarial_params(w1, b1, w2, b2, w3, b3))

    out = adversarial_network(x, params)
    out = jax.block_until_ready(out)

    ref = _reference(x, w1, b1, w2, b2, w3, b3)
    assert out.shape == (B, OUT), out.shape
    # bf16 matmuls vs f32 reference (intentional precision choice for a domain
    # discriminator); sigmoid path is exact, so the tolerance is tightened vs before.
    max_err = jnp.max(jnp.abs(out - ref))
    assert jnp.allclose(out, ref, atol=1e-2, rtol=1e-2), f"max abs err = {max_err}"

    print("KERNEL_OK")
</pallas_src>

<mosaic_0001>
module attributes {stable_mosaic.version = 11 : i64} {
  func.func @_adv_net_kernel(%arg0: i32, %arg1: memref<160x256xf32, #tpu.memory_space<vmem>>, %arg2: memref<256x1024xbf16, #tpu.memory_space<vmem>>, %arg3: memref<1x1024xf32, #tpu.memory_space<vmem>>, %arg4: memref<1024x512xbf16, #tpu.memory_space<vmem>>, %arg5: memref<1x512xf32, #tpu.memory_space<vmem>>, %arg6: memref<1x512xf32, #tpu.memory_space<vmem>>, %arg7: memref<1x1xf32, #tpu.memory_space<vmem>>, %arg8: memref<160x1xf32, #tpu.memory_space<vmem>>) attributes {dimension_semantics = [#tpu.dimension_semantics<parallel>], iteration_bounds = array<i64: 2>, scalar_prefetch = 0 : i64, scratch_operands = 0 : i64, tpu.core_type = #tpu.core_type<tc>, window_params = [{transform_indices = @transform_0, window_bounds = array<i64: 160, 256>}, {pipeline_mode = #tpu.pipeline_mode<synchronous>, transform_indices = @transform_1, window_bounds = array<i64: 256, 1024>}, {pipeline_mode = #tpu.pipeline_mode<synchronous>, transform_indices = @transform_2, window_bounds = array<i64: 1, 1024>}, {pipeline_mode = #tpu.pipeline_mode<synchronous>, transform_indices = @transform_3, window_bounds = array<i64: 1024, 512>}, {pipeline_mode = #tpu.pipeline_mode<synchronous>, transform_indices = @transform_4, window_bounds = array<i64: 1, 512>}, {pipeline_mode = #tpu.pipeline_mode<synchronous>, transform_indices = @transform_5, window_bounds = array<i64: 1, 512>}, {pipeline_mode = #tpu.pipeline_mode<synchronous>, transform_indices = @transform_6, window_bounds = array<i64: 1, 1>}, {transform_indices = @transform_7, window_bounds = array<i64: 160, 1>}]} {
    %c0 = arith.constant 0 : index
    %c0_0 = arith.constant 0 : index
    %0 = vector.load %arg1[%c0, %c0_0] : memref<160x256xf32, #tpu.memory_space<vmem>>, vector<160x256xf32>
    %1 = arith.truncf %0 : vector<160x256xf32> to vector<160x256xbf16>
    %c0_1 = arith.constant 0 : index
    %c0_2 = arith.constant 0 : index
    %2 = vector.load %arg2[%c0_1, %c0_2] : memref<256x1024xbf16, #tpu.memory_space<vmem>>, vector<256x1024xbf16>
    %cst = arith.constant dense<0.000000e+00> : vector<160x1024xf32>
    %3 = tpu.matmul %1, %2, %cst {dimension_numbers = #tpu.dot_dimension_numbers<[1], [0], [0], [1], [0, 0, 1, 1], [], []>} : vector<160x256xbf16>, vector<256x1024xbf16>, vector<160x1024xf32> -> vector<160x1024xf32>
    %c0_3 = arith.constant 0 : index
    %c0_4 = arith.constant 0 : index
    %4 = vector.load %arg3[%c0_3, %c0_4] : memref<1x1024xf32, #tpu.memory_space<vmem>>, vector<1x1024xf32>
    %5 = vector.broadcast %4 : vector<1x1024xf32> to vector<160x1024xf32>
    %6 = arith.addf %3, %5 : vector<160x1024xf32>
    %cst_5 = arith.constant 0.00999999977 : f32
    %7 = vector.broadcast %cst_5 : f32 to vector<160x1024xf32>
    %8 = arith.mulf %7, %6 : vector<160x1024xf32>
    %9 = arith.maximumf %6, %8 : vector<160x1024xf32>
    %10 = arith.truncf %9 : vector<160x1024xf32> to vector<160x1024xbf16>
    %c0_6 = arith.constant 0 : index
    %c0_7 = arith.constant 0 : index
    %11 = vector.load %arg4[%c0_6, %c0_7] : memref<1024x512xbf16, #tpu.memory_space<vmem>>, vector<1024x512xbf16>
    %cst_8 = arith.constant dense<0.000000e+00> : vector<160x512xf32>
    %12 = tpu.matmul %10, %11, %cst_8 {dimension_numbers = #tpu.dot_dimension_numbers<[1], [0], [0], [1], [0, 0, 1, 1], [], []>} : vector<160x1024xbf16>, vector<1024x512xbf16>, vector<160x512xf32> -> vector<160x512xf32>
    %c0_9 = arith.constant 0 : index
    %c0_10 = arith.constant 0 : index
    %13 = vector.load %arg5[%c0_9, %c0_10] : memref<1x512xf32, #tpu.memory_space<vmem>>, vector<1x512xf32>
    %14 = vector.broadcast %13 : vector<1x512xf32> to vector<160x512xf32>
    %15 = arith.addf %12, %14 : vector<160x512xf32>
    %cst_11 = arith.constant 0.00999999977 : f32
    %16 = vector.broadcast %cst_11 : f32 to vector<160x512xf32>
    %17 = arith.mulf %16, %15 : vector<160x512xf32>
    %18 = arith.maximumf %15, %17 : vector<160x512xf32>
    %c0_12 = arith.constant 0 : index
    %c0_13 = arith.constant 0 : index
    %19 = vector.load %arg6[%c0_12, %c0_13] : memref<1x512xf32, #tpu.memory_space<vmem>>, vector<1x512xf32>
    %20 = vector.broadcast %19 : vector<1x512xf32> to vector<160x512xf32>
    %21 = arith.mulf %18, %20 : vector<160x512xf32>
    %cst_14 = arith.constant dense<0.000000e+00> : vector<160xf32>
    %22 = vector.multi_reduction <add>, %21, %cst_14 [1] : vector<160x512xf32> to vector<160xf32>
    %23 = vector.shape_cast %22 : vector<160xf32> to vector<160x1xf32>
    %c0_15 = arith.constant 0 : index
    %c0_16 = arith.constant 0 : index
    %24 = vector.load %arg7[%c0_15, %c0_16] : memref<1x1xf32, #tpu.memory_space<vmem>>, vector<1x1xf32>
    %25 = vector.broadcast %24 : vector<1x1xf32> to vector<160x1xf32>
    %26 = arith.addf %23, %25 : vector<160x1xf32>
    %cst_17 = arith.constant 0.000000e+00 : f32
    %27 = vector.broadcast %cst_17 : f32 to vector<160x1xf32>
    %28 = arith.subf %27, %26 : vector<160x1xf32>
    %29 = math.exp %28 : vector<160x1xf32>
    %cst_18 = arith.constant 1.000000e+00 : f32
    %30 = vector.broadcast %cst_18 : f32 to vector<160x1xf32>
    %31 = arith.addf %30, %29 : vector<160x1xf32>
    %cst_19 = arith.constant 1.000000e+00 : f32
    %32 = vector.broadcast %cst_19 : f32 to vector<160x1xf32>
    %33 = arith.divf %32, %31 : vector<160x1xf32>
    %c0_20 = arith.constant 0 : index
    %c0_21 = arith.constant 0 : index
    %34 = vector.load %arg8[%c0_20, %c0_21] : memref<160x1xf32, #tpu.memory_space<vmem>>, vector<160x1xf32>
    tpu.vector_store %arg8[%c0_20, %c0_21], %33 {strides = array<i32>} : memref<160x1xf32, #tpu.memory_space<vmem>>, vector<160x1xf32>,
    return
  }
  func.func @transform_0(%arg0: i32) -> (i32, i32) {
    %c0_i32 = arith.constant 0 : i32
    %c0_i32_0 = arith.constant 0 : i32
    return %arg0, %c0_i32 : i32, i32
  }
  func.func @transform_1(%arg0: i32) -> (i32, i32) {
    %c0_i32 = arith.constant 0 : i32
    %c0_i32_0 = arith.constant 0 : i32
    %c0_i32_1 = arith.constant 0 : i32
    return %c0_i32, %c0_i32_0 : i32, i32
  }
  func.func @transform_2(%arg0: i32) -> (i32, i32) {
    %c0_i32 = arith.constant 0 : i32
    %c0_i32_0 = arith.constant 0 : i32
    %c0_i32_1 = arith.constant 0 : i32
    return %c0_i32, %c0_i32_0 : i32, i32
  }
  func.func @transform_3(%arg0: i32) -> (i32, i32) {
    %c0_i32 = arith.constant 0 : i32
    %c0_i32_0 = arith.constant 0 : i32
    %c0_i32_1 = arith.constant 0 : i32
    return %c0_i32, %c0_i32_0 : i32, i32
  }
  func.func @transform_4(%arg0: i32) -> (i32, i32) {
    %c0_i32 = arith.constant 0 : i32
    %c0_i32_0 = arith.constant 0 : i32
    %c0_i32_1 = arith.constant 0 : i32
    return %c0_i32, %c0_i32_0 : i32, i32
  }
  func.func @transform_5(%arg0: i32) -> (i32, i32) {
    %c0_i32 = arith.constant 0 : i32
    %c0_i32_0 = arith.constant 0 : i32
    %c0_i32_1 = arith.constant 0 : i32
    return %c0_i32, %c0_i32_0 : i32, i32
  }
  func.func @transform_6(%arg0: i32) -> (i32, i32) {
    %c0_i32 = arith.constant 0 : i32
    %c0_i32_0 = arith.constant 0 : i32
    %c0_i32_1 = arith.constant 0 : i32
    return %c0_i32, %c0_i32_0 : i32, i32
  }
  func.func @transform_7(%arg0: i32) -> (i32, i32) {
    %c0_i32 = arith.constant 0 : i32
    %c0_i32_0 = arith.constant 0 : i32
    return %arg0, %c0_i32 : i32, i32
  }
}

</mosaic_0001>

<llo_original>
// kernel: adversarial_network.1
$region0: #{adversarial_network.1}
  #allocation0 [shape = 'u32[]', space=smem, size = 0x4, offset = 0x4, fixed_abs, tag = 'smem constant byte address 0x4 - core index']
  #allocation1 [shape = 'u32[144,128]{1,0:T(1,128)}', space=vmem, size = 0x12000, scoped, tag = 'internal scratch']
  #allocation2 [shape = 'f32[1,1]{1,0:T(1,128)S(1)}', space=vmem, size = 0x200, scoped, tag = 'scoped memory for adversarial_network.1']
  %s0 = inlined_call_operand.vmem [shape: f32[320,256], index: 0, kind: input, shape index: {}]
  %s1 = inlined_call_operand.vmem [shape: bf16[256,1024], index: 1, kind: input, shape index: {}]
  %s2 = inlined_call_operand.vmem [shape: f32[1,1024], index: 2, kind: input, shape index: {}]
  %s3 = inlined_call_operand.hbm [shape: bf16[1024,512], index: 3, kind: input, shape index: {}]
  %s4 = inlined_call_operand.vmem [shape: f32[1,512], index: 4, kind: input, shape index: {}]
  %s5 = inlined_call_operand.vmem [shape: f32[1,512], index: 5, kind: input, shape index: {}]
  %s6 = inlined_call_operand.<no memory space> [shape: f32[1,1], index: 6, kind: input, shape index: {}]
  %s7 = inlined_call_operand.vmem [shape: f32[320,1], index: 7, kind: output, shape index: {}]
  %s8 = sld [smem:[#allocation0]]
  $region65: #{adversarial_network.1} parent=0
    _
  %s10 = ssub.s32 1, %s8
  %s11 = scalar_select 0, %s10, %s8
  %v12 = vstv %s6
  %13 = vst [vmem:[#allocation2] sm:$0x1] %v12
  $region1: #{adversarial_network.1} parent=0
    #allocation3 [shape = 'u8[1048576]{0}', space=vmem, size = 0x100000, scoped, tag = 'input window, operand 3, single buffered']
    #allocation4 [shape = 's32[2]{0}', space=sflag, size = 0x8, scoped, tag = 'scoped memory for adversarial_network.1']
    %14 = vsyncpa [#allocation4], 0
    loop: start=0, step=1, limit=4
    $region2: #{adversarial_network.1} parent=1 // loop_pre_header
      _
    $region3: #{adversarial_network.1} parent=1 // loop_header
      %s16 = sphi 0, %s20
      %p17 = scmp.ge.s32.totalorder %s16, 4
      %s26 = sphi 0, %s28
      %s29 = sphi 0, %s26
      %s30 = sphi 0, %s29
      %s46 = sphi 0, %s30
      %s50 = sphi 0, %s50
      %s52 = sphi 0, %s50
      %s53 = sphi 0, %s52
      %s67 = sphi 0, %s53
      %s71 = sphi 0, %s71
      %s73 = sphi 0, %s71
      %s74 = sphi 0, %s73
      %s88 = sphi 0, %s74
      %s92 = sphi 0, %s92
      %s94 = sphi 0, %s92
      %s95 = sphi 0, %s94
      %s109 = sphi 0, %s95
      %s113 = sphi 0, %s113
      %s115 = sphi 0, %s113
      %s116 = sphi 0, %s115
      %s130 = sphi 0, %s116
      %s134 = sphi 0, %s134
      %s136 = sphi 0, %s134
      %s137 = sphi 0, %s136
      %s151 = sphi 0, %s137
      %s155 = sphi 0, %s155
      %s157 = sphi 0, %s155
      %s158 = sphi 0, %s157
      %s172 = sphi 0, %s158
      %s178 = sphi 0, %s180
      %s181 = sphi 0, %s178
      %s182 = sphi 0, %s181
      %s198 = sphi 0, %s182
    $region4: #{adversarial_network.1} parent=1 // loop_header_branch
      %19 = sbr.rel (%p17) target = $region8
    $region5: #{adversarial_network.1} parent=1 // loop_body
      %s21 = ssub.s32 %s16, 1
      %s22 = ssub.s32 %s16, 2
      %s23 = sadd.s32 %s16, 1
      %s24 = ssub.s32 %s16, %s23
      %p25 = scmp.eq.s32.totalorder %s24, 0
      %s27 = sadd.s32 %s26, 1
      %s28 = scalar_select %p25, %s26, %s27
      %p31 = pneg %p25
      %p32 = scmp.eq.s32.totalorder %s16, 1
      %p33 = por %p31, %p32
      %p34 = scmp.ne.s32.totalorder %s26, %s29
      %p35 = scmp.eq.s32.totalorder %s16, 0
      %p36 = por %p34, %p35
      %p37 = scmp.ne.s32.totalorder %s26, %s29
      %p38 = scmp.eq.s32.totalorder %s21, 1
      %p39 = por %p37, %p38
      %p40 = scmp.ne.s32.totalorder %s29, %s30
      %p41 = scmp.eq.s32.totalorder %s21, 0
      %p42 = por %p40, %p41
      %p43 = scmp.ne.s32.totalorder %s29, %s30
      %p44 = scmp.eq.s32.totalorder %s22, 1
      %p45 = por %p43, %p44
      %p47 = scmp.ne.s32.totalorder %s30, %s46
      %p48 = scmp.eq.s32.totalorder %s22, 0
      %p49 = por %p47, %p48
      %s51 = sadd.s32 %s50, 1
      %p54 = scmp.eq.s32.totalorder %s16, 1
      %p55 = scmp.ne.s32.totalorder %s50, %s52
      %p56 = scmp.eq.s32.totalorder %s16, 0
      %p57 = por %p55, %p56
      %p58 = scmp.ne.s32.totalorder %s50, %s52
      %p59 = scmp.eq.s32.totalorder %s21, 1
      %p60 = por %p58, %p59
      %p61 = scmp.ne.s32.totalorder %s52, %s53
      %p62 = scmp.eq.s32.totalorder %s21, 0
      %p63 = por %p61, %p62
      %p64 = scmp.ne.s32.totalorder %s52, %s53
      %p65 = scmp.eq.s32.totalorder %s22, 1
      %p66 = por %p64, %p65
      %p68 = scmp.ne.s32.totalorder %s53, %s67
      %p69 = scmp.eq.s32.totalorder %s22, 0
      %p70 = por %p68, %p69
      %s72 = sadd.s32 %s71, 1
      %p75 = scmp.eq.s32.totalorder %s16, 1
      %p76 = scmp.ne.s32.totalorder %s71, %s73
      %p77 = scmp.eq.s32.totalorder %s16, 0
      %p78 = por %p76, %p77
      %p79 = scmp.ne.s32.totalorder %s71, %s73
      %p80 = scmp.eq.s32.totalorder %s21, 1
      %p81 = por %p79, %p80
      %p82 = scmp.ne.s32.totalorder %s73, %s74
      %p83 = scmp.eq.s32.totalorder %s21, 0
      %p84 = por %p82, %p83
      %p85 = scmp.ne.s32.totalorder %s73, %s74
      %p86 = scmp.eq.s32.totalorder %s22, 1
      %p87 = por %p85, %p86
      %p89 = scmp.ne.s32.totalorder %s74, %s88
      %p90 = scmp.eq.s32.totalorder %s22, 0
      %p91 = por %p89, %p90
      %s93 = sadd.s32 %s92, 1
      %p96 = scmp.eq.s32.totalorder %s16, 1
      %p97 = scmp.ne.s32.totalorder %s92, %s94
      %p98 = scmp.eq.s32.totalorder %s16, 0
      %p99 = por %p97, %p98
      %p100 = scmp.ne.s32.totalorder %s92, %s94
      %p101 = scmp.eq.s32.totalorder %s21, 1
      %p102 = por %p100, %p101
      %p103 = scmp.ne.s32.totalorder %s94, %s95
      %p104 = scmp.eq.s32.totalorder %s21, 0
      %p105 = por %p103, %p104
      %p106 = scmp.ne.s32.totalorder %s94, %s95
      %p107 = scmp.eq.s32.totalorder %s22, 1
      %p108 = por %p106, %p107
      %p110 = scmp.ne.s32.totalorder %s95, %s109
      %p111 = scmp.eq.s32.totalorder %s22, 0
      %p112 = por %p110, %p111
      %s114 = sadd.s32 %s113, 1
      %p117 = scmp.eq.s32.totalorder %s16, 1
      %p118 = scmp.ne.s32.totalorder %s113, %s115
      %p119 = scmp.eq.s32.totalorder %s16, 0
      %p120 = por %p118, %p119
      %p121 = scmp.ne.s32.totalorder %s113, %s115
      %p122 = scmp.eq.s32.totalorder %s21, 1
      %p123 = por %p121, %p122
      %p124 = scmp.ne.s32.totalorder %s115, %s116
      %p125 = scmp.eq.s32.totalorder %s21, 0
      %p126 = por %p124, %p125
      %p127 = scmp.ne.s32.totalorder %s115, %s116
      %p128 = scmp.eq.s32.totalorder %s22, 1
      %p129 = por %p127, %p128
      %p131 = scmp.ne.s32.totalorder %s116, %s130
      %p132 = scmp.eq.s32.totalorder %s22, 0
      %p133 = por %p131, %p132
      %s135 = sadd.s32 %s134, 1
      %p138 = scmp.eq.s32.totalorder %s16, 1
      %p139 = scmp.ne.s32.totalorder %s134, %s136
      %p140 = scmp.eq.s32.totalorder %s16, 0
      %p141 = por %p139, %p140
      %p142 = scmp.ne.s32.totalorder %s134, %s136
      %p143 = scmp.eq.s32.totalorder %s21, 1
      %p144 = por %p142, %p143
      %p145 = scmp.ne.s32.totalorder %s136, %s137
      %p146 = scmp.eq.s32.totalorder %s21, 0
      %p147 = por %p145, %p146
      %p148 = scmp.ne.s32.totalorder %s136, %s137
      %p149 = scmp.eq.s32.totalorder %s22, 1
      %p150 = por %p148, %p149
      %p152 = scmp.ne.s32.totalorder %s137, %s151
      %p153 = scmp.eq.s32.totalorder %s22, 0
      %p154 = por %p152, %p153
      %s156 = sadd.s32 %s155, 1
      %p159 = scmp.eq.s32.totalorder %s16, 1
      %p160 = scmp.ne.s32.totalorder %s155, %s157
      %p161 = scmp.eq.s32.totalorder %s16, 0
      %p162 = por %p160, %p161
      %p163 = scmp.ne.s32.totalorder %s155, %s157
      %p164 = scmp.eq.s32.totalorder %s21, 1
      %p165 = por %p163, %p164
      %p166 = scmp.ne.s32.totalorder %s157, %s158
      %p167 = scmp.eq.s32.totalorder %s21, 0
      %p168 = por %p166, %p167
      %p169 = scmp.ne.s32.totalorder %s157, %s158
      %p170 = scmp.eq.s32.totalorder %s22, 1
      %p171 = por %p169, %p170
      %p173 = scmp.ne.s32.totalorder %s158, %s172
      %p174 = scmp.eq.s32.totalorder %s22, 0
      %p175 = por %p173, %p174
      %s176 = ssub.s32 %s16, %s23
      %p177 = scmp.eq.s32.totalorder %s176, 0
      %s179 = sadd.s32 %s178, 1
      %s180 = scalar_select %p177, %s178, %s179
      %p183 = pneg %p177
      %p184 = scmp.eq.s32.totalorder %s16, 1
      %p185 = por %p183, %p184
      %p186 = scmp.ne.s32.totalorder %s178, %s181
      %p187 = scmp.eq.s32.totalorder %s16, 0
      %p188 = por %p186, %p187
      %p189 = scmp.ne.s32.totalorder %s178, %s181
      %p190 = scmp.eq.s32.totalorder %s21, 1
      %p191 = por %p189, %p190
      %p192 = scmp.ne.s32.totalorder %s181, %s182
      %p193 = scmp.eq.s32.totalorder %s21, 0
      %p194 = por %p192, %p193
      %p195 = scmp.ne.s32.totalorder %s181, %s182
      %p196 = scmp.eq.s32.totalorder %s22, 1
      %p197 = por %p195, %p196
      %p199 = scmp.ne.s32.totalorder %s182, %s198
      %p200 = scmp.eq.s32.totalorder %s22, 0
      %p201 = por %p199, %p200
      %p202 = scmp.le.s32.totalorder 1, %s16
      %p203 = scmp.lt.s32.totalorder %s16, 3
      %p204 = pnand %p202, %p203
      %p205 = pneg %p204
      // Predicated region
      $region9: #{adversarial_network.1} parent=5 // pred_check
        _
      $region10: #{adversarial_network.1} parent=5 // pred_check_branch
        %207 = sbr.rel (%p204) target = $region12
      $region11: #{adversarial_network.1} parent=5 // pred_region
        %s208 = ssub.s32 %s16, 1
        // Predicated region
        $region13: #{adversarial_network.1} parent=11 // pred_check
          %p209 = pneg %p63
        $region14: #{adversarial_network.1} parent=11 // pred_check_branch
          %211 = sbr.rel (%p209) target = $region16
        $region15: #{adversarial_network.1} parent=11 // pred_region
          _
        $region16: #{adversarial_network.1} parent=11 // pred_fallthru
          _
        // Predicated region
        $region17: #{adversarial_network.1} parent=11 // pred_check
          %p212 = pneg %p84
        $region18: #{adversarial_network.1} parent=11 // pred_check_branch
          %214 = sbr.rel (%p212) target = $region20
        $region19: #{adversarial_network.1} parent=11 // pred_region
          _
        $region20: #{adversarial_network.1} parent=11 // pred_fallthru
          _
        // Predicated region
        $region21: #{adversarial_network.1} parent=11 // pred_check
          %p215 = pneg %p105
        $region22: #{adversarial_network.1} parent=11 // pred_check_branch
          %217 = sbr.rel (%p215) target = $region24
        $region23: #{adversarial_network.1} parent=11 // pred_region
          %s219 = ssub.s32 32768, 32768
          %220 = vsyncadd [#allocation4], %s219
          %s221 = sshll.u32 [#allocation3], 4
          %s222 = int_to_ptr.vmem [resolvable:$true] %s221
          %227 = dma.hbm_to_vmem [thread:$0]  %s3, 32768, %s222, [#allocation4], 256, 256, 16
        $region24: #{adversarial_network.1} parent=11 // pred_fallthru
          _
        // Predicated region
        $region25: #{adversarial_network.1} parent=11 // pred_check
          %p228 = pneg %p126
        $region26: #{adversarial_network.1} parent=11 // pred_check_branch
          %230 = sbr.rel (%p228) target = $region28
        $region27: #{adversarial_network.1} parent=11 // pred_region
          _
        $region28: #{adversarial_network.1} parent=11 // pred_fallthru
          _
        // Predicated region
        $region29: #{adversarial_network.1} parent=11 // pred_check
          %p231 = pneg %p147
        $region30: #{adversarial_network.1} parent=11 // pred_check_branch
          %233 = sbr.rel (%p231) target = $region32
        $region31: #{adversarial_network.1} parent=11 // pred_region
          _
        $region32: #{adversarial_network.1} parent=11 // pred_fallthru
          _
        // Predicated region
        $region33: #{adversarial_network.1} parent=11 // pred_check
          %p234 = pneg %p168
        $region34: #{adversarial_network.1} parent=11 // pred_check_branch
          %236 = sbr.rel (%p234) target = $region36
        $region35: #{adversarial_network.1} parent=11 // pred_region
          _
        $region36: #{adversarial_network.1} parent=11 // pred_fallthru
          _
      $region12: #{adversarial_network.1} parent=5 // pred_fallthru
        _
      %p237 = scmp.lt.s32.totalorder %s16, 2
      // Predicated region
      $region37: #{adversarial_network.1} parent=5 // pred_check
        %p238 = pneg %p237
      $region38: #{adversarial_network.1} parent=5 // pred_check_branch
        %240 = sbr.rel (%p238) target = $region40
      $region39: #{adversarial_network.1} parent=5 // pred_region
        // Predicated region
        $region41: #{adversarial_network.1} parent=39 // pred_check
          %p241 = pneg %p36
        $region42: #{adversarial_network.1} parent=39 // pred_check_branch
          %243 = sbr.rel (%p241) target = $region44
        $region43: #{adversarial_network.1} parent=39 // pred_region
          %s244 = smul.u32 20, %s16
          %p245 = scmp.lt.s32.totalorder %s244, 39
          %s246 = scalar_select %p245, %s244, 39
          %s247 = smul.addr %s246, 2
          %s248 = smul.addr %s247, 8
          %s249 = scalar_lea.vmem %s0, %s248
          %s250 = smul.u32 20, %s16
        $region44: #{adversarial_network.1} parent=39 // pred_fallthru
          _
      $region40: #{adversarial_network.1} parent=5 // pred_fallthru
        _
      %p251 = scmp.le.s32.totalorder 1, %s16
      %p252 = scmp.lt.s32.totalorder %s16, 3
      %p253 = pnand %p251, %p252
      %p254 = pneg %p253
      // Predicated region
      $region45: #{adversarial_network.1} parent=5 // pred_check
        _
      $region46: #{adversarial_network.1} parent=5 // pred_check_branch
        %256 = sbr.rel (%p253) target = $region48
      $region47: #{adversarial_network.1} parent=5 // pred_region
        %s257 = ssub.s32 %s16, 1
        // Predicated region
        $region49: #{adversarial_network.1} parent=47 // pred_check
          %p258 = pneg %p105
        $region50: #{adversarial_network.1} parent=47 // pred_check_branch
          %260 = sbr.rel (%p258) target = $region52
        $region51: #{adversarial_network.1} parent=47 // pred_region
          %261 = dma.done [#allocation4], 32768
        $region52: #{adversarial_network.1} parent=47 // pred_fallthru
          _
        %s262 = smul.u32 20, %s21
        %p263 = scmp.lt.s32.totalorder %s262, 39
        %s264 = scalar_select %p263, %s262, 39
        %s265 = smul.addr %s264, 2
        %s266 = smul.addr %s265, 8
        %s267 = scalar_lea.vmem %s0, %s266
        %p268 = pneg %p42
        %p269 = pneg %p39
        %p270 = pneg %p63
        %p271 = pneg %p60
        %p272 = pneg %p84
        %p273 = pneg %p81
        %p274 = pneg %p105
        %p275 = pneg %p102
        %p276 = pneg %p126
        %p277 = pneg %p123
        %p278 = pneg %p147
        %p279 = pneg %p144
        %p280 = pneg %p168
        %p281 = pneg %p165
        %p282 = pneg %p194
        %p283 = pneg %p191
        %s284 = smul.u32 20, %s21
        %p285 = scmp.lt.s32.totalorder %s284, 39
        %s286 = scalar_select %p285, %s284, 39
        %s287 = smul.addr %s286, 8
        %s288 = scalar_lea.vmem %s7, %s287
        %s289 = smul.u32 20, %s21
        %p290 = scmp.lt.s32.totalorder %s289, 39
        %s291 = scalar_select %p290, %s289, 39
        %s292 = smul.addr %s291, 2
        %s293 = smul.addr %s292, 8
        %s294 = scalar_lea.vmem %s0, %s293
        %s295 = smul.u32 20, %s21
        %s296 = smul.u32 20, %s21
        %p297 = scmp.lt.s32.totalorder %s296, 39
        %s298 = scalar_select %p297, %s296, 39
        %s299 = smul.addr %s298, 8
        %s300 = scalar_lea.vmem %s7, %s299
        %s301 = smul.u32 20, %s21
        %v302 = vld [vmem:[%s294] sm:$0xff]
        %v303 = vld [vmem:[%s294 + $0x8] sm:$0xff]
        %v304 = vld [vmem:[%s294 + $0x10] sm:$0xff]
        %v305 = vld [vmem:[%s294 + $0x18] sm:$0xff]
        %v306 = vld [vmem:[%s294 + $0x20] sm:$0xff]
        %v307 = vld [vmem:[%s294 + $0x28] sm:$0xff]
        %v308 = vld [vmem:[%s294 + $0x30] sm:$0xff]
        %v309 = vld [vmem:[%s294 + $0x38] sm:$0xff]
        %v310 = vld [vmem:[%s294 + $0x40] sm:$0xff]
        %v311 = vld [vmem:[%s294 + $0x48] sm:$0xff]
        %v312 = vld [vmem:[%s294 + $0x50] sm:$0xff]
        %v313 = vld [vmem:[%s294 + $0x58] sm:$0xff]
        %v314 = vld [vmem:[%s294 + $0x60] sm:$0xff]
        %v315 = vld [vmem:[%s294 + $0x68] sm:$0xff]
        %v316 = vld [vmem:[%s294 + $0x70] sm:$0xff]
        %v317 = vld [vmem:[%s294 + $0x78] sm:$0xff]
        %v318 = vld [vmem:[%s294 + $0x80] sm:$0xff]
        %v319 = vld [vmem:[%s294 + $0x88] sm:$0xff]
        %v320 = vld [vmem:[%s294 + $0x90] sm:$0xff]
        %v321 = vld [vmem:[%s294 + $0x98] sm:$0xff]
        %v322 = vld [vmem:[%s294 + $0xa0] sm:$0xff]
        %v323 = vld [vmem:[%s294 + $0xa8] sm:$0xff]
        %v324 = vld [vmem:[%s294 + $0xb0] sm:$0xff]
        %v325 = vld [vmem:[%s294 + $0xb8] sm:$0xff]
        %v326 = vld [vmem:[%s294 + $0xc0] sm:$0xff]
        %v327 = vld [vmem:[%s294 + $0xc8] sm:$0xff]
        %v328 = vld [vmem:[%s294 + $0xd0] sm:$0xff]
        %v329 = vld [vmem:[%s294 + $0xd8] sm:$0xff]
        %v330 = vld [vmem:[%s294 + $0xe0] sm:$0xff]
        %v331 = vld [vmem:[%s294 + $0xe8] sm:$0xff]
        %v332 = vld [vmem:[%s294 + $0xf0] sm:$0xff]
        %v333 = vld [vmem:[%s294 + $0xf8] sm:$0xff]
        %v334 = vld [vmem:[%s294 + $0x100] sm:$0xff]
        %v335 = vld [vmem:[%s294 + $0x108] sm:$0xff]
        %v336 = vld [vmem:[%s294 + $0x110] sm:$0xff]
        %v337 = vld [vmem:[%s294 + $0x118] sm:$0xff]
        %v338 = vld [vmem:[%s294 + $0x120] sm:$0xff]
        %v339 = vld [vmem:[%s294 + $0x128] sm:$0xff]
        %v340 = vld [vmem:[%s294 + $0x130] sm:$0xff]
        %v341 = vld [vmem:[%s294 + $0x138] sm:$0xff]
        %v342 = vpack.c.bf16 %v304, %v302
        %v343 = vpack.c.bf16 %v305, %v303
        %v344 = vpack.c.bf16 %v308, %v306
        %v345 = vpack.c.bf16 %v309, %v307
        %v346 = vpack.c.bf16 %v312, %v310
        %v347 = vpack.c.bf16 %v313, %v311
        %v348 = vpack.c.bf16 %v316, %v314
        %v349 = vpack.c.bf16 %v317, %v315
        %v350 = vpack.c.bf16 %v320, %v318
        %v351 = vpack.c.bf16 %v321, %v319
        %v352 = vpack.c.bf16 %v324, %v322
        %v353 = vpack.c.bf16 %v325, %v323
        %v354 = vpack.c.bf16 %v328, %v326
        %v355 = vpack.c.bf16 %v329, %v327
        %v356 = vpack.c.bf16 %v332, %v330
        %v357 = vpack.c.bf16 %v333, %v331
        %v358 = vpack.c.bf16 %v336, %v334
        %v359 = vpack.c.bf16 %v337, %v335
        %v360 = vpack.c.bf16 %v340, %v338
        %v361 = vpack.c.bf16 %v341, %v339
        %v362 = vld [vmem:[%s1] sm:$0xff]
        %v363 = vld [vmem:[%s1 + $0x8] sm:$0xff]
        %v364 = vld [vmem:[%s1 + $0x10] sm:$0xff]
        %v365 = vld [vmem:[%s1 + $0x18] sm:$0xff]
        %v366 = vld [vmem:[%s1 + $0x20] sm:$0xff]
        %v367 = vld [vmem:[%s1 + $0x28] sm:$0xff]
        %v368 = vld [vmem:[%s1 + $0x30] sm:$0xff]
        %v369 = vld [vmem:[%s1 + $0x38] sm:$0xff]
        %v370 = vld [vmem:[%s1 + $0x40] sm:$0xff]
        %v371 = vld [vmem:[%s1 + $0x48] sm:$0xff]
        %v372 = vld [vmem:[%s1 + $0x50] sm:$0xff]
        %v373 = vld [vmem:[%s1 + $0x58] sm:$0xff]
        %v374 = vld [vmem:[%s1 + $0x60] sm:$0xff]
        %v375 = vld [vmem:[%s1 + $0x68] sm:$0xff]
        %v376 = vld [vmem:[%s1 + $0x70] sm:$0xff]
        %v377 = vld [vmem:[%s1 + $0x78] sm:$0xff]
        %v378 = vld [vmem:[%s1 + $0x80] sm:$0xff]
        %v379 = vld [vmem:[%s1 + $0x88] sm:$0xff]
        %v380 = vld [vmem:[%s1 + $0x90] sm:$0xff]
        %v381 = vld [vmem:[%s1 + $0x98] sm:$0xff]
        %v382 = vld [vmem:[%s1 + $0xa0] sm:$0xff]
        %v383 = vld [vmem:[%s1 + $0xa8] sm:$0xff]
        %v384 = vld [vmem:[%s1 + $0xb0] sm:$0xff]
        %v385 = vld [vmem:[%s1 + $0xb8] sm:$0xff]
        %v386 = vld [vmem:[%s1 + $0xc0] sm:$0xff]
        %v387 = vld [vmem:[%s1 + $0xc8] sm:$0xff]
        %v388 = vld [vmem:[%s1 + $0xd0] sm:$0xff]
        %v389 = vld [vmem:[%s1 + $0xd8] sm:$0xff]
        %v390 = vld [vmem:[%s1 + $0xe0] sm:$0xff]
        %v391 = vld [vmem:[%s1 + $0xe8] sm:$0xff]
        %v392 = vld [vmem:[%s1 + $0xf0] sm:$0xff]
        %v393 = vld [vmem:[%s1 + $0xf8] sm:$0xff]
        %v394 = vld [vmem:[%s1 + $0x100] sm:$0xff]
        %v395 = vld [vmem:[%s1 + $0x108] sm:$0xff]
        %v396 = vld [vmem:[%s1 + $0x110] sm:$0xff]
        %v397 = vld [vmem:[%s1 + $0x118] sm:$0xff]
        %v398 = vld [vmem:[%s1 + $0x120] sm:$0xff]
        %v399 = vld [vmem:[%s1 + $0x128] sm:$0xff]
        %v400 = vld [vmem:[%s1 + $0x130] sm:$0xff]
        %v401 = vld [vmem:[%s1 + $0x138] sm:$0xff]
        %v402 = vld [vmem:[%s1 + $0x140] sm:$0xff]
        %v403 = vld [vmem:[%s1 + $0x148] sm:$0xff]
        %v404 = vld [vmem:[%s1 + $0x150] sm:$0xff]
        %v405 = vld [vmem:[%s1 + $0x158] sm:$0xff]
        %v406 = vld [vmem:[%s1 + $0x160] sm:$0xff]
        %v407 = vld [vmem:[%s1 + $0x168] sm:$0xff]
        %v408 = vld [vmem:[%s1 + $0x170] sm:$0xff]
        %v409 = vld [vmem:[%s1 + $0x178] sm:$0xff]
        %v410 = vld [vmem:[%s1 + $0x180] sm:$0xff]
        %v411 = vld [vmem:[%s1 + $0x188] sm:$0xff]
        %v412 = vld [vmem:[%s1 + $0x190] sm:$0xff]
        %v413 = vld [vmem:[%s1 + $0x198] sm:$0xff]
        %v414 = vld [vmem:[%s1 + $0x1a0] sm:$0xff]
        %v415 = vld [vmem:[%s1 + $0x1a8] sm:$0xff]
        %v416 = vld [vmem:[%s1 + $0x1b0] sm:$0xff]
        %v417 = vld [vmem:[%s1 + $0x1b8] sm:$0xff]
        %v418 = vld [vmem:[%s1 + $0x1c0] sm:$0xff]
        %v419 = vld [vmem:[%s1 + $0x1c8] sm:$0xff]
        %v420 = vld [vmem:[%s1 + $0x1d0] sm:$0xff]
        %v421 = vld [vmem:[%s1 + $0x1d8] sm:$0xff]
        %v422 = vld [vmem:[%s1 + $0x1e0] sm:$0xff]
        %v423 = vld [vmem:[%s1 + $0x1e8] sm:$0xff]
        %v424 = vld [vmem:[%s1 + $0x1f0] sm:$0xff]
        %v425 = vld [vmem:[%s1 + $0x1f8] sm:$0xff]
        %v426 = vld [vmem:[%s1 + $0x200] sm:$0xff]
        %v427 = vld [vmem:[%s1 + $0x208] sm:$0xff]
        %v428 = vld [vmem:[%s1 + $0x210] sm:$0xff]
        %v429 = vld [vmem:[%s1 + $0x218] sm:$0xff]
        %v430 = vld [vmem:[%s1 + $0x220] sm:$0xff]
        %v431 = vld [vmem:[%s1 + $0x228] sm:$0xff]
        %v432 = vld [vmem:[%s1 + $0x230] sm:$0xff]
        %v433 = vld [vmem:[%s1 + $0x238] sm:$0xff]
        %v434 = vld [vmem:[%s1 + $0x240] sm:$0xff]
        %v435 = vld [vmem:[%s1 + $0x248] sm:$0xff]
        %v436 = vld [vmem:[%s1 + $0x250] sm:$0xff]
        %v437 = vld [vmem:[%s1 + $0x258] sm:$0xff]
        %v438 = vld [vmem:[%s1 + $0x260] sm:$0xff]
        %v439 = vld [vmem:[%s1 + $0x268] sm:$0xff]
        %v440 = vld [vmem:[%s1 + $0x270] sm:$0xff]
        %v441 = vld [vmem:[%s1 + $0x278] sm:$0xff]
        %v442 = vld [vmem:[%s1 + $0x280] sm:$0xff]
        %v443 = vld [vmem:[%s1 + $0x288] sm:$0xff]
        %v444 = vld [vmem:[%s1 + $0x290] sm:$0xff]
        %v445 = vld [vmem:[%s1 + $0x298] sm:$0xff]
        %v446 = vld [vmem:[%s1 + $0x2a0] sm:$0xff]
        %v447 = vld [vmem:[%s1 + $0x2a8] sm:$0xff]
        %v448 = vld [vmem:[%s1 + $0x2b0] sm:$0xff]
        %v449 = vld [vmem:[%s1 + $0x2b8] sm:$0xff]
        %v450 = vld [vmem:[%s1 + $0x2c0] sm:$0xff]
        %v451 = vld [vmem:[%s1 + $0x2c8] sm:$0xff]
        %v452 = vld [vmem:[%s1 + $0x2d0] sm:$0xff]
        %v453 = vld [vmem:[%s1 + $0x2d8] sm:$0xff]
        %v454 = vld [vmem:[%s1 + $0x2e0] sm:$0xff]
        %v455 = vld [vmem:[%s1 + $0x2e8] sm:$0xff]
        %v456 = vld [vmem:[%s1 + $0x2f0] sm:$0xff]
        %v457 = vld [vmem:[%s1 + $0x2f8] sm:$0xff]
        %v458 = vld [vmem:[%s1 + $0x300] sm:$0xff]
        %v459 = vld [vmem:[%s1 + $0x308] sm:$0xff]
        %v460 = vld [vmem:[%s1 + $0x310] sm:$0xff]
        %v461 = vld [vmem:[%s1 + $0x318] sm:$0xff]
        %v462 = vld [vmem:[%s1 + $0x320] sm:$0xff]
        %v463 = vld [vmem:[%s1 + $0x328] sm:$0xff]
        %v464 = vld [vmem:[%s1 + $0x330] sm:$0xff]
        %v465 = vld [vmem:[%s1 + $0x338] sm:$0xff]
        %v466 = vld [vmem:[%s1 + $0x340] sm:$0xff]
        %v467 = vld [vmem:[%s1 + $0x348] sm:$0xff]
        %v468 = vld [vmem:[%s1 + $0x350] sm:$0xff]
        %v469 = vld [vmem:[%s1 + $0x358] sm:$0xff]
        %v470 = vld [vmem:[%s1 + $0x360] sm:$0xff]
        %v471 = vld [vmem:[%s1 + $0x368] sm:$0xff]
        %v472 = vld [vmem:[%s1 + $0x370] sm:$0xff]
        %v473 = vld [vmem:[%s1 + $0x378] sm:$0xff]
        %v474 = vld [vmem:[%s1 + $0x380] sm:$0xff]
        %v475 = vld [vmem:[%s1 + $0x388] sm:$0xff]
        %v476 = vld [vmem:[%s1 + $0x390] sm:$0xff]
        %v477 = vld [vmem:[%s1 + $0x398] sm:$0xff]
        %v478 = vld [vmem:[%s1 + $0x3a0] sm:$0xff]
        %v479 = vld [vmem:[%s1 + $0x3a8] sm:$0xff]
        %v480 = vld [vmem:[%s1 + $0x3b0] sm:$0xff]
        %v481 = vld [vmem:[%s1 + $0x3b8] sm:$0xff]
        %v482 = vld [vmem:[%s1 + $0x3c0] sm:$0xff]
        %v483 = vld [vmem:[%s1 + $0x3c8] sm:$0xff]
        %v484 = vld [vmem:[%s1 + $0x3d0] sm:$0xff]
        %v485 = vld [vmem:[%s1 + $0x3d8] sm:$0xff]
        %v486 = vld [vmem:[%s1 + $0x3e0] sm:$0xff]
        %v487 = vld [vmem:[%s1 + $0x3e8] sm:$0xff]
        %v488 = vld [vmem:[%s1 + $0x3f0] sm:$0xff]
        %v489 = vld [vmem:[%s1 + $0x3f8] sm:$0xff]
        %v490 = vld [vmem:[%s2] sm:$0xff]
        %v492 = vlaneseq
        %v493 = vshrl.u32 %v492, 7
        %v494 = vsub.s32 0, %v493
        %v495 = vrot.slane %v490, %v494
        %v496 = vlaneseq
        %v497 = vshrl.u32 %v496, 7
        %v498 = vsub.s32 1, %v497
        %v499 = vrot.slane %v490, %v498
        %v500 = vlaneseq
        %v501 = vshrl.u32 %v500, 7
        %v502 = vsub.s32 2, %v501
        %v503 = vrot.slane %v490, %v502
        %v504 = vlaneseq
        %v505 = vshrl.u32 %v504, 7
        %v506 = vsub.s32 3, %v505
        %v507 = vrot.slane %v490, %v506
        %v508 = vlaneseq
        %v509 = vshrl.u32 %v508, 7
        %v510 = vsub.s32 4, %v509
        %v511 = vrot.slane %v490, %v510
        %v512 = vlaneseq
        %v513 = vshrl.u32 %v512, 7
        %v514 = vsub.s32 5, %v513
        %v515 = vrot.slane %v490, %v514
        %v516 = vlaneseq
        %v517 = vshrl.u32 %v516, 7
        %v518 = vsub.s32 6, %v517
        %v519 = vrot.slane %v490, %v518
        %v520 = vlaneseq
        %v521 = vshrl.u32 %v520, 7
        %v522 = vsub.s32 7, %v521
        %v523 = vrot.slane %v490, %v522
        %v660 = vunpack.c.l.b16 %v362
        %v661 = vunpack.c.h.b16 %v362
        %v662 = vunpack.c.l.b16 %v363
        %v663 = vunpack.c.h.b16 %v363
        %v664 = vunpack.c.l.b16 %v364
        %v665 = vunpack.c.h.b16 %v364
        %v666 = vunpack.c.l.b16 %v365
        %v667 = vunpack.c.h.b16 %v365
        %v668 = vunpack.c.l.b16 %v366
        %v669 = vunpack.c.h.b16 %v366
        %v670 = vunpack.c.l.b16 %v367
        %v671 = vunpack.c.h.b16 %v367
        %v672 = vunpack.c.l.b16 %v368
        %v673 = vunpack.c.h.b16 %v368
        %v674 = vunpack.c.l.b16 %v369
        %v675 = vunpack.c.h.b16 %v369
        %v676 = vunpack.c.l.b16 %v370
        %v677 = vunpack.c.h.b16 %v370
        %v678 = vunpack.c.l.b16 %v371
        %v679 = vunpack.c.h.b16 %v371
        %v680 = vunpack.c.l.b16 %v372
        %v681 = vunpack.c.h.b16 %v372
        %v682 = vunpack.c.l.b16 %v373
        %v683 = vunpack.c.h.b16 %v373
        %v684 = vunpack.c.l.b16 %v374
        %v685 = vunpack.c.h.b16 %v374
        %v686 = vunpack.c.l.b16 %v375
        %v687 = vunpack.c.h.b16 %v375
        %v688 = vunpack.c.l.b16 %v376
        %v689 = vunpack.c.h.b16 %v376
        %v690 = vunpack.c.l.b16 %v377
        %v691 = vunpack.c.h.b16 %v377
        %v692 = vunpack.c.l.b16 %v378
        %v693 = vunpack.c.h.b16 %v378
        %v694 = vunpack.c.l.b16 %v379
        %v695 = vunpack.c.h.b16 %v379
        %v696 = vunpack.c.l.b16 %v380
        %v697 = vunpack.c.h.b16 %v380
        %v698 = vunpack.c.l.b16 %v381
        %v699 = vunpack.c.h.b16 %v381
        %v700 = vunpack.c.l.b16 %v382
        %v701 = vunpack.c.h.b16 %v382
        %v702 = vunpack.c.l.b16 %v383
        %v703 = vunpack.c.h.b16 %v383
        %v704 = vunpack.c.l.b16 %v384
        %v705 = vunpack.c.h.b16 %v384
        %v706 = vunpack.c.l.b16 %v385
        %v707 = vunpack.c.h.b16 %v385
        %v708 = vunpack.c.l.b16 %v386
        %v709 = vunpack.c.h.b16 %v386
        %v710 = vunpack.c.l.b16 %v387
        %v711 = vunpack.c.h.b16 %v387
        %v712 = vunpack.c.l.b16 %v388
        %v713 = vunpack.c.h.b16 %v388
        %v714 = vunpack.c.l.b16 %v389
        %v715 = vunpack.c.h.b16 %v389
        %v716 = vunpack.c.l.b16 %v390
        %v717 = vunpack.c.h.b16 %v390
        %v718 = vunpack.c.l.b16 %v391
        %v719 = vunpack.c.h.b16 %v391
        %v720 = vunpack.c.l.b16 %v392
        %v721 = vunpack.c.h.b16 %v392
        %v722 = vunpack.c.l.b16 %v393
        %v723 = vunpack.c.h.b16 %v393
        %v724 = vunpack.c.l.b16 %v394
        %v725 = vunpack.c.h.b16 %v394
        %v726 = vunpack.c.l.b16 %v395
        %v727 = vunpack.c.h.b16 %v395
        %v728 = vunpack.c.l.b16 %v396
        %v729 = vunpack.c.h.b16 %v396
        %v730 = vunpack.c.l.b16 %v397
        %v731 = vunpack.c.h.b16 %v397
        %v732 = vunpack.c.l.b16 %v398
        %v733 = vunpack.c.h.b16 %v398
        %v734 = vunpack.c.l.b16 %v399
        %v735 = vunpack.c.h.b16 %v399
        %v736 = vunpack.c.l.b16 %v400
        %v737 = vunpack.c.h.b16 %v400
        %v738 = vunpack.c.l.b16 %v401
        %v739 = vunpack.c.h.b16 %v401
        %v740 = vunpack.c.l.b16 %v402
        %v741 = vunpack.c.h.b16 %v402
        %v742 = vunpack.c.l.b16 %v403
        %v743 = vunpack.c.h.b16 %v403
        %v744 = vunpack.c.l.b16 %v404
        %v745 = vunpack.c.h.b16 %v404
        %v746 = vunpack.c.l.b16 %v405
        %v747 = vunpack.c.h.b16 %v405
        %v748 = vunpack.c.l.b16 %v406
        %v749 = vunpack.c.h.b16 %v406
        %v750 = vunpack.c.l.b16 %v407
        %v751 = vunpack.c.h.b16 %v407
        %v752 = vunpack.c.l.b16 %v408
        %v753 = vunpack.c.h.b16 %v408
        %v754 = vunpack.c.l.b16 %v409
        %v755 = vunpack.c.h.b16 %v409
        %v756 = vunpack.c.l.b16 %v410
        %v757 = vunpack.c.h.b16 %v410
        %v758 = vunpack.c.l.b16 %v411
        %v759 = vunpack.c.h.b16 %v411
        %v760 = vunpack.c.l.b16 %v412
        %v761 = vunpack.c.h.b16 %v412
        %v762 = vunpack.c.l.b16 %v413
        %v763 = vunpack.c.h.b16 %v413
        %v764 = vunpack.c.l.b16 %v414
        %v765 = vunpack.c.h.b16 %v414
        %v766 = vunpack.c.l.b16 %v415
        %v767 = vunpack.c.h.b16 %v415
        %v768 = vunpack.c.l.b16 %v416
        %v769 = vunpack.c.h.b16 %v416
        %v770 = vunpack.c.l.b16 %v417
        %v771 = vunpack.c.h.b16 %v417
        %v772 = vunpack.c.l.b16 %v418
        %v773 = vunpack.c.h.b16 %v418
        %v774 = vunpack.c.l.b16 %v419
        %v775 = vunpack.c.h.b16 %v419
        %v776 = vunpack.c.l.b16 %v420
        %v777 = vunpack.c.h.b16 %v420
        %v778 = vunpack.c.l.b16 %v421
        %v779 = vunpack.c.h.b16 %v421
        %v780 = vunpack.c.l.b16 %v422
        %v781 = vunpack.c.h.b16 %v422
        %v782 = vunpack.c.l.b16 %v423
        %v783 = vunpack.c.h.b16 %v423
        %v784 = vunpack.c.l.b16 %v424
        %v785 = vunpack.c.h.b16 %v424
        %v786 = vunpack.c.l.b16 %v425
        %v787 = vunpack.c.h.b16 %v425
        %v788 = vunpack.c.l.b16 %v426
        %v789 = vunpack.c.h.b16 %v426
        %v790 = vunpack.c.l.b16 %v427
        %v791 = vunpack.c.h.b16 %v427
        %v792 = vunpack.c.l.b16 %v428
        %v793 = vunpack.c.h.b16 %v428
        %v794 = vunpack.c.l.b16 %v429
        %v795 = vunpack.c.h.b16 %v429
        %v796 = vunpack.c.l.b16 %v430
        %v797 = vunpack.c.h.b16 %v430
        %v798 = vunpack.c.l.b16 %v431
        %v799 = vunpack.c.h.b16 %v431
        %v800 = vunpack.c.l.b16 %v432
        %v801 = vunpack.c.h.b16 %v432
        %v802 = vunpack.c.l.b16 %v433
        %v803 = vunpack.c.h.b16 %v433
        %v804 = vunpack.c.l.b16 %v434
        %v805 = vunpack.c.h.b16 %v434
        %v806 = vunpack.c.l.b16 %v435
        %v807 = vunpack.c.h.b16 %v435
        %v808 = vunpack.c.l.b16 %v436
        %v809 = vunpack.c.h.b16 %v436
        %v810 = vunpack.c.l.b16 %v437
        %v811 = vunpack.c.h.b16 %v437
        %v812 = vunpack.c.l.b16 %v438
        %v813 = vunpack.c.h.b16 %v438
        %v814 = vunpack.c.l.b16 %v439
        %v815 = vunpack.c.h.b16 %v439
        %v816 = vunpack.c.l.b16 %v440
        %v817 = vunpack.c.h.b16 %v440
        %v818 = vunpack.c.l.b16 %v441
        %v819 = vunpack.c.h.b16 %v441
        %v820 = vunpack.c.l.b16 %v442
        %v821 = vunpack.c.h.b16 %v442
        %v822 = vunpack.c.l.b16 %v443
        %v823 = vunpack.c.h.b16 %v443
        %v824 = vunpack.c.l.b16 %v444
        %v825 = vunpack.c.h.b16 %v444
        %v826 = vunpack.c.l.b16 %v445
        %v827 = vunpack.c.h.b16 %v445
        %v828 = vunpack.c.l.b16 %v446
        %v829 = vunpack.c.h.b16 %v446
        %v830 = vunpack.c.l.b16 %v447
        %v831 = vunpack.c.h.b16 %v447
        %v832 = vunpack.c.l.b16 %v448
        %v833 = vunpack.c.h.b16 %v448
        %v834 = vunpack.c.l.b16 %v449
        %v835 = vunpack.c.h.b16 %v449
        %v836 = vunpack.c.l.b16 %v450
        %v837 = vunpack.c.h.b16 %v450
        %v838 = vunpack.c.l.b16 %v451
        %v839 = vunpack.c.h.b16 %v451
        %v840 = vunpack.c.l.b16 %v452
        %v841 = vunpack.c.h.b16 %v452
        %v842 = vunpack.c.l.b16 %v453
        %v843 = vunpack.c.h.b16 %v453
        %v844 = vunpack.c.l.b16 %v454
        %v845 = vunpack.c.h.b16 %v454
        %v846 = vunpack.c.l.b16 %v455
        %v847 = vunpack.c.h.b16 %v455
        %v848 = vunpack.c.l.b16 %v456
        %v849 = vunpack.c.h.b16 %v456
        %v850 = vunpack.c.l.b16 %v457
        %v851 = vunpack.c.h.b16 %v457
        %v852 = vunpack.c.l.b16 %v458
        %v853 = vunpack.c.h.b16 %v458
        %v854 = vunpack.c.l.b16 %v459
        %v855 = vunpack.c.h.b16 %v459
        %v856 = vunpack.c.l.b16 %v460
        %v857 = vunpack.c.h.b16 %v460
        %v858 = vunpack.c.l.b16 %v461
        %v859 = vunpack.c.h.b16 %v461
        %v860 = vunpack.c.l.b16 %v462
        %v861 = vunpack.c.h.b16 %v462
        %v862 = vunpack.c.l.b16 %v463
        %v863 = vunpack.c.h.b16 %v463
        %v864 = vunpack.c.l.b16 %v464
        %v865 = vunpack.c.h.b16 %v464
        %v866 = vunpack.c.l.b16 %v465
        %v867 = vunpack.c.h.b16 %v465
        %v868 = vunpack.c.l.b16 %v466
        %v869 = vunpack.c.h.b16 %v466
        %v870 = vunpack.c.l.b16 %v467
        %v871 = vunpack.c.h.b16 %v467
        %v872 = vunpack.c.l.b16 %v468
        %v873 = vunpack.c.h.b16 %v468
        %v874 = vunpack.c.l.b16 %v469
        %v875 = vunpack.c.h.b16 %v469
        %v876 = vunpack.c.l.b16 %v470
        %v877 = vunpack.c.h.b16 %v470
        %v878 = vunpack.c.l.b16 %v471
        %v879 = vunpack.c.h.b16 %v471
        %v880 = vunpack.c.l.b16 %v472
        %v881 = vunpack.c.h.b16 %v472
        %v882 = vunpack.c.l.b16 %v473
        %v883 = vunpack.c.h.b16 %v473
        %v884 = vunpack.c.l.b16 %v474
        %v885 = vunpack.c.h.b16 %v474
        %v886 = vunpack.c.l.b16 %v475
        %v887 = vunpack.c.h.b16 %v475
        %v888 = vunpack.c.l.b16 %v476
        %v889 = vunpack.c.h.b16 %v476
        %v890 = vunpack.c.l.b16 %v477
        %v891 = vunpack.c.h.b16 %v477
        %v892 = vunpack.c.l.b16 %v478
        %v893 = vunpack.c.h.b16 %v478
        %v894 = vunpack.c.l.b16 %v479
        %v895 = vunpack.c.h.b16 %v479
        %v896 = vunpack.c.l.b16 %v480
        %v897 = vunpack.c.h.b16 %v480
        %v898 = vunpack.c.l.b16 %v481
        %v899 = vunpack.c.h.b16 %v481
        %v900 = vunpack.c.l.b16 %v482
        %v901 = vunpack.c.h.b16 %v482
        %v902 = vunpack.c.l.b16 %v483
        %v903 = vunpack.c.h.b16 %v483
        %v904 = vunpack.c.l.b16 %v484
        %v905 = vunpack.c.h.b16 %v484
        %v906 = vunpack.c.l.b16 %v485
        %v907 = vunpack.c.h.b16 %v485
        %v908 = vunpack.c.l.b16 %v486
        %v909 = vunpack.c.h.b16 %v486
        %v910 = vunpack.c.l.b16 %v487
        %v911 = vunpack.c.h.b16 %v487
        %v912 = vunpack.c.l.b16 %v488
        %v913 = vunpack.c.h.b16 %v488
        %v914 = vunpack.c.l.b16 %v489
        %v915 = vunpack.c.h.b16 %v489
        %v916 = vpack.c.b16 %v668, %v660
        %v917 = vpack.c.b16 %v669, %v661
        %v918 = vpack.c.b16 %v670, %v662
        %v919 = vpack.c.b16 %v671, %v663
        %v920 = vpack.c.b16 %v672, %v664
        %v921 = vpack.c.b16 %v673, %v665
        %v922 = vpack.c.b16 %v674, %v666
        %v923 = vpack.c.b16 %v675, %v667
        %v924 = vpack.c.b16 %v684, %v676
        %v925 = vpack.c.b16 %v685, %v677
        %v926 = vpack.c.b16 %v686, %v678
        %v927 = vpack.c.b16 %v687, %v679
        %v928 = vpack.c.b16 %v688, %v680
        %v929 = vpack.c.b16 %v689, %v681
        %v930 = vpack.c.b16 %v690, %v682
        %v931 = vpack.c.b16 %v691, %v683
        %v932 = vpack.c.b16 %v700, %v692
        %v933 = vpack.c.b16 %v701, %v693
        %v934 = vpack.c.b16 %v702, %v694
        %v935 = vpack.c.b16 %v703, %v695
        %v936 = vpack.c.b16 %v704, %v696
        %v937 = vpack.c.b16 %v705, %v697
        %v938 = vpack.c.b16 %v706, %v698
        %v939 = vpack.c.b16 %v707, %v699
        %v940 = vpack.c.b16 %v716, %v708
        %v941 = vpack.c.b16 %v717, %v709
        %v942 = vpack.c.b16 %v718, %v710
        %v943 = vpack.c.b16 %v719, %v711
        %v944 = vpack.c.b16 %v720, %v712
        %v945 = vpack.c.b16 %v721, %v713
        %v946 = vpack.c.b16 %v722, %v714
        %v947 = vpack.c.b16 %v723, %v715
        %v948 = vpack.c.b16 %v732, %v724
        %v949 = vpack.c.b16 %v733, %v725
        %v950 = vpack.c.b16 %v734, %v726
        %v951 = vpack.c.b16 %v735, %v727
        %v952 = vpack.c.b16 %v736, %v728
        %v953 = vpack.c.b16 %v737, %v729
        %v954 = vpack.c.b16 %v738, %v730
        %v955 = vpack.c.b16 %v739, %v731
        %v956 = vpack.c.b16 %v748, %v740
        %v957 = vpack.c.b16 %v749, %v741
        %v958 = vpack.c.b16 %v750, %v742
        %v959 = vpack.c.b16 %v751, %v743
        %v960 = vpack.c.b16 %v752, %v744
        %v961 = vpack.c.b16 %v753, %v745
        %v962 = vpack.c.b16 %v754, %v746
        %v963 = vpack.c.b16 %v755, %v747
        %v964 = vpack.c.b16 %v764, %v756
        %v965 = vpack.c.b16 %v765, %v757
        %v966 = vpack.c.b16 %v766, %v758
        %v967 = vpack.c.b16 %v767, %v759
        %v968 = vpack.c.b16 %v768, %v760
        %v969 = vpack.c.b16 %v769, %v761
        %v970 = vpack.c.b16 %v770, %v762
        %v971 = vpack.c.b16 %v771, %v763
        %v972 = vpack.c.b16 %v780, %v772
        %v973 = vpack.c.b16 %v781, %v773
        %v974 = vpack.c.b16 %v782, %v774
        %v975 = vpack.c.b16 %v783, %v775
        %v976 = vpack.c.b16 %v784, %v776
        %v977 = vpack.c.b16 %v785, %v777
        %v978 = vpack.c.b16 %v786, %v778
        %v979 = vpack.c.b16 %v787, %v779
        %v980 = vpack.c.b16 %v796, %v788
        %v981 = vpack.c.b16 %v797, %v789
        %v982 = vpack.c.b16 %v798, %v790
        %v983 = vpack.c.b16 %v799, %v791
        %v984 = vpack.c.b16 %v800, %v792
        %v985 = vpack.c.b16 %v801, %v793
        %v986 = vpack.c.b16 %v802, %v794
        %v987 = vpack.c.b16 %v803, %v795
        %v988 = vpack.c.b16 %v812, %v804
        %v989 = vpack.c.b16 %v813, %v805
        %v990 = vpack.c.b16 %v814, %v806
        %v991 = vpack.c.b16 %v815, %v807
        %v992 = vpack.c.b16 %v816, %v808
        %v993 = vpack.c.b16 %v817, %v809
        %v994 = vpack.c.b16 %v818, %v810
        %v995 = vpack.c.b16 %v819, %v811
        %v996 = vpack.c.b16 %v828, %v820
        %v997 = vpack.c.b16 %v829, %v821
        %v998 = vpack.c.b16 %v830, %v822
        %v999 = vpack.c.b16 %v831, %v823
        %v1000 = vpack.c.b16 %v832, %v824
        %v1001 = vpack.c.b16 %v833, %v825
        %v1002 = vpack.c.b16 %v834, %v826
        %v1003 = vpack.c.b16 %v835, %v827
        %v1004 = vpack.c.b16 %v844, %v836
        %v1005 = vpack.c.b16 %v845, %v837
        %v1006 = vpack.c.b16 %v846, %v838
        %v1007 = vpack.c.b16 %v847, %v839
        %v1008 = vpack.c.b16 %v848, %v840
        %v1009 = vpack.c.b16 %v849, %v841
        %v1010 = vpack.c.b16 %v850, %v842
        %v1011 = vpack.c.b16 %v851, %v843
        %v1012 = vpack.c.b16 %v860, %v852
        %v1013 = vpack.c.b16 %v861, %v853
        %v1014 = vpack.c.b16 %v862, %v854
        %v1015 = vpack.c.b16 %v863, %v855
        %v1016 = vpack.c.b16 %v864, %v856
        %v1017 = vpack.c.b16 %v865, %v857
        %v1018 = vpack.c.b16 %v866, %v858
        %v1019 = vpack.c.b16 %v867, %v859
        %v1020 = vpack.c.b16 %v876, %v868
        %v1021 = vpack.c.b16 %v877, %v869
        %v1022 = vpack.c.b16 %v878, %v870
        %v1023 = vpack.c.b16 %v879, %v871
        %v1024 = vpack.c.b16 %v880, %v872
        %v1025 = vpack.c.b16 %v881, %v873
        %v1026 = vpack.c.b16 %v882, %v874
        %v1027 = vpack.c.b16 %v883, %v875
        %v1028 = vpack.c.b16 %v892, %v884
        %v1029 = vpack.c.b16 %v893, %v885
        %v1030 = vpack.c.b16 %v894, %v886
        %v1031 = vpack.c.b16 %v895, %v887
        %v1032 = vpack.c.b16 %v896, %v888
        %v1033 = vpack.c.b16 %v897, %v889
        %v1034 = vpack.c.b16 %v898, %v890
        %v1035 = vpack.c.b16 %v899, %v891
        %v1036 = vpack.c.b16 %v908, %v900
        %v1037 = vpack.c.b16 %v909, %v901
        %v1038 = vpack.c.b16 %v910, %v902
        %v1039 = vpack.c.b16 %v911, %v903
        %v1040 = vpack.c.b16 %v912, %v904
        %v1041 = vpack.c.b16 %v913, %v905
        %v1042 = vpack.c.b16 %v914, %v906
        %v1043 = vpack.c.b16 %v915, %v907
        %1172 = vmatprep.subr.bf16.mxu0 %v917
        %1173 = vmatpush1.bf16.msra.mxu0 %v916
        %1174 = vmatprep.subr.bf16.mxu0 %v925
        %1175 = vmatpush1.bf16.msra.mxu0 %v924
        %1176 = vmatprep.subr.bf16.mxu0 %v933
        %1177 = vmatpush1.bf16.msra.mxu0 %v932
        %1178 = vmatprep.subr.bf16.mxu0 %v941
        %1179 = vmatpush1.bf16.msra.mxu0 %v940
        %1180 = vmatprep.subr.bf16.mxu0 %v949
        %1181 = vmatpush1.bf16.msra.mxu0 %v948
        %1182 = vmatprep.subr.bf16.mxu0 %v957
        %1183 = vmatpush1.bf16.msra.mxu0 %v956
        %1184 = vmatprep.subr.bf16.mxu0 %v965
        %1185 = vmatpush1.bf16.msra.mxu0 %v964
        %1186 = vmatprep.subr.bf16.mxu0 %v973
        %1187 = vmatpush1.bf16.msra.mxu0 %v972
        %1188 = vmatprep.subr.bf16.mxu0 %v981
        %1189 = vmatpush1.bf16.msra.mxu0 %v980
        %1190 = vmatprep.subr.bf16.mxu0 %v989
        %1191 = vmatpush1.bf16.msra.mxu0 %v988
        %1192 = vmatprep.subr.bf16.mxu0 %v997
        %1193 = vmatpush1.bf16.msra.mxu0 %v996
        %1194 = vmatprep.subr.bf16.mxu0 %v1005
        %1195 = vmatpush1.bf16.msra.mxu0 %v1004
        %1196 = vmatprep.subr.bf16.mxu0 %v1013
        %1197 = vmatpush1.bf16.msra.mxu0 %v1012
        %1198 = vmatprep.subr.bf16.mxu0 %v1021
        %1199 = vmatpush1.bf16.msra.mxu0 %v1020
        %1200 = vmatprep.subr.bf16.mxu0 %v1029
        %1201 = vmatpush1.bf16.msra.mxu0 %v1028
        %1202 = vmatprep.subr.bf16.mxu0 %v1037
        %1203 = vmatpush1.bf16.msra.mxu0 %v1036
        %1204 = vmatprep.mubr.bf16.mxu0 %v343
        %1205 = vmatmul.mubr.bf16.gmra.mrb[0].mxu0 %v342
        %v1206 = vpop.f32.mrb[0].mxu0
        %v1207 = vadd.f32 %v495, %v1206
        %v1208 = vpop.f32.mrb[0].mxu0
        %v1209 = vadd.f32 %v499, %v1208
        %v1210 = vpop.f32.mrb[0].mxu0
        %v1211 = vadd.f32 %v495, %v1210
        %v1212 = vpop.f32.mrb[0].mxu0
        %v1213 = vadd.f32 %v499, %v1212
        %1214 = vmatprep.mubr.bf16.mxu0 %v345
        %1215 = vmatmul.mubr.bf16.gmra.mrb[0].mxu0 %v344
        %v1216 = vpop.f32.mrb[0].mxu0
        %v1217 = vadd.f32 %v495, %v1216
        %v1218 = vpop.f32.mrb[0].mxu0
        %v1219 = vadd.f32 %v499, %v1218
        %v1220 = vpop.f32.mrb[0].mxu0
        %v1221 = vadd.f32 %v495, %v1220
        %v1222 = vpop.f32.mrb[0].mxu0
        %v1223 = vadd.f32 %v499, %v1222
        %1224 = vmatprep.mubr.bf16.mxu0 %v347
        %1225 = vmatmul.mubr.bf16.gmra.mrb[0].mxu0 %v346
        %v1226 = vpop.f32.mrb[0].mxu0
        %v1227 = vadd.f32 %v495, %v1226
        %v1228 = vpop.f32.mrb[0].mxu0
        %v1229 = vadd.f32 %v499, %v1228
        %v1230 = vpop.f32.mrb[0].mxu0
        %v1231 = vadd.f32 %v495, %v1230
        %v1232 = vpop.f32.mrb[0].mxu0
        %v1233 = vadd.f32 %v499, %v1232
        %1234 = vmatprep.mubr.bf16.mxu0 %v349
        %1235 = vmatmul.mubr.bf16.gmra.mrb[0].mxu0 %v348
        %v1236 = vpop.f32.mrb[0].mxu0
        %v1237 = vadd.f32 %v495, %v1236
        %v1238 = vpop.f32.mrb[0].mxu0
        %v1239 = vadd.f32 %v499, %v1238
        %v1240 = vpop.f32.mrb[0].mxu0
        %v1241 = vadd.f32 %v495, %v1240
        %v1242 = vpop.f32.mrb[0].mxu0
        %v1243 = vadd.f32 %v499, %v1242
        %1244 = vmatprep.mubr.bf16.mxu0 %v351
        %1245 = vmatmul.mubr.bf16.gmra.mrb[0].mxu0 %v350
        %v1246 = vpop.f32.mrb[0].mxu0
        %v1247 = vadd.f32 %v495, %v1246
        %v1248 = vpop.f32.mrb[0].mxu0
        %v1249 = vadd.f32 %v499, %v1248
        %v1250 = vpop.f32.mrb[0].mxu0
        %v1251 = vadd.f32 %v495, %v1250
        %v1252 = vpop.f32.mrb[0].mxu0
        %v1253 = vadd.f32 %v499, %v1252
        %1254 = vmatprep.mubr.bf16.mxu0 %v353
        %1255 = vmatmul.mubr.bf16.gmra.mrb[0].mxu0 %v352
        %v1256 = vpop.f32.mrb[0].mxu0
        %v1257 = vadd.f32 %v495, %v1256
        %v1258 = vpop.f32.mrb[0].mxu0
        %v1259 = vadd.f32 %v499, %v1258
        %v1260 = vpop.f32.mrb[0].mxu0
        %v1261 = vadd.f32 %v495, %v1260
        %v1262 = vpop.f32.mrb[0].mxu0
        %v1263 = vadd.f32 %v499, %v1262
        %1264 = vmatprep.mubr.bf16.mxu0 %v355
        %1265 = vmatmul.mubr.bf16.gmra.mrb[0].mxu0 %v354
        %v1266 = vpop.f32.mrb[0].mxu0
        %v1267 = vadd.f32 %v495, %v1266
        %v1268 = vpop.f32.mrb[0].mxu0
        %v1269 = vadd.f32 %v499, %v1268
        %v1270 = vpop.f32.mrb[0].mxu0
        %v1271 = vadd.f32 %v495, %v1270
        %v1272 = vpop.f32.mrb[0].mxu0
        %v1273 = vadd.f32 %v499, %v1272
        %1274 = vmatprep.mubr.bf16.mxu0 %v357
        %1275 = vmatmul.mubr.bf16.gmra.mrb[0].mxu0 %v356
        %v1276 = vpop.f32.mrb[0].mxu0
        %v1277 = vadd.f32 %v495, %v1276
        %v1278 = vpop.f32.mrb[0].mxu0
        %v1279 = vadd.f32 %v499, %v1278
        %v1280 = vpop.f32.mrb[0].mxu0
        %v1281 = vadd.f32 %v495, %v1280
        %v1282 = vpop.f32.mrb[0].mxu0
        %v1283 = vadd.f32 %v499, %v1282
        %1284 = vmatprep.mubr.bf16.mxu0 %v359
        %1285 = vmatmul.mubr.bf16.gmra.mrb[0].mxu0 %v358
        %v1286 = vpop.f32.mrb[0].mxu0
        %v1287 = vadd.f32 %v495, %v1286
        %v1288 = vpop.f32.mrb[0].mxu0
        %v1289 = vadd.f32 %v499, %v1288
        %v1290 = vpop.f32.mrb[0].mxu0
        %v1291 = vadd.f32 %v495, %v1290
        %v1292 = vpop.f32.mrb[0].mxu0
        %v1293 = vadd.f32 %v499, %v1292
        %1294 = vmatprep.mubr.bf16.mxu0 %v361
        %1295 = vmatmul.mubr.bf16.gmra.mrb[0].mxu0 %v360
        %v1296 = vpop.f32.mrb[0].mxu0
        %v1297 = vadd.f32 %v495, %v1296
        %v1298 = vpop.f32.mrb[0].mxu0
        %v1299 = vadd.f32 %v499, %v1298
        %v1300 = vpop.f32.mrb[0].mxu0
        %v1301 = vadd.f32 %v495, %v1300
        %v1302 = vpop.f32.mrb[0].mxu0
        %v1303 = vadd.f32 %v499, %v1302
        %1304 = vdwg.mxu0
        %1305 = vmatprep.subr.bf16.mxu0 %v919
        %1306 = vmatpush1.bf16.msra.mxu0 %v918
        %1307 = vmatprep.subr.bf16.mxu0 %v927
        %1308 = vmatpush1.bf16.msra.mxu0 %v926
        %1309 = vmatprep.subr.bf16.mxu0 %v935
        %1310 = vmatpush1.bf16.msra.mxu0 %v934
        %1311 = vmatprep.subr.bf16.mxu0 %v943
        %1312 = vmatpush1.bf16.msra.mxu0 %v942
        %1313 = vmatprep.subr.bf16.mxu0 %v951
        %1314 = vmatpush1.bf16.msra.mxu0 %v950
        %1315 = vmatprep.subr.bf16.mxu0 %v959
        %1316 = vmatpush1.bf16.msra.mxu0 %v958
        %1317 = vmatprep.subr.bf16.mxu0 %v967
        %1318 = vmatpush1.bf16.msra.mxu0 %v966
        %1319 = vmatprep.subr.bf16.mxu0 %v975
        %1320 = vmatpush1.bf16.msra.mxu0 %v974
        %1321 = vmatprep.subr.bf16.mxu0 %v983
        %1322 = vmatpush1.bf16.msra.mxu0 %v982
        %1323 = vmatprep.subr.bf16.mxu0 %v991
        %1324 = vmatpush1.bf16.msra.mxu0 %v990
        %1325 = vmatprep.subr.bf16.mxu0 %v999
        %1326 = vmatpush1.bf16.msra.mxu0 %v998
        %1327 = vmatprep.subr.bf16.mxu0 %v1007
        %1328 = vmatpush1.bf16.msra.mxu0 %v1006
        %1329 = vmatprep.subr.bf16.mxu0 %v1015
        %1330 = vmatpush1.bf16.msra.mxu0 %v1014
        %1331 = vmatprep.subr.bf16.mxu0 %v1023
        %1332 = vmatpush1.bf16.msra.mxu0 %v1022
        %1333 = vmatprep.subr.bf16.mxu0 %v1031
        %1334 = vmatpush1.bf16.msra.mxu0 %v1030
        %1335 = vmatprep.subr.bf16.mxu0 %v1039
        %1336 = vmatpush1.bf16.msra.mxu0 %v1038
        %1337 = vmatprep.mubr.bf16.mxu0 %v343
        %1338 = vmatmul.mubr.bf16.gmra.mrb[0].mxu0 %v342
        %v1339 = vpop.f32.mrb[0].mxu0
        %v1340 = vadd.f32 %v503, %v1339
        %v1341 = vpop.f32.mrb[0].mxu0
        %v1342 = vadd.f32 %v507, %v1341
        %v1343 = vpop.f32.mrb[0].mxu0
        %v1344 = vadd.f32 %v503, %v1343
        %v1345 = vpop.f32.mrb[0].mxu0
        %v1346 = vadd.f32 %v507, %v1345
        %1347 = vmatprep.mubr.bf16.mxu0 %v345
        %1348 = vmatmul.mubr.bf16.gmra.mrb[0].mxu0 %v344
        %v1349 = vpop.f32.mrb[0].mxu0
        %v1350 = vadd.f32 %v503, %v1349
        %v1351 = vpop.f32.mrb[0].mxu0
        %v1352 = vadd.f32 %v507, %v1351
        %v1353 = vpop.f32.mrb[0].mxu0
        %v1354 = vadd.f32 %v503, %v1353
        %v1355 = vpop.f32.mrb[0].mxu0
        %v1356 = vadd.f32 %v507, %v1355
        %1357 = vmatprep.mubr.bf16.mxu0 %v347
        %1358 = vmatmul.mubr.bf16.gmra.mrb[0].mxu0 %v346
        %v1359 = vpop.f32.mrb[0].mxu0
        %v1360 = vadd.f32 %v503, %v1359
        %v1361 = vpop.f32.mrb[0].mxu0
        %v1362 = vadd.f32 %v507, %v1361
        %v1363 = vpop.f32.mrb[0].mxu0
        %v1364 = vadd.f32 %v503, %v1363
        %v1365 = vpop.f32.mrb[0].mxu0
        %v1366 = vadd.f32 %v507, %v1365
        %1367 = vmatprep.mubr.bf16.mxu0 %v349
        %1368 = vmatmul.mubr.bf16.gmra.mrb[0].mxu0 %v348
        %v1369 = vpop.f32.mrb[0].mxu0
        %v1370 = vadd.f32 %v503, %v1369
        %v1371 = vpop.f32.mrb[0].mxu0
        %v1372 = vadd.f32 %v507, %v1371
        %v1373 = vpop.f32.mrb[0].mxu0
        %v1374 = vadd.f32 %v503, %v1373
        %v1375 = vpop.f32.mrb[0].mxu0
        %v1376 = vadd.f32 %v507, %v1375
        %1377 = vmatprep.mubr.bf16.mxu0 %v351
        %1378 = vmatmul.mubr.bf16.gmra.mrb[0].mxu0 %v350
        %v1379 = vpop.f32.mrb[0].mxu0
        %v1380 = vadd.f32 %v503, %v1379
        %v1381 = vpop.f32.mrb[0].mxu0
        %v1382 = vadd.f32 %v507, %v1381
        %v1383 = vpop.f32.mrb[0].mxu0
        %v1384 = vadd.f32 %v503, %v1383
        %v1385 = vpop.f32.mrb[0].mxu0
        %v1386 = vadd.f32 %v507, %v1385
        %1387 = vmatprep.mubr.bf16.mxu0 %v353
        %1388 = vmatmul.mubr.bf16.gmra.mrb[0].mxu0 %v352
        %v1389 = vpop.f32.mrb[0].mxu0
        %v1390 = vadd.f32 %v503, %v1389
        %v1391 = vpop.f32.mrb[0].mxu0
        %v1392 = vadd.f32 %v507, %v1391
        %v1393 = vpop.f32.mrb[0].mxu0
        %v1394 = vadd.f32 %v503, %v1393
        %v1395 = vpop.f32.mrb[0].mxu0
        %v1396 = vadd.f32 %v507, %v1395
        %1397 = vmatprep.mubr.bf16.mxu0 %v355
        %1398 = vmatmul.mubr.bf16.gmra.mrb[0].mxu0 %v354
        %v1399 = vpop.f32.mrb[0].mxu0
        %v1400 = vadd.f32 %v503, %v1399
        %v1401 = vpop.f32.mrb[0].mxu0
        %v1402 = vadd.f32 %v507, %v1401
        %v1403 = vpop.f32.mrb[0].mxu0
        %v1404 = vadd.f32 %v503, %v1403
        %v1405 = vpop.f32.mrb[0].mxu0
        %v1406 = vadd.f32 %v507, %v1405
        %1407 = vmatprep.mubr.bf16.mxu0 %v357
        %1408 = vmatmul.mubr.bf16.gmra.mrb[0].mxu0 %v356
        %v1409 = vpop.f32.mrb[0].mxu0
        %v1410 = vadd.f32 %v503, %v1409
        %v1411 = vpop.f32.mrb[0].mxu0
        %v1412 = vadd.f32 %v507, %v1411
        %v1413 = vpop.f32.mrb[0].mxu0
        %v1414 = vadd.f32 %v503, %v1413
        %v1415 = vpop.f32.mrb[0].mxu0
        %v1416 = vadd.f32 %v507, %v1415
        %1417 = vmatprep.mubr.bf16.mxu0 %v359
        %1418 = vmatmul.mubr.bf16.gmra.mrb[0].mxu0 %v358
        %v1419 = vpop.f32.mrb[0].mxu0
        %v1420 = vadd.f32 %v503, %v1419
        %v1421 = vpop.f32.mrb[0].mxu0
        %v1422 = vadd.f32 %v507, %v1421
        %v1423 = vpop.f32.mrb[0].mxu0
        %v1424 = vadd.f32 %v503, %v1423
        %v1425 = vpop.f32.mrb[0].mxu0
        %v1426 = vadd.f32 %v507, %v1425
        %1427 = vmatprep.mubr.bf16.mxu0 %v361
        %1428 = vmatmul.mubr.bf16.gmra.mrb[0].mxu0 %v360
        %v1429 = vpop.f32.mrb[0].mxu0
        %v1430 = vadd.f32 %v503, %v1429
        %v1431 = vpop.f32.mrb[0].mxu0
        %v1432 = vadd.f32 %v507, %v1431
        %v1433 = vpop.f32.mrb[0].mxu0
        %v1434 = vadd.f32 %v503, %v1433
        %v1435 = vpop.f32.mrb[0].mxu0
        %v1436 = vadd.f32 %v507, %v1435
        %1437 = vdwg.mxu0
        %1438 = vmatprep.subr.bf16.mxu0 %v921
        %1439 = vmatpush1.bf16.msra.mxu0 %v920
        %1440 = vmatprep.subr.bf16.mxu0 %v929
        %1441 = vmatpush1.bf16.msra.mxu0 %v928
        %1442 = vmatprep.subr.bf16.mxu0 %v937
        %1443 = vmatpush1.bf16.msra.mxu0 %v936
        %1444 = vmatprep.subr.bf16.mxu0 %v945
        %1445 = vmatpush1.bf16.msra.mxu0 %v944
        %1446 = vmatprep.subr.bf16.mxu0 %v953
        %1447 = vmatpush1.bf16.msra.mxu0 %v952
        %1448 = vmatprep.subr.bf16.mxu0 %v961
        %1449 = vmatpush1.bf16.msra.mxu0 %v960
        %1450 = vmatprep.subr.bf16.mxu0 %v969
        %1451 = vmatpush1.bf16.msra.mxu0 %v968
        %1452 = vmatprep.subr.bf16.mxu0 %v977
        %1453 = vmatpush1.bf16.msra.mxu0 %v976
        %1454 = vmatprep.subr.bf16.mxu0 %v985
        %1455 = vmatpush1.bf16.msra.mxu0 %v984
        %1456 = vmatprep.subr.bf16.mxu0 %v993
        %1457 = vmatpush1.bf16.msra.mxu0 %v992
        %1458 = vmatprep.subr.bf16.mxu0 %v1001
        %1459 = vmatpush1.bf16.msra.mxu0 %v1000
        %1460 = vmatprep.subr.bf16.mxu0 %v1009
        %1461 = vmatpush1.bf16.msra.mxu0 %v1008
        %1462 = vmatprep.subr.bf16.mxu0 %v1017
        %1463 = vmatpush1.bf16.msra.mxu0 %v1016
        %1464 = vmatprep.subr.bf16.mxu0 %v1025
        %1465 = vmatpush1.bf16.msra.mxu0 %v1024
        %1466 = vmatprep.subr.bf16.mxu0 %v1033
        %1467 = vmatpush1.bf16.msra.mxu0 %v1032
        %1468 = vmatprep.subr.bf16.mxu0 %v1041
        %1469 = vmatpush1.bf16.msra.mxu0 %v1040
        %1470 = vmatprep.mubr.bf16.mxu0 %v343
        %1471 = vmatmul.mubr.bf16.gmra.mrb[0].mxu0 %v342
        %v1472 = vpop.f32.mrb[0].mxu0
        %v1473 = vadd.f32 %v511, %v1472
        %v1474 = vpop.f32.mrb[0].mxu0
        %v1475 = vadd.f32 %v515, %v1474
        %v1476 = vpop.f32.mrb[0].mxu0
        %v1477 = vadd.f32 %v511, %v1476
        %v1478 = vpop.f32.mrb[0].mxu0
        %v1479 = vadd.f32 %v515, %v1478
        %1480 = vmatprep.mubr.bf16.mxu0 %v345
        %1481 = vmatmul.mubr.bf16.gmra.mrb[0].mxu0 %v344
        %v1482 = vpop.f32.mrb[0].mxu0
        %v1483 = vadd.f32 %v511, %v1482
        %v1484 = vpop.f32.mrb[0].mxu0
        %v1485 = vadd.f32 %v515, %v1484
        %v1486 = vpop.f32.mrb[0].mxu0
        %v1487 = vadd.f32 %v511, %v1486
        %v1488 = vpop.f32.mrb[0].mxu0
        %v1489 = vadd.f32 %v515, %v1488
        %1490 = vmatprep.mubr.bf16.mxu0 %v347
        %1491 = vmatmul.mubr.bf16.gmra.mrb[0].mxu0 %v346
        %v1492 = vpop.f32.mrb[0].mxu0
        %v1493 = vadd.f32 %v511, %v1492
        %v1494 = vpop.f32.mrb[0].mxu0
        %v1495 = vadd.f32 %v515, %v1494
        %v1496 = vpop.f32.mrb[0].mxu0
        %v1497 = vadd.f32 %v511, %v1496
        %v1498 = vpop.f32.mrb[0].mxu0
        %v1499 = vadd.f32 %v515, %v1498
        %1500 = vmatprep.mubr.bf16.mxu0 %v349
        %1501 = vmatmul.mubr.bf16.gmra.mrb[0].mxu0 %v348
        %v1502 = vpop.f32.mrb[0].mxu0
        %v1503 = vadd.f32 %v511, %v1502
        %v1504 = vpop.f32.mrb[0].mxu0
        %v1505 = vadd.f32 %v515, %v1504
        %v1506 = vpop.f32.mrb[0].mxu0
        %v1507 = vadd.f32 %v511, %v1506
        %v1508 = vpop.f32.mrb[0].mxu0
        %v1509 = vadd.f32 %v515, %v1508
        %1510 = vmatprep.mubr.bf16.mxu0 %v351
        %1511 = vmatmul.mubr.bf16.gmra.mrb[0].mxu0 %v350
        %v1512 = vpop.f32.mrb[0].mxu0
        %v1513 = vadd.f32 %v511, %v1512
        %v1514 = vpop.f32.mrb[0].mxu0
        %v1515 = vadd.f32 %v515, %v1514
        %v1516 = vpop.f32.mrb[0].mxu0
        %v1517 = vadd.f32 %v511, %v1516
        %v1518 = vpop.f32.mrb[0].mxu0
        %v1519 = vadd.f32 %v515, %v1518
        %1520 = vmatprep.mubr.bf16.mxu0 %v353
        %1521 = vmatmul.mubr.bf16.gmra.mrb[0].mxu0 %v352
        %v1522 = vpop.f32.mrb[0].mxu0
        %v1523 = vadd.f32 %v511, %v1522
        %v1524 = vpop.f32.mrb[0].mxu0
        %v1525 = vadd.f32 %v515, %v1524
        %v1526 = vpop.f32.mrb[0].mxu0
        %v1527 = vadd.f32 %v511, %v1526
        %v1528 = vpop.f32.mrb[0].mxu0
        %v1529 = vadd.f32 %v515, %v1528
        %1530 = vmatprep.mubr.bf16.mxu0 %v355
        %1531 = vmatmul.mubr.bf16.gmra.mrb[0].mxu0 %v354
        %v1532 = vpop.f32.mrb[0].mxu0
        %v1533 = vadd.f32 %v511, %v1532
        %v1534 = vpop.f32.mrb[0].mxu0
        %v1535 = vadd.f32 %v515, %v1534
        %v1536 = vpop.f32.mrb[0].mxu0
        %v1537 = vadd.f32 %v511, %v1536
        %v1538 = vpop.f32.mrb[0].mxu0
        %v1539 = vadd.f32 %v515, %v1538
        %1540 = vmatprep.mubr.bf16.mxu0 %v357
        %1541 = vmatmul.mubr.bf16.gmra.mrb[0].mxu0 %v356
        %v1542 = vpop.f32.mrb[0].mxu0
        %v1543 = vadd.f32 %v511, %v1542
        %v1544 = vpop.f32.mrb[0].mxu0
        %v1545 = vadd.f32 %v515, %v1544
        %v1546 = vpop.f32.mrb[0].mxu0
        %v1547 = vadd.f32 %v511, %v1546
        %v1548 = vpop.f32.mrb[0].mxu0
        %v1549 = vadd.f32 %v515, %v1548
        %1550 = vmatprep.mubr.bf16.mxu0 %v359
        %1551 = vmatmul.mubr.bf16.gmra.mrb[0].mxu0 %v358
        %v1552 = vpop.f32.mrb[0].mxu0
        %v1553 = vadd.f32 %v511, %v1552
        %v1554 = vpop.f32.mrb[0].mxu0
        %v1555 = vadd.f32 %v515, %v1554
        %v1556 = vpop.f32.mrb[0].mxu0
        %v1557 = vadd.f32 %v511, %v1556
        %v1558 = vpop.f32.mrb[0].mxu0
        %v1559 = vadd.f32 %v515, %v1558
        %1560 = vmatprep.mubr.bf16.mxu0 %v361
        %1561 = vmatmul.mubr.bf16.gmra.mrb[0].mxu0 %v360
        %v1562 = vpop.f32.mrb[0].mxu0
        %v1563 = vadd.f32 %v511, %v1562
        %v1564 = vpop.f32.mrb[0].mxu0
        %v1565 = vadd.f32 %v515, %v1564
        %v1566 = vpop.f32.mrb[0].mxu0
        %v1567 = vadd.f32 %v511, %v1566
        %v1568 = vpop.f32.mrb[0].mxu0
        %v1569 = vadd.f32 %v515, %v1568
        %1570 = vdwg.mxu0
        %1571 = vmatprep.subr.bf16.mxu0 %v923
        %1572 = vmatpush1.bf16.msra.mxu0 %v922
        %1573 = vmatprep.subr.bf16.mxu0 %v931
        %1574 = vmatpush1.bf16.msra.mxu0 %v930
        %1575 = vmatprep.subr.bf16.mxu0 %v939
        %1576 = vmatpush1.bf16.msra.mxu0 %v938
        %1577 = vmatprep.subr.bf16.mxu0 %v947
        %1578 = vmatpush1.bf16.msra.mxu0 %v946
        %1579 = vmatprep.subr.bf16.mxu0 %v955
        %1580 = vmatpush1.bf16.msra.mxu0 %v954
        %1581 = vmatprep.subr.bf16.mxu0 %v963
        %1582 = vmatpush1.bf16.msra.mxu0 %v962
        %1583 = vmatprep.subr.bf16.mxu0 %v971
        %1584 = vmatpush1.bf16.msra.mxu0 %v970
        %1585 = vmatprep.subr.bf16.mxu0 %v979
        %1586 = vmatpush1.bf16.msra.mxu0 %v978
        %1587 = vmatprep.subr.bf16.mxu0 %v987
        %1588 = vmatpush1.bf16.msra.mxu0 %v986
        %1589 = vmatprep.subr.bf16.mxu0 %v995
        %1590 = vmatpush1.bf16.msra.mxu0 %v994
        %1591 = vmatprep.subr.bf16.mxu0 %v1003
        %1592 = vmatpush1.bf16.msra.mxu0 %v1002
        %1593 = vmatprep.subr.bf16.mxu0 %v1011
        %1594 = vmatpush1.bf16.msra.mxu0 %v1010
        %1595 = vmatprep.subr.bf16.mxu0 %v1019
        %1596 = vmatpush1.bf16.msra.mxu0 %v1018
        %1597 = vmatprep.subr.bf16.mxu0 %v1027
        %1598 = vmatpush1.bf16.msra.mxu0 %v1026
        %1599 = vmatprep.subr.bf16.mxu0 %v1035
        %1600 = vmatpush1.bf16.msra.mxu0 %v1034
        %1601 = vmatprep.subr.bf16.mxu0 %v1043
        %1602 = vmatpush1.bf16.msra.mxu0 %v1042
        %1603 = vmatprep.mubr.bf16.mxu0 %v343
        %1604 = vmatmul.mubr.bf16.gmra.mrb[0].mxu0 %v342
        %v1605 = vpop.f32.mrb[0].mxu0
        %v1606 = vadd.f32 %v519, %v1605
        %v1607 = vpop.f32.mrb[0].mxu0
        %v1608 = vadd.f32 %v523, %v1607
        %v1609 = vpop.f32.mrb[0].mxu0
        %v1610 = vadd.f32 %v519, %v1609
        %v1611 = vpop.f32.mrb[0].mxu0
        %v1612 = vadd.f32 %v523, %v1611
        %1613 = vmatprep.mubr.bf16.mxu0 %v345
        %1614 = vmatmul.mubr.bf16.gmra.mrb[0].mxu0 %v344
        %v1615 = vpop.f32.mrb[0].mxu0
        %v1616 = vadd.f32 %v519, %v1615
        %v1617 = vpop.f32.mrb[0].mxu0
        %v1618 = vadd.f32 %v523, %v1617
        %v1619 = vpop.f32.mrb[0].mxu0
        %v1620 = vadd.f32 %v519, %v1619
        %v1621 = vpop.f32.mrb[0].mxu0
        %v1622 = vadd.f32 %v523, %v1621
        %1623 = vmatprep.mubr.bf16.mxu0 %v347
        %1624 = vmatmul.mubr.bf16.gmra.mrb[0].mxu0 %v346
        %v1625 = vpop.f32.mrb[0].mxu0
        %v1626 = vadd.f32 %v519, %v1625
        %v1627 = vpop.f32.mrb[0].mxu0
        %v1628 = vadd.f32 %v523, %v1627
        %v1629 = vpop.f32.mrb[0].mxu0
        %v1630 = vadd.f32 %v519, %v1629
        %v1631 = vpop.f32.mrb[0].mxu0
        %v1632 = vadd.f32 %v523, %v1631
        %1633 = vmatprep.mubr.bf16.mxu0 %v349
        %1634 = vmatmul.mubr.bf16.gmra.mrb[0].mxu0 %v348
        %v1635 = vpop.f32.mrb[0].mxu0
        %v1636 = vadd.f32 %v519, %v1635
        %v1637 = vpop.f32.mrb[0].mxu0
        %v1638 = vadd.f32 %v523, %v1637
        %v1639 = vpop.f32.mrb[0].mxu0
        %v1640 = vadd.f32 %v519, %v1639
        %v1641 = vpop.f32.mrb[0].mxu0
        %v1642 = vadd.f32 %v523, %v1641
        %1643 = vmatprep.mubr.bf16.mxu0 %v351
        %1644 = vmatmul.mubr.bf16.gmra.mrb[0].mxu0 %v350
        %v1645 = vpop.f32.mrb[0].mxu0
        %v1646 = vadd.f32 %v519, %v1645
        %v1647 = vpop.f32.mrb[0].mxu0
        %v1648 = vadd.f32 %v523, %v1647
        %v1649 = vpop.f32.mrb[0].mxu0
        %v1650 = vadd.f32 %v519, %v1649
        %v1651 = vpop.f32.mrb[0].mxu0
        %v1652 = vadd.f32 %v523, %v1651
        %1653 = vmatprep.mubr.bf16.mxu0 %v353
        %1654 = vmatmul.mubr.bf16.gmra.mrb[0].mxu0 %v352
        %v1655 = vpop.f32.mrb[0].mxu0
        %v1656 = vadd.f32 %v519, %v1655
        %v1657 = vpop.f32.mrb[0].mxu0
        %v1658 = vadd.f32 %v523, %v1657
        %v1659 = vpop.f32.mrb[0].mxu0
        %v1660 = vadd.f32 %v519, %v1659
        %v1661 = vpop.f32.mrb[0].mxu0
        %v1662 = vadd.f32 %v523, %v1661
        %1663 = vmatprep.mubr.bf16.mxu0 %v355
        %1664 = vmatmul.mubr.bf16.gmra.mrb[0].mxu0 %v354
        %v1665 = vpop.f32.mrb[0].mxu0
        %v1666 = vadd.f32 %v519, %v1665
        %v1667 = vpop.f32.mrb[0].mxu0
        %v1668 = vadd.f32 %v523, %v1667
        %v1669 = vpop.f32.mrb[0].mxu0
        %v1670 = vadd.f32 %v519, %v1669
        %v1671 = vpop.f32.mrb[0].mxu0
        %v1672 = vadd.f32 %v523, %v1671
        %1673 = vmatprep.mubr.bf16.mxu0 %v357
        %1674 = vmatmul.mubr.bf16.gmra.mrb[0].mxu0 %v356
        %v1675 = vpop.f32.mrb[0].mxu0
        %v1676 = vadd.f32 %v519, %v1675
        %v1677 = vpop.f32.mrb[0].mxu0
        %v1678 = vadd.f32 %v523, %v1677
        %v1679 = vpop.f32.mrb[0].mxu0
        %v1680 = vadd.f32 %v519, %v1679
        %v1681 = vpop.f32.mrb[0].mxu0
        %v1682 = vadd.f32 %v523, %v1681
        %1683 = vmatprep.mubr.bf16.mxu0 %v359
        %1684 = vmatmul.mubr.bf16.gmra.mrb[0].mxu0 %v358
        %v1685 = vpop.f32.mrb[0].mxu0
        %v1686 = vadd.f32 %v519, %v1685
        %v1687 = vpop.f32.mrb[0].mxu0
        %v1688 = vadd.f32 %v523, %v1687
        %v1689 = vpop.f32.mrb[0].mxu0
        %v1690 = vadd.f32 %v519, %v1689
        %v1691 = vpop.f32.mrb[0].mxu0
        %v1692 = vadd.f32 %v523, %v1691
        %1693 = vmatprep.mubr.bf16.mxu0 %v361
        %1694 = vmatmul.mubr.bf16.gmra.mrb[0].mxu0 %v360
        %v1695 = vpop.f32.mrb[0].mxu0
        %v1696 = vadd.f32 %v519, %v1695
        %v1697 = vpop.f32.mrb[0].mxu0
        %v1698 = vadd.f32 %v523, %v1697
        %v1699 = vpop.f32.mrb[0].mxu0
        %v1700 = vadd.f32 %v519, %v1699
        %v1701 = vpop.f32.mrb[0].mxu0
        %v1702 = vadd.f32 %v523, %v1701
        %1703 = vdwg.mxu0
        %v1704 = vmul.f32 %v1207, 0.01
        %v1705 = vmul.f32 %v1209, 0.01
        %v1706 = vmul.f32 %v1340, 0.01
        %v1707 = vmul.f32 %v1342, 0.01
        %v1708 = vmul.f32 %v1473, 0.01
        %v1709 = vmul.f32 %v1475, 0.01
        %v1710 = vmul.f32 %v1606, 0.01
        %v1711 = vmul.f32 %v1608, 0.01
        %v1712 = vmul.f32 %v1211, 0.01
        %v1713 = vmul.f32 %v1213, 0.01
        %v1714 = vmul.f32 %v1344, 0.01
        %v1715 = vmul.f32 %v1346, 0.01
        %v1716 = vmul.f32 %v1477, 0.01
        %v1717 = vmul.f32 %v1479, 0.01
        %v1718 = vmul.f32 %v1610, 0.01
        %v1719 = vmul.f32 %v1612, 0.01
        %v1720 = vmul.f32 %v1217, 0.01
        %v1721 = vmul.f32 %v1219, 0.01
        %v1722 = vmul.f32 %v1350, 0.01
        %v1723 = vmul.f32 %v1352, 0.01
        %v1724 = vmul.f32 %v1483, 0.01
        %v1725 = vmul.f32 %v1485, 0.01
        %v1726 = vmul.f32 %v1616, 0.01
        %v1727 = vmul.f32 %v1618, 0.01
        %v1728 = vmul.f32 %v1221, 0.01
        %v1729 = vmul.f32 %v1223, 0.01
        %v1730 = vmul.f32 %v1354, 0.01
        %v1731 = vmul.f32 %v1356, 0.01
        %v1732 = vmul.f32 %v1487, 0.01
        %v1733 = vmul.f32 %v1489, 0.01
        %v1734 = vmul.f32 %v1620, 0.01
        %v1735 = vmul.f32 %v1622, 0.01
        %v1736 = vmul.f32 %v1227, 0.01
        %v1737 = vmul.f32 %v1229, 0.01
        %v1738 = vmul.f32 %v1360, 0.01
        %v1739 = vmul.f32 %v1362, 0.01
        %v1740 = vmul.f32 %v1493, 0.01
        %v1741 = vmul.f32 %v1495, 0.01
        %v1742 = vmul.f32 %v1626, 0.01
        %v1743 = vmul.f32 %v1628, 0.01
        %v1744 = vmul.f32 %v1231, 0.01
        %v1745 = vmul.f32 %v1233, 0.01
        %v1746 = vmul.f32 %v1364, 0.01
        %v1747 = vmul.f32 %v1366, 0.01
        %v1748 = vmul.f32 %v1497, 0.01
        %v1749 = vmul.f32 %v1499, 0.01
        %v1750 = vmul.f32 %v1630, 0.01
        %v1751 = vmul.f32 %v1632, 0.01
        %v1752 = vmul.f32 %v1237, 0.01
        %v1753 = vmul.f32 %v1239, 0.01
        %v1754 = vmul.f32 %v1370, 0.01
        %v1755 = vmul.f32 %v1372, 0.01
        %v1756 = vmul.f32 %v1503, 0.01
        %v1757 = vmul.f32 %v1505, 0.01
        %v1758 = vmul.f32 %v1636, 0.01
        %v1759 = vmul.f32 %v1638, 0.01
        %v1760 = vmul.f32 %v1241, 0.01
        %v1761 = vmul.f32 %v1243, 0.01
        %v1762 = vmul.f32 %v1374, 0.01
        %v1763 = vmul.f32 %v1376, 0.01
        %v1764 = vmul.f32 %v1507, 0.01
        %v1765 = vmul.f32 %v1509, 0.01
        %v1766 = vmul.f32 %v1640, 0.01
        %v1767 = vmul.f32 %v1642, 0.01
        %v1768 = vmul.f32 %v1247, 0.01
        %v1769 = vmul.f32 %v1249, 0.01
        %v1770 = vmul.f32 %v1380, 0.01
        %v1771 = vmul.f32 %v1382, 0.01
        %v1772 = vmul.f32 %v1513, 0.01
        %v1773 = vmul.f32 %v1515, 0.01
        %v1774 = vmul.f32 %v1646, 0.01
        %v1775 = vmul.f32 %v1648, 0.01
        %v1776 = vmul.f32 %v1251, 0.01
        %v1777 = vmul.f32 %v1253, 0.01
        %v1778 = vmul.f32 %v1384, 0.01
        %v1779 = vmul.f32 %v1386, 0.01
        %v1780 = vmul.f32 %v1517, 0.01
        %v1781 = vmul.f32 %v1519, 0.01
        %v1782 = vmul.f32 %v1650, 0.01
        %v1783 = vmul.f32 %v1652, 0.01
        %v1784 = vmul.f32 %v1257, 0.01
        %v1785 = vmul.f32 %v1259, 0.01
        %v1786 = vmul.f32 %v1390, 0.01
        %v1787 = vmul.f32 %v1392, 0.01
        %v1788 = vmul.f32 %v1523, 0.01
        %v1789 = vmul.f32 %v1525, 0.01
        %v1790 = vmul.f32 %v1656, 0.01
        %v1791 = vmul.f32 %v1658, 0.01
        %v1792 = vmul.f32 %v1261, 0.01
        %v1793 = vmul.f32 %v1263, 0.01
        %v1794 = vmul.f32 %v1394, 0.01
        %v1795 = vmul.f32 %v1396, 0.01
        %v1796 = vmul.f32 %v1527, 0.01
        %v1797 = vmul.f32 %v1529, 0.01
        %v1798 = vmul.f32 %v1660, 0.01
        %v1799 = vmul.f32 %v1662, 0.01
        %v1800 = vmul.f32 %v1267, 0.01
        %v1801 = vmul.f32 %v1269, 0.01
        %v1802 = vmul.f32 %v1400, 0.01
        %v1803 = vmul.f32 %v1402, 0.01
        %v1804 = vmul.f32 %v1533, 0.01
        %v1805 = vmul.f32 %v1535, 0.01
        %v1806 = vmul.f32 %v1666, 0.01
        %v1807 = vmul.f32 %v1668, 0.01
        %v1808 = vmul.f32 %v1271, 0.01
        %v1809 = vmul.f32 %v1273, 0.01
        %v1810 = vmul.f32 %v1404, 0.01
        %v1811 = vmul.f32 %v1406, 0.01
        %v1812 = vmul.f32 %v1537, 0.01
        %v1813 = vmul.f32 %v1539, 0.01
        %v1814 = vmul.f32 %v1670, 0.01
        %v1815 = vmul.f32 %v1672, 0.01
        %v1816 = vmul.f32 %v1277, 0.01
        %v1817 = vmul.f32 %v1279, 0.01
        %v1818 = vmul.f32 %v1410, 0.01
        %v1819 = vmul.f32 %v1412, 0.01
        %v1820 = vmul.f32 %v1543, 0.01
        %v1821 = vmul.f32 %v1545, 0.01
        %v1822 = vmul.f32 %v1676, 0.01
        %v1823 = vmul.f32 %v1678, 0.01
        %v1824 = vmul.f32 %v1281, 0.01
        %v1825 = vmul.f32 %v1283, 0.01
        %v1826 = vmul.f32 %v1414, 0.01
        %v1827 = vmul.f32 %v1416, 0.01
        %v1828 = vmul.f32 %v1547, 0.01
        %v1829 = vmul.f32 %v1549, 0.01
        %v1830 = vmul.f32 %v1680, 0.01
        %v1831 = vmul.f32 %v1682, 0.01
        %v1832 = vmul.f32 %v1287, 0.01
        %v1833 = vmul.f32 %v1289, 0.01
        %v1834 = vmul.f32 %v1420, 0.01
        %v1835 = vmul.f32 %v1422, 0.01
        %v1836 = vmul.f32 %v1553, 0.01
        %v1837 = vmul.f32 %v1555, 0.01
        %v1838 = vmul.f32 %v1686, 0.01
        %v1839 = vmul.f32 %v1688, 0.01
        %v1840 = vmul.f32 %v1291, 0.01
        %v1841 = vmul.f32 %v1293, 0.01
        %v1842 = vmul.f32 %v1424, 0.01
        %v1843 = vmul.f32 %v1426, 0.01
        %v1844 = vmul.f32 %v1557, 0.01
        %v1845 = vmul.f32 %v1559, 0.01
        %v1846 = vmul.f32 %v1690, 0.01
        %v1847 = vmul.f32 %v1692, 0.01
        %v1848 = vmul.f32 %v1297, 0.01
        %v1849 = vmul.f32 %v1299, 0.01
        %v1850 = vmul.f32 %v1430, 0.01
        %v1851 = vmul.f32 %v1432, 0.01
        %v1852 = vmul.f32 %v1563, 0.01
        %v1853 = vmul.f32 %v1565, 0.01
        %v1854 = vmul.f32 %v1696, 0.01
        %v1855 = vmul.f32 %v1698, 0.01
        %v1856 = vmul.f32 %v1301, 0.01
        %v1857 = vmul.f32 %v1303, 0.01
        %v1858 = vmul.f32 %v1434, 0.01
        %v1859 = vmul.f32 %v1436, 0.01
        %v1860 = vmul.f32 %v1567, 0.01
        %v1861 = vmul.f32 %v1569, 0.01
        %v1862 = vmul.f32 %v1700, 0.01
        %v1863 = vmul.f32 %v1702, 0.01
        %v1864 = vmax.f32 %v1207, %v1704
        %v1865 = vmax.f32 %v1209, %v1705
        %v1866 = vmax.f32 %v1340, %v1706
        %v1867 = vmax.f32 %v1342, %v1707
        %v1868 = vmax.f32 %v1473, %v1708
        %v1869 = vmax.f32 %v1475, %v1709
        %v1870 = vmax.f32 %v1606, %v1710
        %v1871 = vmax.f32 %v1608, %v1711
        %v1872 = vmax.f32 %v1211, %v1712
        %v1873 = vmax.f32 %v1213, %v1713
        %v1874 = vmax.f32 %v1344, %v1714
        %v1875 = vmax.f32 %v1346, %v1715
        %v1876 = vmax.f32 %v1477, %v1716
        %v1877 = vmax.f32 %v1479, %v1717
        %v1878 = vmax.f32 %v1610, %v1718
        %v1879 = vmax.f32 %v1612, %v1719
        %v1880 = vmax.f32 %v1217, %v1720
        %v1881 = vmax.f32 %v1219, %v1721
        %v1882 = vmax.f32 %v1350, %v1722
        %v1883 = vmax.f32 %v1352, %v1723
        %v1884 = vmax.f32 %v1483, %v1724
        %v1885 = vmax.f32 %v1485, %v1725
        %v1886 = vmax.f32 %v1616, %v1726
        %v1887 = vmax.f32 %v1618, %v1727
        %v1888 = vmax.f32 %v1221, %v1728
        %v1889 = vmax.f32 %v1223, %v1729
        %v1890 = vmax.f32 %v1354, %v1730
        %v1891 = vmax.f32 %v1356, %v1731
        %v1892 = vmax.f32 %v1487, %v1732
        %v1893 = vmax.f32 %v1489, %v1733
        %v1894 = vmax.f32 %v1620, %v1734
        %v1895 = vmax.f32 %v1622, %v1735
        %v1896 = vmax.f32 %v1227, %v1736
        %v1897 = vmax.f32 %v1229, %v1737
        %v1898 = vmax.f32 %v1360, %v1738
        %v1899 = vmax.f32 %v1362, %v1739
        %v1900 = vmax.f32 %v1493, %v1740
        %v1901 = vmax.f32 %v1495, %v1741
        %v1902 = vmax.f32 %v1626, %v1742
        %v1903 = vmax.f32 %v1628, %v1743
        %v1904 = vmax.f32 %v1231, %v1744
        %v1905 = vmax.f32 %v1233, %v1745
        %v1906 = vmax.f32 %v1364, %v1746
        %v1907 = vmax.f32 %v1366, %v1747
        %v1908 = vmax.f32 %v1497, %v1748
        %v1909 = vmax.f32 %v1499, %v1749
        %v1910 = vmax.f32 %v1630, %v1750
        %v1911 = vmax.f32 %v1632, %v1751
        %v1912 = vmax.f32 %v1237, %v1752
        %v1913 = vmax.f32 %v1239, %v1753
        %v1914 = vmax.f32 %v1370, %v1754
        %v1915 = vmax.f32 %v1372, %v1755
        %v1916 = vmax.f32 %v1503, %v1756
        %v1917 = vmax.f32 %v1505, %v1757
        %v1918 = vmax.f32 %v1636, %v1758
        %v1919 = vmax.f32 %v1638, %v1759
        %v1920 = vmax.f32 %v1241, %v1760
        %v1921 = vmax.f32 %v1243, %v1761
        %v1922 = vmax.f32 %v1374, %v1762
        %v1923 = vmax.f32 %v1376, %v1763
        %v1924 = vmax.f32 %v1507, %v1764
        %v1925 = vmax.f32 %v1509, %v1765
        %v1926 = vmax.f32 %v1640, %v1766
        %v1927 = vmax.f32 %v1642, %v1767
        %v1928 = vmax.f32 %v1247, %v1768
        %v1929 = vmax.f32 %v1249, %v1769
        %v1930 = vmax.f32 %v1380, %v1770
        %v1931 = vmax.f32 %v1382, %v1771
        %v1932 = vmax.f32 %v1513, %v1772
        %v1933 = vmax.f32 %v1515, %v1773
        %v1934 = vmax.f32 %v1646, %v1774
        %v1935 = vmax.f32 %v1648, %v1775
        %v1936 = vmax.f32 %v1251, %v1776
        %v1937 = vmax.f32 %v1253, %v1777
        %v1938 = vmax.f32 %v1384, %v1778
        %v1939 = vmax.f32 %v1386, %v1779
        %v1940 = vmax.f32 %v1517, %v1780
        %v1941 = vmax.f32 %v1519, %v1781
        %v1942 = vmax.f32 %v1650, %v1782
        %v1943 = vmax.f32 %v1652, %v1783
        %v1944 = vmax.f32 %v1257, %v1784
        %v1945 = vmax.f32 %v1259, %v1785
        %v1946 = vmax.f32 %v1390, %v1786
        %v1947 = vmax.f32 %v1392, %v1787
        %v1948 = vmax.f32 %v1523, %v1788
        %v1949 = vmax.f32 %v1525, %v1789
        %v1950 = vmax.f32 %v1656, %v1790
        %v1951 = vmax.f32 %v1658, %v1791
        %v1952 = vmax.f32 %v1261, %v1792
        %v1953 = vmax.f32 %v1263, %v1793
        %v1954 = vmax.f32 %v1394, %v1794
        %v1955 = vmax.f32 %v1396, %v1795
        %v1956 = vmax.f32 %v1527, %v1796
        %v1957 = vmax.f32 %v1529, %v1797
        %v1958 = vmax.f32 %v1660, %v1798
        %v1959 = vmax.f32 %v1662, %v1799
        %v1960 = vmax.f32 %v1267, %v1800
        %v1961 = vmax.f32 %v1269, %v1801
        %v1962 = vmax.f32 %v1400, %v1802
        %v1963 = vmax.f32 %v1402, %v1803
        %v1964 = vmax.f32 %v1533, %v1804
        %v1965 = vmax.f32 %v1535, %v1805
        %v1966 = vmax.f32 %v1666, %v1806
        %v1967 = vmax.f32 %v1668, %v1807
        %v1968 = vmax.f32 %v1271, %v1808
        %v1969 = vmax.f32 %v1273, %v1809
        %v1970 = vmax.f32 %v1404, %v1810
        %v1971 = vmax.f32 %v1406, %v1811
        %v1972 = vmax.f32 %v1537, %v1812
        %v1973 = vmax.f32 %v1539, %v1813
        %v1974 = vmax.f32 %v1670, %v1814
        %v1975 = vmax.f32 %v1672, %v1815
        %v1976 = vmax.f32 %v1277, %v1816
        %v1977 = vmax.f32 %v1279, %v1817
        %v1978 = vmax.f32 %v1410, %v1818
        %v1979 = vmax.f32 %v1412, %v1819
        %v1980 = vmax.f32 %v1543, %v1820
        %v1981 = vmax.f32 %v1545, %v1821
        %v1982 = vmax.f32 %v1676, %v1822
        %v1983 = vmax.f32 %v1678, %v1823
        %v1984 = vmax.f32 %v1281, %v1824
        %v1985 = vmax.f32 %v1283, %v1825
        %v1986 = vmax.f32 %v1414, %v1826
        %v1987 = vmax.f32 %v1416, %v1827
        %v1988 = vmax.f32 %v1547, %v1828
        %v1989 = vmax.f32 %v1549, %v1829
        %v1990 = vmax.f32 %v1680, %v1830
        %v1991 = vmax.f32 %v1682, %v1831
        %v1992 = vmax.f32 %v1287, %v1832
        %v1993 = vmax.f32 %v1289, %v1833
        %v1994 = vmax.f32 %v1420, %v1834
        %v1995 = vmax.f32 %v1422, %v1835
        %v1996 = vmax.f32 %v1553, %v1836
        %v1997 = vmax.f32 %v1555, %v1837
        %v1998 = vmax.f32 %v1686, %v1838
        %v1999 = vmax.f32 %v1688, %v1839
        %v2000 = vmax.f32 %v1291, %v1840
        %v2001 = vmax.f32 %v1293, %v1841
        %v2002 = vmax.f32 %v1424, %v1842
        %v2003 = vmax.f32 %v1426, %v1843
        %v2004 = vmax.f32 %v1557, %v1844
        %v2005 = vmax.f32 %v1559, %v1845
        %v2006 = vmax.f32 %v1690, %v1846
        %v2007 = vmax.f32 %v1692, %v1847
        %v2008 = vmax.f32 %v1297, %v1848
        %v2009 = vmax.f32 %v1299, %v1849
        %v2010 = vmax.f32 %v1430, %v1850
        %v2011 = vmax.f32 %v1432, %v1851
        %v2012 = vmax.f32 %v1563, %v1852
        %v2013 = vmax.f32 %v1565, %v1853
        %v2014 = vmax.f32 %v1696, %v1854
        %v2015 = vmax.f32 %v1698, %v1855
        %v2016 = vmax.f32 %v1301, %v1856
        %v2017 = vmax.f32 %v1303, %v1857
        %v2018 = vmax.f32 %v1434, %v1858
        %v2019 = vmax.f32 %v1436, %v1859
        %v2020 = vmax.f32 %v1567, %v1860
        %v2021 = vmax.f32 %v1569, %v1861
        %v2022 = vmax.f32 %v1700, %v1862
        %v2023 = vmax.f32 %v1702, %v1863
        %v2024 = vpack.c.bf16 %v1872, %v1864
        %v2025 = vpack.c.bf16 %v1873, %v1865
        %v2026 = vpack.c.bf16 %v1874, %v1866
        %v2027 = vpack.c.bf16 %v1875, %v1867
        %v2028 = vpack.c.bf16 %v1876, %v1868
        %v2029 = vpack.c.bf16 %v1877, %v1869
        %v2030 = vpack.c.bf16 %v1878, %v1870
        %v2031 = vpack.c.bf16 %v1879, %v1871
        %v2032 = vpack.c.bf16 %v1888, %v1880
        %v2033 = vpack.c.bf16 %v1889, %v1881
        %v2034 = vpack.c.bf16 %v1890, %v1882
        %v2035 = vpack.c.bf16 %v1891, %v1883
        %v2036 = vpack.c.bf16 %v1892, %v1884
        %v2037 = vpack.c.bf16 %v1893, %v1885
        %v2038 = vpack.c.bf16 %v1894, %v1886
        %v2039 = vpack.c.bf16 %v1895, %v1887
        %v2040 = vpack.c.bf16 %v1904, %v1896
        %v2041 = vpack.c.bf16 %v1905, %v1897
        %v2042 = vpack.c.bf16 %v1906, %v1898
        %v2043 = vpack.c.bf16 %v1907, %v1899
        %v2044 = vpack.c.bf16 %v1908, %v1900
        %v2045 = vpack.c.bf16 %v1909, %v1901
        %v2046 = vpack.c.bf16 %v1910, %v1902
        %v2047 = vpack.c.bf16 %v1911, %v1903
        %v2048 = vpack.c.bf16 %v1920, %v1912
        %v2049 = vpack.c.bf16 %v1921, %v1913
        %v2050 = vpack.c.bf16 %v1922, %v1914
        %v2051 = vpack.c.bf16 %v1923, %v1915
        %v2052 = vpack.c.bf16 %v1924, %v1916
        %v2053 = vpack.c.bf16 %v1925, %v1917
        %v2054 = vpack.c.bf16 %v1926, %v1918
        %v2055 = vpack.c.bf16 %v1927, %v1919
        %v2056 = vpack.c.bf16 %v1936, %v1928
        %v2057 = vpack.c.bf16 %v1937, %v1929
        %v2058 = vpack.c.bf16 %v1938, %v1930
        %v2059 = vpack.c.bf16 %v1939, %v1931
        %v2060 = vpack.c.bf16 %v1940, %v1932
        %v2061 = vpack.c.bf16 %v1941, %v1933
        %v2062 = vpack.c.bf16 %v1942, %v1934
        %v2063 = vpack.c.bf16 %v1943, %v1935
        %v2064 = vpack.c.bf16 %v1952, %v1944
        %v2065 = vpack.c.bf16 %v1953, %v1945
        %v2066 = vpack.c.bf16 %v1954, %v1946
        %v2067 = vpack.c.bf16 %v1955, %v1947
        %v2068 = vpack.c.bf16 %v1956, %v1948
        %v2069 = vpack.c.bf16 %v1957, %v1949
        %v2070 = vpack.c.bf16 %v1958, %v1950
        %v2071 = vpack.c.bf16 %v1959, %v1951
        %v2072 = vpack.c.bf16 %v1968, %v1960
        %v2073 = vpack.c.bf16 %v1969, %v1961
        %v2074 = vpack.c.bf16 %v1970, %v1962
        %v2075 = vpack.c.bf16 %v1971, %v1963
        %v2076 = vpack.c.bf16 %v1972, %v1964
        %v2077 = vpack.c.bf16 %v1973, %v1965
        %v2078 = vpack.c.bf16 %v1974, %v1966
        %v2079 = vpack.c.bf16 %v1975, %v1967
        %v2080 = vpack.c.bf16 %v1984, %v1976
        %v2081 = vpack.c.bf16 %v1985, %v1977
        %v2082 = vpack.c.bf16 %v1986, %v1978
        %v2083 = vpack.c.bf16 %v1987, %v1979
        %v2084 = vpack.c.bf16 %v1988, %v1980
        %v2085 = vpack.c.bf16 %v1989, %v1981
        %v2086 = vpack.c.bf16 %v1990, %v1982
        %v2087 = vpack.c.bf16 %v1991, %v1983
        %v2088 = vpack.c.bf16 %v2000, %v1992
        %v2089 = vpack.c.bf16 %v2001, %v1993
        %v2090 = vpack.c.bf16 %v2002, %v1994
        %v2091 = vpack.c.bf16 %v2003, %v1995
        %v2092 = vpack.c.bf16 %v2004, %v1996
        %v2093 = vpack.c.bf16 %v2005, %v1997
        %v2094 = vpack.c.bf16 %v2006, %v1998
        %v2095 = vpack.c.bf16 %v2007, %v1999
        %v2096 = vpack.c.bf16 %v2016, %v2008
        %v2097 = vpack.c.bf16 %v2017, %v2009
        %v2098 = vpack.c.bf16 %v2018, %v2010
        %v2099 = vpack.c.bf16 %v2019, %v2011
        %v2100 = vpack.c.bf16 %v2020, %v2012
        %v2101 = vpack.c.bf16 %v2021, %v2013
        %v2102 = vpack.c.bf16 %v2022, %v2014
        %v2103 = vpack.c.bf16 %v2023, %v2015
        %v2104 = vld [vmem:[#allocation3] sm:$0xff]
        %v2105 = vld [vmem:[#allocation3 + $0x8] sm:$0xff]
        %v2106 = vld [vmem:[#allocation3 + $0x10] sm:$0xff]
        %v2107 = vld [vmem:[#allocation3 + $0x18] sm:$0xff]
        %v2108 = vld [vmem:[#allocation3 + $0x20] sm:$0xff]
        %v2109 = vld [vmem:[#allocation3 + $0x28] sm:$0xff]
        %v2110 = vld [vmem:[#allocation3 + $0x30] sm:$0xff]
        %v2111 = vld [vmem:[#allocation3 + $0x38] sm:$0xff]
        %v2112 = vld [vmem:[#allocation3 + $0x40] sm:$0xff]
        %v2113 = vld [vmem:[#allocation3 + $0x48] sm:$0xff]
        %v2114 = vld [vmem:[#allocation3 + $0x50] sm:$0xff]
        %v2115 = vld [vmem:[#allocation3 + $0x58] sm:$0xff]
        %v2116 = vld [vmem:[#allocation3 + $0x60] sm:$0xff]
        %v2117 = vld [vmem:[#allocation3 + $0x68] sm:$0xff]
        %v2118 = vld [vmem:[#allocation3 + $0x70] sm:$0xff]
        %v2119 = vld [vmem:[#allocation3 + $0x78] sm:$0xff]
        %v2120 = vld [vmem:[#allocation3 + $0x80] sm:$0xff]
        %v2121 = vld [vmem:[#allocation3 + $0x88] sm:$0xff]
        %v2122 = vld [vmem:[#allocation3 + $0x90] sm:$0xff]
        %v2123 = vld [vmem:[#allocation3 + $0x98] sm:$0xff]
        %v2124 = vld [vmem:[#allocation3 + $0xa0] sm:$0xff]
        %v2125 = vld [vmem:[#allocation3 + $0xa8] sm:$0xff]
        %v2126 = vld [vmem:[#allocation3 + $0xb0] sm:$0xff]
        %v2127 = vld [vmem:[#allocation3 + $0xb8] sm:$0xff]
        %v2128 = vld [vmem:[#allocation3 + $0xc0] sm:$0xff]
        %v2129 = vld [vmem:[#allocation3 + $0xc8] sm:$0xff]
        %v2130 = vld [vmem:[#allocation3 + $0xd0] sm:$0xff]
        %v2131 = vld [vmem:[#allocation3 + $0xd8] sm:$0xff]
        %v2132 = vld [vmem:[#allocation3 + $0xe0] sm:$0xff]
        %v2133 = vld [vmem:[#allocation3 + $0xe8] sm:$0xff]
        %v2134 = vld [vmem:[#allocation3 + $0xf0] sm:$0xff]
        %v2135 = vld [vmem:[#allocation3 + $0xf8] sm:$0xff]
        %v2136 = vld [vmem:[#allocation3 + $0x100] sm:$0xff]
        %v2137 = vld [vmem:[#allocation3 + $0x108] sm:$0xff]
        %v2138 = vld [vmem:[#allocation3 + $0x110] sm:$0xff]
        %v2139 = vld [vmem:[#allocation3 + $0x118] sm:$0xff]
        %v2140 = vld [vmem:[#allocation3 + $0x120] sm:$0xff]
        %v2141 = vld [vmem:[#allocation3 + $0x128] sm:$0xff]
        %v2142 = vld [vmem:[#allocation3 + $0x130] sm:$0xff]
        %v2143 = vld [vmem:[#allocation3 + $0x138] sm:$0xff]
        %v2144 = vld [vmem:[#allocation3 + $0x140] sm:$0xff]
        %v2145 = vld [vmem:[#allocation3 + $0x148] sm:$0xff]
        %v2146 = vld [vmem:[#allocation3 + $0x150] sm:$0xff]
        %v2147 = vld [vmem:[#allocation3 + $0x158] sm:$0xff]
        %v2148 = vld [vmem:[#allocation3 + $0x160] sm:$0xff]
        %v2149 = vld [vmem:[#allocation3 + $0x168] sm:$0xff]
        %v2150 = vld [vmem:[#allocation3 + $0x170] sm:$0xff]
        %v2151 = vld [vmem:[#allocation3 + $0x178] sm:$0xff]
        %v2152 = vld [vmem:[#allocation3 + $0x180] sm:$0xff]
        %v2153 = vld [vmem:[#allocation3 + $0x188] sm:$0xff]
        %v2154 = vld [vmem:[#allocation3 + $0x190] sm:$0xff]
        %v2155 = vld [vmem:[#allocation3 + $0x198] sm:$0xff]
        %v2156 = vld [vmem:[#allocation3 + $0x1a0] sm:$0xff]
        %v2157 = vld [vmem:[#allocation3 + $0x1a8] sm:$0xff]
        %v2158 = vld [vmem:[#allocation3 + $0x1b0] sm:$0xff]
        %v2159 = vld [vmem:[#allocation3 + $0x1b8] sm:$0xff]
        %v2160 = vld [vmem:[#allocation3 + $0x1c0] sm:$0xff]
        %v2161 = vld [vmem:[#allocation3 + $0x1c8] sm:$0xff]
        %v2162 = vld [vmem:[#allocation3 + $0x1d0] sm:$0xff]
        %v2163 = vld [vmem:[#allocation3 + $0x1d8] sm:$0xff]
        %v2164 = vld [vmem:[#allocation3 + $0x1e0] sm:$0xff]
        %v2165 = vld [vmem:[#allocation3 + $0x1e8] sm:$0xff]
        %v2166 = vld [vmem:[#allocation3 + $0x1f0] sm:$0xff]
        %v2167 = vld [vmem:[#allocation3 + $0x1f8] sm:$0xff]
        %v2168 = vld [vmem:[#allocation3 + $0x200] sm:$0xff]
        %v2169 = vld [vmem:[#allocation3 + $0x208] sm:$0xff]
        %v2170 = vld [vmem:[#allocation3 + $0x210] sm:$0xff]
        %v2171 = vld [vmem:[#allocation3 + $0x218] sm:$0xff]
        %v2172 = vld [vmem:[#allocation3 + $0x220] sm:$0xff]
        %v2173 = vld [vmem:[#allocation3 + $0x228] sm:$0xff]
        %v2174 = vld [vmem:[#allocation3 + $0x230] sm:$0xff]
        %v2175 = vld [vmem:[#allocation3 + $0x238] sm:$0xff]
        %v2176 = vld [vmem:[#allocation3 + $0x240] sm:$0xff]
        %v2177 = vld [vmem:[#allocation3 + $0x248] sm:$0xff]
        %v2178 = vld [vmem:[#allocation3 + $0x250] sm:$0xff]
        %v2179 = vld [vmem:[#allocation3 + $0x258] sm:$0xff]
        %v2180 = vld [vmem:[#allocation3 + $0x260] sm:$0xff]
        %v2181 = vld [vmem:[#allocation3 + $0x268] sm:$0xff]
        %v2182 = vld [vmem:[#allocation3 + $0x270] sm:$0xff]
        %v2183 = vld [vmem:[#allocation3 + $0x278] sm:$0xff]
        %v2184 = vld [vmem:[#allocation3 + $0x280] sm:$0xff]
        %v2185 = vld [vmem:[#allocation3 + $0x288] sm:$0xff]
        %v2186 = vld [vmem:[#allocation3 + $0x290] sm:$0xff]
        %v2187 = vld [vmem:[#allocation3 + $0x298] sm:$0xff]
        %v2188 = vld [vmem:[#allocation3 + $0x2a0] sm:$0xff]
        %v2189 = vld [vmem:[#allocation3 + $0x2a8] sm:$0xff]
        %v2190 = vld [vmem:[#allocation3 + $0x2b0] sm:$0xff]
        %v2191 = vld [vmem:[#allocation3 + $0x2b8] sm:$0xff]
        %v2192 = vld [vmem:[#allocation3 + $0x2c0] sm:$0xff]
        %v2193 = vld [vmem:[#allocation3 + $0x2c8] sm:$0xff]
        %v2194 = vld [vmem:[#allocation3 + $0x2d0] sm:$0xff]
        %v2195 = vld [vmem:[#allocation3 + $0x2d8] sm:$0xff]
        %v2196 = vld [vmem:[#allocation3 + $0x2e0] sm:$0xff]
        %v2197 = vld [vmem:[#allocation3 + $0x2e8] sm:$0xff]
        %v2198 = vld [vmem:[#allocation3 + $0x2f0] sm:$0xff]
        %v2199 = vld [vmem:[#allocation3 + $0x2f8] sm:$0xff]
        %v2200 = vld [vmem:[#allocation3 + $0x300] sm:$0xff]
        %v2201 = vld [vmem:[#allocation3 + $0x308] sm:$0xff]
        %v2202 = vld [vmem:[#allocation3 + $0x310] sm:$0xff]
        %v2203 = vld [vmem:[#allocation3 + $0x318] sm:$0xff]
        %v2204 = vld [vmem:[#allocation3 + $0x320] sm:$0xff]
        %v2205 = vld [vmem:[#allocation3 + $0x328] sm:$0xff]
        %v2206 = vld [vmem:[#allocation3 + $0x330] sm:$0xff]
        %v2207 = vld [vmem:[#allocation3 + $0x338] sm:$0xff]
        %v2208 = vld [vmem:[#allocation3 + $0x340] sm:$0xff]
        %v2209 = vld [vmem:[#allocation3 + $0x348] sm:$0xff]
        %v2210 = vld [vmem:[#allocation3 + $0x350] sm:$0xff]
        %v2211 = vld [vmem:[#allocation3 + $0x358] sm:$0xff]
        %v2212 = vld [vmem:[#allocation3 + $0x360] sm:$0xff]
        %v2213 = vld [vmem:[#allocation3 + $0x368] sm:$0xff]
        %v2214 = vld [vmem:[#allocation3 + $0x370] sm:$0xff]
        %v2215 = vld [vmem:[#allocation3 + $0x378] sm:$0xff]
        %v2216 = vld [vmem:[#allocation3 + $0x380] sm:$0xff]
        %v2217 = vld [vmem:[#allocation3 + $0x388] sm:$0xff]
        %v2218 = vld [vmem:[#allocation3 + $0x390] sm:$0xff]
        %v2219 = vld [vmem:[#allocation3 + $0x398] sm:$0xff]
        %v2220 = vld [vmem:[#allocation3 + $0x3a0] sm:$0xff]
        %v2221 = vld [vmem:[#allocation3 + $0x3a8] sm:$0xff]
        %v2222 = vld [vmem:[#allocation3 + $0x3b0] sm:$0xff]
        %v2223 = vld [vmem:[#allocation3 + $0x3b8] sm:$0xff]
        %v2224 = vld [vmem:[#allocation3 + $0x3c0] sm:$0xff]
        %v2225 = vld [vmem:[#allocation3 + $0x3c8] sm:$0xff]
        %v2226 = vld [vmem:[#allocation3 + $0x3d0] sm:$0xff]
        %v2227 = vld [vmem:[#allocation3 + $0x3d8] sm:$0xff]
        %v2228 = vld [vmem:[#allocation3 + $0x3e0] sm:$0xff]
        %v2229 = vld [vmem:[#allocation3 + $0x3e8] sm:$0xff]
        %v2230 = vld [vmem:[#allocation3 + $0x3f0] sm:$0xff]
        %v2231 = vld [vmem:[#allocation3 + $0x3f8] sm:$0xff]
        %v2232 = vld [vmem:[#allocation3 + $0x400] sm:$0xff]
        %v2233 = vld [vmem:[#allocation3 + $0x408] sm:$0xff]
        %v2234 = vld [vmem:[#allocation3 + $0x410] sm:$0xff]
        %v2235 = vld [vmem:[#allocation3 + $0x418] sm:$0xff]
        %v2236 = vld [vmem:[#allocation3 + $0x420] sm:$0xff]
        %v2237 = vld [vmem:[#allocation3 + $0x428] sm:$0xff]
        %v2238 = vld [vmem:[#allocation3 + $0x430] sm:$0xff]
        %v2239 = vld [vmem:[#allocation3 + $0x438] sm:$0xff]
        %v2240 = vld [vmem:[#allocation3 + $0x440] sm:$0xff]
        %v2241 = vld [vmem:[#allocation3 + $0x448] sm:$0xff]
        %v2242 = vld [vmem:[#allocation3 + $0x450] sm:$0xff]
        %v2243 = vld [vmem:[#allocation3 + $0x458] sm:$0xff]
        %v2244 = vld [vmem:[#allocation3 + $0x460] sm:$0xff]
        %v2245 = vld [vmem:[#allocation3 + $0x468] sm:$0xff]
        %v2246 = vld [vmem:[#allocation3 + $0x470] sm:$0xff]
        %v2247 = vld [vmem:[#allocation3 + $0x478] sm:$0xff]
        %v2248 = vld [vmem:[#allocation3 + $0x480] sm:$0xff]
        %v2249 = vld [vmem:[#allocation3 + $0x488] sm:$0xff]
        %v2250 = vld [vmem:[#allocation3 + $0x490] sm:$0xff]
        %v2251 = vld [vmem:[#allocation3 + $0x498] sm:$0xff]
        %v2252 = vld [vmem:[#allocation3 + $0x4a0] sm:$0xff]
        %v2253 = vld [vmem:[#allocation3 + $0x4a8] sm:$0xff]
        %v2254 = vld [vmem:[#allocation3 + $0x4b0] sm:$0xff]
        %v2255 = vld [vmem:[#allocation3 + $0x4b8] sm:$0xff]
        %v2256 = vld [vmem:[#allocation3 + $0x4c0] sm:$0xff]
        %v2257 = vld [vmem:[#allocation3 + $0x4c8] sm:$0xff]
        %v2258 = vld [vmem:[#allocation3 + $0x4d0] sm:$0xff]
        %v2259 = vld [vmem:[#allocation3 + $0x4d8] sm:$0xff]
        %v2260 = vld [vmem:[#allocation3 + $0x4e0] sm:$0xff]
        %v2261 = vld [vmem:[#allocation3 + $0x4e8] sm:$0xff]
        %v2262 = vld [vmem:[#allocation3 + $0x4f0] sm:$0xff]
        %v2263 = vld [vmem:[#allocation3 + $0x4f8] sm:$0xff]
        %v2264 = vld [vmem:[#allocation3 + $0x500] sm:$0xff]
        %v2265 = vld [vmem:[#allocation3 + $0x508] sm:$0xff]
        %v2266 = vld [vmem:[#allocation3 + $0x510] sm:$0xff]
        %v2267 = vld [vmem:[#allocation3 + $0x518] sm:$0xff]
        %v2268 = vld [vmem:[#allocation3 + $0x520] sm:$0xff]
        %v2269 = vld [vmem:[#allocation3 + $0x528] sm:$0xff]
        %v2270 = vld [vmem:[#allocation3 + $0x530] sm:$0xff]
        %v2271 = vld [vmem:[#allocation3 + $0x538] sm:$0xff]
        %v2272 = vld [vmem:[#allocation3 + $0x540] sm:$0xff]
        %v2273 = vld [vmem:[#allocation3 + $0x548] sm:$0xff]
        %v2274 = vld [vmem:[#allocation3 + $0x550] sm:$0xff]
        %v2275 = vld [vmem:[#allocation3 + $0x558] sm:$0xff]
        %v2276 = vld [vmem:[#allocation3 + $0x560] sm:$0xff]
        %v2277 = vld [vmem:[#allocation3 + $0x568] sm:$0xff]
        %v2278 = vld [vmem:[#allocation3 + $0x570] sm:$0xff]
        %v2279 = vld [vmem:[#allocation3 + $0x578] sm:$0xff]
        %v2280 = vld [vmem:[#allocation3 + $0x580] sm:$0xff]
        %v2281 = vld [vmem:[#allocation3 + $0x588] sm:$0xff]
        %v2282 = vld [vmem:[#allocation3 + $0x590] sm:$0xff]
        %v2283 = vld [vmem:[#allocation3 + $0x598] sm:$0xff]
        %v2284 = vld [vmem:[#allocation3 + $0x5a0] sm:$0xff]
        %v2285 = vld [vmem:[#allocation3 + $0x5a8] sm:$0xff]
        %v2286 = vld [vmem:[#allocation3 + $0x5b0] sm:$0xff]
        %v2287 = vld [vmem:[#allocation3 + $0x5b8] sm:$0xff]
        %v2288 = vld [vmem:[#allocation3 + $0x5c0] sm:$0xff]
        %v2289 = vld [vmem:[#allocation3 + $0x5c8] sm:$0xff]
        %v2290 = vld [vmem:[#allocation3 + $0x5d0] sm:$0xff]
        %v2291 = vld [vmem:[#allocation3 + $0x5d8] sm:$0xff]
        %v2292 = vld [vmem:[#allocation3 + $0x5e0] sm:$0xff]
        %v2293 = vld [vmem:[#allocation3 + $0x5e8] sm:$0xff]
        %v2294 = vld [vmem:[#allocation3 + $0x5f0] sm:$0xff]
        %v2295 = vld [vmem:[#allocation3 + $0x5f8] sm:$0xff]
        %v2296 = vld [vmem:[#allocation3 + $0x600] sm:$0xff]
        %v2297 = vld [vmem:[#allocation3 + $0x608] sm:$0xff]
        %v2298 = vld [vmem:[#allocation3 + $0x610] sm:$0xff]
        %v2299 = vld [vmem:[#allocation3 + $0x618] sm:$0xff]
        %v2300 = vld [vmem:[#allocation3 + $0x620] sm:$0xff]
        %v2301 = vld [vmem:[#allocation3 + $0x628] sm:$0xff]
        %v2302 = vld [vmem:[#allocation3 + $0x630] sm:$0xff]
        %v2303 = vld [vmem:[#allocation3 + $0x638] sm:$0xff]
        %v2304 = vld [vmem:[#allocation3 + $0x640] sm:$0xff]
        %v2305 = vld [vmem:[#allocation3 + $0x648] sm:$0xff]
        %v2306 = vld [vmem:[#allocation3 + $0x650] sm:$0xff]
        %v2307 = vld [vmem:[#allocation3 + $0x658] sm:$0xff]
        %v2308 = vld [vmem:[#allocation3 + $0x660] sm:$0xff]
        %v2309 = vld [vmem:[#allocation3 + $0x668] sm:$0xff]
        %v2310 = vld [vmem:[#allocation3 + $0x670] sm:$0xff]
        %v2311 = vld [vmem:[#allocation3 + $0x678] sm:$0xff]
        %v2312 = vld [vmem:[#allocation3 + $0x680] sm:$0xff]
        %v2313 = vld [vmem:[#allocation3 + $0x688] sm:$0xff]
        %v2314 = vld [vmem:[#allocation3 + $0x690] sm:$0xff]
        %v2315 = vld [vmem:[#allocation3 + $0x698] sm:$0xff]
        %v2316 = vld [vmem:[#allocation3 + $0x6a0] sm:$0xff]
        %v2317 = vld [vmem:[#allocation3 + $0x6a8] sm:$0xff]
        %v2318 = vld [vmem:[#allocation3 + $0x6b0] sm:$0xff]
        %v2319 = vld [vmem:[#allocation3 + $0x6b8] sm:$0xff]
        %v2320 = vld [vmem:[#allocation3 + $0x6c0] sm:$0xff]
        %v2321 = vld [vmem:[#allocation3 + $0x6c8] sm:$0xff]
        %v2322 = vld [vmem:[#allocation3 + $0x6d0] sm:$0xff]
        %v2323 = vld [vmem:[#allocation3 + $0x6d8] sm:$0xff]
        %v2324 = vld [vmem:[#allocation3 + $0x6e0] sm:$0xff]
        %v2325 = vld [vmem:[#allocation3 + $0x6e8] sm:$0xff]
        %v2326 = vld [vmem:[#allocation3 + $0x6f0] sm:$0xff]
        %v2327 = vld [vmem:[#allocation3 + $0x6f8] sm:$0xff]
        %v2328 = vld [vmem:[#allocation3 + $0x700] sm:$0xff]
        %v2329 = vld [vmem:[#allocation3 + $0x708] sm:$0xff]
        %v2330 = vld [vmem:[#allocation3 + $0x710] sm:$0xff]
        %v2331 = vld [vmem:[#allocation3 + $0x718] sm:$0xff]
        %v2332 = vld [vmem:[#allocation3 + $0x720] sm:$0xff]
        %v2333 = vld [vmem:[#allocation3 + $0x728] sm:$0xff]
        %v2334 = vld [vmem:[#allocation3 + $0x730] sm:$0xff]
        %v2335 = vld [vmem:[#allocation3 + $0x738] sm:$0xff]
        %v2336 = vld [vmem:[#allocation3 + $0x740] sm:$0xff]
        %v2337 = vld [vmem:[#allocation3 + $0x748] sm:$0xff]
        %v2338 = vld [vmem:[#allocation3 + $0x750] sm:$0xff]
        %v2339 = vld [vmem:[#allocation3 + $0x758] sm:$0xff]
        %v2340 = vld [vmem:[#allocation3 + $0x760] sm:$0xff]
        %v2341 = vld [vmem:[#allocation3 + $0x768] sm:$0xff]
        %v2342 = vld [vmem:[#allocation3 + $0x770] sm:$0xff]
        %v2343 = vld [vmem:[#allocation3 + $0x778] sm:$0xff]
        %v2344 = vld [vmem:[#allocation3 + $0x780] sm:$0xff]
        %v2345 = vld [vmem:[#allocation3 + $0x788] sm:$0xff]
        %v2346 = vld [vmem:[#allocation3 + $0x790] sm:$0xff]
        %v2347 = vld [vmem:[#allocation3 + $0x798] sm:$0xff]
        %v2348 = vld [vmem:[#allocation3 + $0x7a0] sm:$0xff]
        %v2349 = vld [vmem:[#allocation3 + $0x7a8] sm:$0xff]
        %v2350 = vld [vmem:[#allocation3 + $0x7b0] sm:$0xff]
        %v2351 = vld [vmem:[#allocation3 + $0x7b8] sm:$0xff]
        %v2352 = vld [vmem:[#allocation3 + $0x7c0] sm:$0xff]
        %v2353 = vld [vmem:[#allocation3 + $0x7c8] sm:$0xff]
        %v2354 = vld [vmem:[#allocation3 + $0x7d0] sm:$0xff]
        %v2355 = vld [vmem:[#allocation3 + $0x7d8] sm:$0xff]
        %v2356 = vld [vmem:[#allocation3 + $0x7e0] sm:$0xff]
        %v2357 = vld [vmem:[#allocation3 + $0x7e8] sm:$0xff]
        %v2358 = vld [vmem:[#allocation3 + $0x7f0] sm:$0xff]
        %v2359 = vld [vmem:[#allocation3 + $0x7f8] sm:$0xff]
        %v2360 = vld [vmem:[%s4] sm:$0xf]
        %v2362 = vlaneseq
        %v2363 = vshrl.u32 %v2362, 7
        %v2364 = vsub.s32 0, %v2363
        %v2365 = vrot.slane %v2360, %v2364
        %v2366 = vlaneseq
        %v2367 = vshrl.u32 %v2366, 7
        %v2368 = vsub.s32 1, %v2367
        %v2369 = vrot.slane %v2360, %v2368
        %v2370 = vlaneseq
        %v2371 = vshrl.u32 %v2370, 7
        %v2372 = vsub.s32 2, %v2371
        %v2373 = vrot.slane %v2360, %v2372
        %v2374 = vlaneseq
        %v2375 = vshrl.u32 %v2374, 7
        %v2376 = vsub.s32 3, %v2375
        %v2377 = vrot.slane %v2360, %v2376
        %v2638 = vunpack.c.l.b16 %v2104
        %v2639 = vunpack.c.h.b16 %v2104
        %v2640 = vunpack.c.l.b16 %v2105
        %v2641 = vunpack.c.h.b16 %v2105
        %v2642 = vunpack.c.l.b16 %v2106
        %v2643 = vunpack.c.h.b16 %v2106
        %v2644 = vunpack.c.l.b16 %v2107
        %v2645 = vunpack.c.h.b16 %v2107
        %v2646 = vunpack.c.l.b16 %v2108
        %v2647 = vunpack.c.h.b16 %v2108
        %v2648 = vunpack.c.l.b16 %v2109
        %v2649 = vunpack.c.h.b16 %v2109
        %v2650 = vunpack.c.l.b16 %v2110
        %v2651 = vunpack.c.h.b16 %v2110
        %v2652 = vunpack.c.l.b16 %v2111
        %v2653 = vunpack.c.h.b16 %v2111
        %v2654 = vunpack.c.l.b16 %v2112
        %v2655 = vunpack.c.h.b16 %v2112
        %v2656 = vunpack.c.l.b16 %v2113
        %v2657 = vunpack.c.h.b16 %v2113
        %v2658 = vunpack.c.l.b16 %v2114
        %v2659 = vunpack.c.h.b16 %v2114
        %v2660 = vunpack.c.l.b16 %v2115
        %v2661 = vunpack.c.h.b16 %v2115
        %v2662 = vunpack.c.l.b16 %v2116
        %v2663 = vunpack.c.h.b16 %v2116
        %v2664 = vunpack.c.l.b16 %v2117
        %v2665 = vunpack.c.h.b16 %v2117
        %v2666 = vunpack.c.l.b16 %v2118
        %v2667 = vunpack.c.h.b16 %v2118
        %v2668 = vunpack.c.l.b16 %v2119
        %v2669 = vunpack.c.h.b16 %v2119
        %v2670 = vunpack.c.l.b16 %v2120
        %v2671 = vunpack.c.h.b16 %v2120
        %v2672 = vunpack.c.l.b16 %v2121
        %v2673 = vunpack.c.h.b16 %v2121
        %v2674 = vunpack.c.l.b16 %v2122
        %v2675 = vunpack.c.h.b16 %v2122
        %v2676 = vunpack.c.l.b16 %v2123
        %v2677 = vunpack.c.h.b16 %v2123
        %v2678 = vunpack.c.l.b16 %v2124
        %v2679 = vunpack.c.h.b16 %v2124
        %v2680 = vunpack.c.l.b16 %v2125
        %v2681 = vunpack.c.h.b16 %v2125
        %v2682 = vunpack.c.l.b16 %v2126
        %v2683 = vunpack.c.h.b16 %v2126
        %v2684 = vunpack.c.l.b16 %v2127
        %v2685 = vunpack.c.h.b16 %v2127
        %v2686 = vunpack.c.l.b16 %v2128
        %v2687 = vunpack.c.h.b16 %v2128
        %v2688 = vunpack.c.l.b16 %v2129
        %v2689 = vunpack.c.h.b16 %v2129
        %v2690 = vunpack.c.l.b16 %v2130
        %v2691 = vunpack.c.h.b16 %v2130
        %v2692 = vunpack.c.l.b16 %v2131
        %v2693 = vunpack.c.h.b16 %v2131
        %v2694 = vunpack.c.l.b16 %v2132
        %v2695 = vunpack.c.h.b16 %v2132
        %v2696 = vunpack.c.l.b16 %v2133
        %v2697 = vunpack.c.h.b16 %v2133
        %v2698 = vunpack.c.l.b16 %v2134
        %v2699 = vunpack.c.h.b16 %v2134
        %v2700 = vunpack.c.l.b16 %v2135
        %v2701 = vunpack.c.h.b16 %v2135
        %v2702 = vunpack.c.l.b16 %v2136
        %v2703 = vunpack.c.h.b16 %v2136
        %v2704 = vunpack.c.l.b16 %v2137
        %v2705 = vunpack.c.h.b16 %v2137
        %v2706 = vunpack.c.l.b16 %v2138
        %v2707 = vunpack.c.h.b16 %v2138
        %v2708 = vunpack.c.l.b16 %v2139
        %v2709 = vunpack.c.h.b16 %v2139
        %v2710 = vunpack.c.l.b16 %v2140
        %v2711 = vunpack.c.h.b16 %v2140
        %v2712 = vunpack.c.l.b16 %v2141
        %v2713 = vunpack.c.h.b16 %v2141
        %v2714 = vunpack.c.l.b16 %v2142
        %v2715 = vunpack.c.h.b16 %v2142
        %v2716 = vunpack.c.l.b16 %v2143
        %v2717 = vunpack.c.h.b16 %v2143
        %v2718 = vunpack.c.l.b16 %v2144
        %v2719 = vunpack.c.h.b16 %v2144
        %v2720 = vunpack.c.l.b16 %v2145
        %v2721 = vunpack.c.h.b16 %v2145
        %v2722 = vunpack.c.l.b16 %v2146
        %v2723 = vunpack.c.h.b16 %v2146
        %v2724 = vunpack.c.l.b16 %v2147
        %v2725 = vunpack.c.h.b16 %v2147
        %v2726 = vunpack.c.l.b16 %v2148
        %v2727 = vunpack.c.h.b16 %v2148
        %v2728 = vunpack.c.l.b16 %v2149
        %v2729 = vunpack.c.h.b16 %v2149
        %v2730 = vunpack.c.l.b16 %v2150
        %v2731 = vunpack.c.h.b16 %v2150
        %v2732 = vunpack.c.l.b16 %v2151
        %v2733 = vunpack.c.h.b16 %v2151
        %v2734 = vunpack.c.l.b16 %v2152
        %v2735 = vunpack.c.h.b16 %v2152
        %v2736 = vunpack.c.l.b16 %v2153
        %v2737 = vunpack.c.h.b16 %v2153
        %v2738 = vunpack.c.l.b16 %v2154
        %v2739 = vunpack.c.h.b16 %v2154
        %v2740 = vunpack.c.l.b16 %v2155
        %v2741 = vunpack.c.h.b16 %v2155
        %v2742 = vunpack.c.l.b16 %v2156
        %v2743 = vunpack.c.h.b16 %v2156
        %v2744 = vunpack.c.l.b16 %v2157
        %v2745 = vunpack.c.h.b16 %v2157
        %v2746 = vunpack.c.l.b16 %v2158
        %v2747 = vunpack.c.h.b16 %v2158
        %v2748 = vunpack.c.l.b16 %v2159
        %v2749 = vunpack.c.h.b16 %v2159
        %v2750 = vunpack.c.l.b16 %v2160
        %v2751 = vunpack.c.h.b16 %v2160
        %v2752 = vunpack.c.l.b16 %v2161
        %v2753 = vunpack.c.h.b16 %v2161
        %v2754 = vunpack.c.l.b16 %v2162
        %v2755 = vunpack.c.h.b16 %v2162
        %v2756 = vunpack.c.l.b16 %v2163
        %v2757 = vunpack.c.h.b16 %v2163
        %v2758 = vunpack.c.l.b16 %v2164
        %v2759 = vunpack.c.h.b16 %v2164
        %v2760 = vunpack.c.l.b16 %v2165
        %v2761 = vunpack.c.h.b16 %v2165
        %v2762 = vunpack.c.l.b16 %v2166
        %v2763 = vunpack.c.h.b16 %v2166
        %v2764 = vunpack.c.l.b16 %v2167
        %v2765 = vunpack.c.h.b16 %v2167
        %v2766 = vunpack.c.l.b16 %v2168
        %v2767 = vunpack.c.h.b16 %v2168
        %v2768 = vunpack.c.l.b16 %v2169
        %v2769 = vunpack.c.h.b16 %v2169
        %v2770 = vunpack.c.l.b16 %v2170
        %v2771 = vunpack.c.h.b16 %v2170
        %v2772 = vunpack.c.l.b16 %v2171
        %v2773 = vunpack.c.h.b16 %v2171
        %v2774 = vunpack.c.l.b16 %v2172
        %v2775 = vunpack.c.h.b16 %v2172
        %v2776 = vunpack.c.l.b16 %v2173
        %v2777 = vunpack.c.h.b16 %v2173
        %v2778 = vunpack.c.l.b16 %v2174
        %v2779 = vunpack.c.h.b16 %v2174
        %v2780 = vunpack.c.l.b16 %v2175
        %v2781 = vunpack.c.h.b16 %v2175
        %v2782 = vunpack.c.l.b16 %v2176
        %v2783 = vunpack.c.h.b16 %v2176
        %v2784 = vunpack.c.l.b16 %v2177
        %v2785 = vunpack.c.h.b16 %v2177
        %v2786 = vunpack.c.l.b16 %v2178
        %v2787 = vunpack.c.h.b16 %v2178
        %v2788 = vunpack.c.l.b16 %v2179
        %v2789 = vunpack.c.h.b16 %v2179
        %v2790 = vunpack.c.l.b16 %v2180
        %v2791 = vunpack.c.h.b16 %v2180
        %v2792 = vunpack.c.l.b16 %v2181
        %v2793 = vunpack.c.h.b16 %v2181
        %v2794 = vunpack.c.l.b16 %v2182
        %v2795 = vunpack.c.h.b16 %v2182
        %v2796 = vunpack.c.l.b16 %v2183
        %v2797 = vunpack.c.h.b16 %v2183
        %v2798 = vunpack.c.l.b16 %v2184
        %v2799 = vunpack.c.h.b16 %v2184
        %v2800 = vunpack.c.l.b16 %v2185
        %v2801 = vunpack.c.h.b16 %v2185
        %v2802 = vunpack.c.l.b16 %v2186
        %v2803 = vunpack.c.h.b16 %v2186
        %v2804 = vunpack.c.l.b16 %v2187
        %v2805 = vunpack.c.h.b16 %v2187
        %v2806 = vunpack.c.l.b16 %v2188
        %v2807 = vunpack.c.h.b16 %v2188
        %v2808 = vunpack.c.l.b16 %v2189
        %v2809 = vunpack.c.h.b16 %v2189
        %v2810 = vunpack.c.l.b16 %v2190
        %v2811 = vunpack.c.h.b16 %v2190
        %v2812 = vunpack.c.l.b16 %v2191
        %v2813 = vunpack.c.h.b16 %v2191
        %v2814 = vunpack.c.l.b16 %v2192
        %v2815 = vunpack.c.h.b16 %v2192
        %v2816 = vunpack.c.l.b16 %v2193
        %v2817 = vunpack.c.h.b16 %v2193
        %v2818 = vunpack.c.l.b16 %v2194
        %v2819 = vunpack.c.h.b16 %v2194
        %v2820 = vunpack.c.l.b16 %v2195
        %v2821 = vunpack.c.h.b16 %v2195
        %v2822 = vunpack.c.l.b16 %v2196
        %v2823 = vunpack.c.h.b16 %v2196
        %v2824 = vunpack.c.l.b16 %v2197
        %v2825 = vunpack.c.h.b16 %v2197
        %v2826 = vunpack.c.l.b16 %v2198
        %v2827 = vunpack.c.h.b16 %v2198
        %v2828 = vunpack.c.l.b16 %v2199
        %v2829 = vunpack.c.h.b16 %v2199
        %v2830 = vunpack.c.l.b16 %v2200
        %v2831 = vunpack.c.h.b16 %v2200
        %v2832 = vunpack.c.l.b16 %v2201
        %v2833 = vunpack.c.h.b16 %v2201
        %v2834 = vunpack.c.l.b16 %v2202
        %v2835 = vunpack.c.h.b16 %v2202
        %v2836 = vunpack.c.l.b16 %v2203
        %v2837 = vunpack.c.h.b16 %v2203
        %v2838 = vunpack.c.l.b16 %v2204
        %v2839 = vunpack.c.h.b16 %v2204
        %v2840 = vunpack.c.l.b16 %v2205
        %v2841 = vunpack.c.h.b16 %v2205
        %v2842 = vunpack.c.l.b16 %v2206
        %v2843 = vunpack.c.h.b16 %v2206
        %v2844 = vunpack.c.l.b16 %v2207
        %v2845 = vunpack.c.h.b16 %v2207
        %v2846 = vunpack.c.l.b16 %v2208
        %v2847 = vunpack.c.h.b16 %v2208
        %v2848 = vunpack.c.l.b16 %v2209
        %v2849 = vunpack.c.h.b16 %v2209
        %v2850 = vunpack.c.l.b16 %v2210
        %v2851 = vunpack.c.h.b16 %v2210
        %v2852 = vunpack.c.l.b16 %v2211
        %v2853 = vunpack.c.h.b16 %v2211
        %v2854 = vunpack.c.l.b16 %v2212
        %v2855 = vunpack.c.h.b16 %v2212
        %v2856 = vunpack.c.l.b16 %v2213
        %v2857 = vunpack.c.h.b16 %v2213
        %v2858 = vunpack.c.l.b16 %v2214
        %v2859 = vunpack.c.h.b16 %v2214
        %v2860 = vunpack.c.l.b16 %v2215
        %v2861 = vunpack.c.h.b16 %v2215
        %v2862 = vunpack.c.l.b16 %v2216
        %v2863 = vunpack.c.h.b16 %v2216
        %v2864 = vunpack.c.l.b16 %v2217
        %v2865 = vunpack.c.h.b16 %v2217
        %v2866 = vunpack.c.l.b16 %v2218
        %v2867 = vunpack.c.h.b16 %v2218
        %v2868 = vunpack.c.l.b16 %v2219
        %v2869 = vunpack.c.h.b16 %v2219
        %v2870 = vunpack.c.l.b16 %v2220
        %v2871 = vunpack.c.h.b16 %v2220
        %v2872 = vunpack.c.l.b16 %v2221
        %v2873 = vunpack.c.h.b16 %v2221
        %v2874 = vunpack.c.l.b16 %v2222
        %v2875 = vunpack.c.h.b16 %v2222
        %v2876 = vunpack.c.l.b16 %v2223
        %v2877 = vunpack.c.h.b16 %v2223
        %v2878 = vunpack.c.l.b16 %v2224
        %v2879 = vunpack.c.h.b16 %v2224
        %v2880 = vunpack.c.l.b16 %v2225
        %v2881 = vunpack.c.h.b16 %v2225
        %v2882 = vunpack.c.l.b16 %v2226
        %v2883 = vunpack.c.h.b16 %v2226
        %v2884 = vunpack.c.l.b16 %v2227
        %v2885 = vunpack.c.h.b16 %v2227
        %v2886 = vunpack.c.l.b16 %v2228
        %v2887 = vunpack.c.h.b16 %v2228
        %v2888 = vunpack.c.l.b16 %v2229
        %v2889 = vunpack.c.h.b16 %v2229
        %v2890 = vunpack.c.l.b16 %v2230
        %v2891 = vunpack.c.h.b16 %v2230
        %v2892 = vunpack.c.l.b16 %v2231
        %v2893 = vunpack.c.h.b16 %v2231
        %v2894 = vunpack.c.l.b16 %v2232
        %v2895 = vunpack.c.h.b16 %v2232
        %v2896 = vunpack.c.l.b16 %v2233
        %v2897 = vunpack.c.h.b16 %v2233
        %v2898 = vunpack.c.l.b16 %v2234
        %v2899 = vunpack.c.h.b16 %v2234
        %v2900 = vunpack.c.l.b16 %v2235
        %v2901 = vunpack.c.h.b16 %v2235
        %v2902 = vunpack.c.l.b16 %v2236
        %v2903 = vunpack.c.h.b16 %v2236
        %v2904 = vunpack.c.l.b16 %v2237
        %v2905 = vunpack.c.h.b16 %v2237
        %v2906 = vunpack.c.l.b16 %v2238
        %v2907 = vunpack.c.h.b16 %v2238
        %v2908 = vunpack.c.l.b16 %v2239
        %v2909 = vunpack.c.h.b16 %v2239
        %v2910 = vunpack.c.l.b16 %v2240
        %v2911 = vunpack.c.h.b16 %v2240
        %v2912 = vunpack.c.l.b16 %v2241
        %v2913 = vunpack.c.h.b16 %v2241
        %v2914 = vunpack.c.l.b16 %v2242
        %v2915 = vunpack.c.h.b16 %v2242
        %v2916 = vunpack.c.l.b16 %v2243
        %v2917 = vunpack.c.h.b16 %v2243
        %v2918 = vunpack.c.l.b16 %v2244
        %v2919 = vunpack.c.h.b16 %v2244
        %v2920 = vunpack.c.l.b16 %v2245
        %v2921 = vunpack.c.h.b16 %v2245
        %v2922 = vunpack.c.l.b16 %v2246
        %v2923 = vunpack.c.h.b16 %v2246
        %v2924 = vunpack.c.l.b16 %v2247
        %v2925 = vunpack.c.h.b16 %v2247
        %v2926 = vunpack.c.l.b16 %v2248
        %v2927 = vunpack.c.h.b16 %v2248
        %v2928 = vunpack.c.l.b16 %v2249
        %v2929 = vunpack.c.h.b16 %v2249
        %v2930 = vunpack.c.l.b16 %v2250
        %v2931 = vunpack.c.h.b16 %v2250
        %v2932 = vunpack.c.l.b16 %v2251
        %v2933 = vunpack.c.h.b16 %v2251
        %v2934 = vunpack.c.l.b16 %v2252
        %v2935 = vunpack.c.h.b16 %v2252
        %v2936 = vunpack.c.l.b16 %v2253
        %v2937 = vunpack.c.h.b16 %v2253
        %v2938 = vunpack.c.l.b16 %v2254
        %v2939 = vunpack.c.h.b16 %v2254
        %v2940 = vunpack.c.l.b16 %v2255
        %v2941 = vunpack.c.h.b16 %v2255
        %v2942 = vunpack.c.l.b16 %v2256
        %v2943 = vunpack.c.h.b16 %v2256
        %v2944 = vunpack.c.l.b16 %v2257
        %v2945 = vunpack.c.h.b16 %v2257
        %v2946 = vunpack.c.l.b16 %v2258
        %v2947 = vunpack.c.h.b16 %v2258
        %v2948 = vunpack.c.l.b16 %v2259
        %v2949 = vunpack.c.h.b16 %v2259
        %v2950 = vunpack.c.l.b16 %v2260
        %v2951 = vunpack.c.h.b16 %v2260
        %v2952 = vunpack.c.l.b16 %v2261
        %v2953 = vunpack.c.h.b16 %v2261
        %v2954 = vunpack.c.l.b16 %v2262
        %v2955 = vunpack.c.h.b16 %v2262
        %v2956 = vunpack.c.l.b16 %v2263
        %v2957 = vunpack.c.h.b16 %v2263
        %v2958 = vunpack.c.l.b16 %v2264
        %v2959 = vunpack.c.h.b16 %v2264
        %v2960 = vunpack.c.l.b16 %v2265
        %v2961 = vunpack.c.h.b16 %v2265
        %v2962 = vunpack.c.l.b16 %v2266
        %v2963 = vunpack.c.h.b16 %v2266
        %v2964 = vunpack.c.l.b16 %v2267
        %v2965 = vunpack.c.h.b16 %v2267
        %v2966 = vunpack.c.l.b16 %v2268
        %v2967 = vunpack.c.h.b16 %v2268
        %v2968 = vunpack.c.l.b16 %v2269
        %v2969 = vunpack.c.h.b16 %v2269
        %v2970 = vunpack.c.l.b16 %v2270
        %v2971 = vunpack.c.h.b16 %v2270
        %v2972 = vunpack.c.l.b16 %v2271
        %v2973 = vunpack.c.h.b16 %v2271
        %v2974 = vunpack.c.l.b16 %v2272
        %v2975 = vunpack.c.h.b16 %v2272
        %v2976 = vunpack.c.l.b16 %v2273
        %v2977 = vunpack.c.h.b16 %v2273
        %v2978 = vunpack.c.l.b16 %v2274
        %v2979 = vunpack.c.h.b16 %v2274
        %v2980 = vunpack.c.l.b16 %v2275
        %v2981 = vunpack.c.h.b16 %v2275
        %v2982 = vunpack.c.l.b16 %v2276
        %v2983 = vunpack.c.h.b16 %v2276
        %v2984 = vunpack.c.l.b16 %v2277
        %v2985 = vunpack.c.h.b16 %v2277
        %v2986 = vunpack.c.l.b16 %v2278
        %v2987 = vunpack.c.h.b16 %v2278
        %v2988 = vunpack.c.l.b16 %v2279
        %v2989 = vunpack.c.h.b16 %v2279
        %v2990 = vunpack.c.l.b16 %v2280
        %v2991 = vunpack.c.h.b16 %v2280
        %v2992 = vunpack.c.l.b16 %v2281
        %v2993 = vunpack.c.h.b16 %v2281
        %v2994 = vunpack.c.l.b16 %v2282
        %v2995 = vunpack.c.h.b16 %v2282
        %v2996 = vunpack.c.l.b16 %v2283
        %v2997 = vunpack.c.h.b16 %v2283
        %v2998 = vunpack.c.l.b16 %v2284
        %v2999 = vunpack.c.h.b16 %v2284
        %v3000 = vunpack.c.l.b16 %v2285
        %v3001 = vunpack.c.h.b16 %v2285
        %v3002 = vunpack.c.l.b16 %v2286
        %v3003 = vunpack.c.h.b16 %v2286
        %v3004 = vunpack.c.l.b16 %v2287
        %v3005 = vunpack.c.h.b16 %v2287
        %v3006 = vunpack.c.l.b16 %v2288
        %v3007 = vunpack.c.h.b16 %v2288
        %v3008 = vunpack.c.l.b16 %v2289
        %v3009 = vunpack.c.h.b16 %v2289
        %v3010 = vunpack.c.l.b16 %v2290
        %v3011 = vunpack.c.h.b16 %v2290
        %v3012 = vunpack.c.l.b16 %v2291
        %v3013 = vunpack.c.h.b16 %v2291
        %v3014 = vunpack.c.l.b16 %v2292
        %v3015 = vunpack.c.h.b16 %v2292
        %v3016 = vunpack.c.l.b16 %v2293
        %v3017 = vunpack.c.h.b16 %v2293
        %v3018 = vunpack.c.l.b16 %v2294
        %v3019 = vunpack.c.h.b16 %v2294
        %v3020 = vunpack.c.l.b16 %v2295
        %v3021 = vunpack.c.h.b16 %v2295
        %v3022 = vunpack.c.l.b16 %v2296
        %v3023 = vunpack.c.h.b16 %v2296
        %v3024 = vunpack.c.l.b16 %v2297
        %v3025 = vunpack.c.h.b16 %v2297
        %v3026 = vunpack.c.l.b16 %v2298
        %v3027 = vunpack.c.h.b16 %v2298
        %v3028 = vunpack.c.l.b16 %v2299
        %v3029 = vunpack.c.h.b16 %v2299
        %v3030 = vunpack.c.l.b16 %v2300
        %v3031 = vunpack.c.h.b16 %v2300
        %v3032 = vunpack.c.l.b16 %v2301
        %v3033 = vunpack.c.h.b16 %v2301
        %v3034 = vunpack.c.l.b16 %v2302
        %v3035 = vunpack.c.h.b16 %v2302
        %v3036 = vunpack.c.l.b16 %v2303
        %v3037 = vunpack.c.h.b16 %v2303
        %v3038 = vunpack.c.l.b16 %v2304
        %v3039 = vunpack.c.h.b16 %v2304
        %v3040 = vunpack.c.l.b16 %v2305
        %v3041 = vunpack.c.h.b16 %v2305
        %v3042 = vunpack.c.l.b16 %v2306
        %v3043 = vunpack.c.h.b16 %v2306
        %v3044 = vunpack.c.l.b16 %v2307
        %v3045 = vunpack.c.h.b16 %v2307
        %v3046 = vunpack.c.l.b16 %v2308
        %v3047 = vunpack.c.h.b16 %v2308
        %v3048 = vunpack.c.l.b16 %v2309
        %v3049 = vunpack.c.h.b16 %v2309
        %v3050 = vunpack.c.l.b16 %v2310
        %v3051 = vunpack.c.h.b16 %v2310
        %v3052 = vunpack.c.l.b16 %v2311
        %v3053 = vunpack.c.h.b16 %v2311
        %v3054 = vunpack.c.l.b16 %v2312
        %v3055 = vunpack.c.h.b16 %v2312
        %v3056 = vunpack.c.l.b16 %v2313
        %v3057 = vunpack.c.h.b16 %v2313
        %v3058 = vunpack.c.l.b16 %v2314
        %v3059 = vunpack.c.h.b16 %v2314
        %v3060 = vunpack.c.l.b16 %v2315
        %v3061 = vunpack.c.h.b16 %v2315
        %v3062 = vunpack.c.l.b16 %v2316
        %v3063 = vunpack.c.h.b16 %v2316
        %v3064 = vunpack.c.l.b16 %v2317
        %v3065 = vunpack.c.h.b16 %v2317
        %v3066 = vunpack.c.l.b16 %v2318
        %v3067 = vunpack.c.h.b16 %v2318
        %v3068 = vunpack.c.l.b16 %v2319
        %v3069 = vunpack.c.h.b16 %v2319
        %v3070 = vunpack.c.l.b16 %v2320
        %v3071 = vunpack.c.h.b16 %v2320
        %v3072 = vunpack.c.l.b16 %v2321
        %v3073 = vunpack.c.h.b16 %v2321
        %v3074 = vunpack.c.l.b16 %v2322
        %v3075 = vunpack.c.h.b16 %v2322
        %v3076 = vunpack.c.l.b16 %v2323
        %v3077 = vunpack.c.h.b16 %v2323
        %v3078 = vunpack.c.l.b16 %v2324
        %v3079 = vunpack.c.h.b16 %v2324
        %v3080 = vunpack.c.l.b16 %v2325
        %v3081 = vunpack.c.h.b16 %v2325
        %v3082 = vunpack.c.l.b16 %v2326
        %v3083 = vunpack.c.h.b16 %v2326
        %v3084 = vunpack.c.l.b16 %v2327
        %v3085 = vunpack.c.h.b16 %v2327
        %v3086 = vunpack.c.l.b16 %v2328
        %v3087 = vunpack.c.h.b16 %v2328
        %v3088 = vunpack.c.l.b16 %v2329
        %v3089 = vunpack.c.h.b16 %v2329
        %v3090 = vunpack.c.l.b16 %v2330
        %v3091 = vunpack.c.h.b16 %v2330
        %v3092 = vunpack.c.l.b16 %v2331
        %v3093 = vunpack.c.h.b16 %v2331
        %v3094 = vunpack.c.l.b16 %v2332
        %v3095 = vunpack.c.h.b16 %v2332
        %v3096 = vunpack.c.l.b16 %v2333
        %v3097 = vunpack.c.h.b16 %v2333
        %v3098 = vunpack.c.l.b16 %v2334
        %v3099 = vunpack.c.h.b16 %v2334
        %v3100 = vunpack.c.l.b16 %v2335
        %v3101 = vunpack.c.h.b16 %v2335
        %v3102 = vunpack.c.l.b16 %v2336
        %v3103 = vunpack.c.h.b16 %v2336
        %v3104 = vunpack.c.l.b16 %v2337
        %v3105 = vunpack.c.h.b16 %v2337
        %v3106 = vunpack.c.l.b16 %v2338
        %v3107 = vunpack.c.h.b16 %v2338
        %v3108 = vunpack.c.l.b16 %v2339
        %v3109 = vunpack.c.h.b16 %v2339
        %v3110 = vunpack.c.l.b16 %v2340
        %v3111 = vunpack.c.h.b16 %v2340
        %v3112 = vunpack.c.l.b16 %v2341
        %v3113 = vunpack.c.h.b16 %v2341
        %v3114 = vunpack.c.l.b16 %v2342
        %v3115 = vunpack.c.h.b16 %v2342
        %v3116 = vunpack.c.l.b16 %v2343
        %v3117 = vunpack.c.h.b16 %v2343
        %v3118 = vunpack.c.l.b16 %v2344
        %v3119 = vunpack.c.h.b16 %v2344
        %v3120 = vunpack.c.l.b16 %v2345
        %v3121 = vunpack.c.h.b16 %v2345
        %v3122 = vunpack.c.l.b16 %v2346
        %v3123 = vunpack.c.h.b16 %v2346
        %v3124 = vunpack.c.l.b16 %v2347
        %v3125 = vunpack.c.h.b16 %v2347
        %v3126 = vunpack.c.l.b16 %v2348
        %v3127 = vunpack.c.h.b16 %v2348
        %v3128 = vunpack.c.l.b16 %v2349
        %v3129 = vunpack.c.h.b16 %v2349
        %v3130 = vunpack.c.l.b16 %v2350
        %v3131 = vunpack.c.h.b16 %v2350
        %v3132 = vunpack.c.l.b16 %v2351
        %v3133 = vunpack.c.h.b16 %v2351
        %v3134 = vunpack.c.l.b16 %v2352
        %v3135 = vunpack.c.h.b16 %v2352
        %v3136 = vunpack.c.l.b16 %v2353
        %v3137 = vunpack.c.h.b16 %v2353
        %v3138 = vunpack.c.l.b16 %v2354
        %v3139 = vunpack.c.h.b16 %v2354
        %v3140 = vunpack.c.l.b16 %v2355
        %v3141 = vunpack.c.h.b16 %v2355
        %v3142 = vunpack.c.l.b16 %v2356
        %v3143 = vunpack.c.h.b16 %v2356
        %v3144 = vunpack.c.l.b16 %v2357
        %v3145 = vunpack.c.h.b16 %v2357
        %v3146 = vunpack.c.l.b16 %v2358
        %v3147 = vunpack.c.h.b16 %v2358
        %v3148 = vunpack.c.l.b16 %v2359
        %v3149 = vunpack.c.h.b16 %v2359
        %v3150 = vpack.c.b16 %v2642, %v2638
        %v3151 = vpack.c.b16 %v2643, %v2639
        %v3152 = vpack.c.b16 %v2644, %v2640
        %v3153 = vpack.c.b16 %v2645, %v2641
        %v3154 = vpack.c.b16 %v2650, %v2646
        %v3155 = vpack.c.b16 %v2651, %v2647
        %v3156 = vpack.c.b16 %v2652, %v2648
        %v3157 = vpack.c.b16 %v2653, %v2649
        %v3158 = vpack.c.b16 %v2658, %v2654
        %v3159 = vpack.c.b16 %v2659, %v2655
        %v3160 = vpack.c.b16 %v2660, %v2656
        %v3161 = vpack.c.b16 %v2661, %v2657
        %v3162 = vpack.c.b16 %v2666, %v2662
        %v3163 = vpack.c.b16 %v2667, %v2663
        %v3164 = vpack.c.b16 %v2668, %v2664
        %v3165 = vpack.c.b16 %v2669, %v2665
        %v3166 = vpack.c.b16 %v2674, %v2670
        %v3167 = vpack.c.b16 %v2675, %v2671
        %v3168 = vpack.c.b16 %v2676, %v2672
        %v3169 = vpack.c.b16 %v2677, %v2673
        %v3170 = vpack.c.b16 %v2682, %v2678
        %v3171 = vpack.c.b16 %v2683, %v2679
        %v3172 = vpack.c.b16 %v2684, %v2680
        %v3173 = vpack.c.b16 %v2685, %v2681
        %v3174 = vpack.c.b16 %v2690, %v2686
        %v3175 = vpack.c.b16 %v2691, %v2687
        %v3176 = vpack.c.b16 %v2692, %v2688
        %v3177 = vpack.c.b16 %v2693, %v2689
        %v3178 = vpack.c.b16 %v2698, %v2694
        %v3179 = vpack.c.b16 %v2699, %v2695
        %v3180 = vpack.c.b16 %v2700, %v2696
        %v3181 = vpack.c.b16 %v2701, %v2697
        %v3182 = vpack.c.b16 %v2706, %v2702
        %v3183 = vpack.c.b16 %v2707, %v2703
        %v3184 = vpack.c.b16 %v2708, %v2704
        %v3185 = vpack.c.b16 %v2709, %v2705
        %v3186 = vpack.c.b16 %v2714, %v2710
        %v3187 = vpack.c.b16 %v2715, %v2711
        %v3188 = vpack.c.b16 %v2716, %v2712
        %v3189 = vpack.c.b16 %v2717, %v2713
        %v3190 = vpack.c.b16 %v2722, %v2718
        %v3191 = vpack.c.b16 %v2723, %v2719
        %v3192 = vpack.c.b16 %v2724, %v2720
        %v3193 = vpack.c.b16 %v2725, %v2721
        %v3194 = vpack.c.b16 %v2730, %v2726
        %v3195 = vpack.c.b16 %v2731, %v2727
        %v3196 = vpack.c.b16 %v2732, %v2728
        %v3197 = vpack.c.b16 %v2733, %v2729
        %v3198 = vpack.c.b16 %v2738, %v2734
        %v3199 = vpack.c.b16 %v2739, %v2735
        %v3200 = vpack.c.b16 %v2740, %v2736
        %v3201 = vpack.c.b16 %v2741, %v2737
        %v3202 = vpack.c.b16 %v2746, %v2742
        %v3203 = vpack.c.b16 %v2747, %v2743
        %v3204 = vpack.c.b16 %v2748, %v2744
        %v3205 = vpack.c.b16 %v2749, %v2745
        %v3206 = vpack.c.b16 %v2754, %v2750
        %v3207 = vpack.c.b16 %v2755, %v2751
        %v3208 = vpack.c.b16 %v2756, %v2752
        %v3209 = vpack.c.b16 %v2757, %v2753
        %v3210 = vpack.c.b16 %v2762, %v2758
        %v3211 = vpack.c.b16 %v2763, %v2759
        %v3212 = vpack.c.b16 %v2764, %v2760
        %v3213 = vpack.c.b16 %v2765, %v2761
        %v3214 = vpack.c.b16 %v2770, %v2766
        %v3215 = vpack.c.b16 %v2771, %v2767
        %v3216 = vpack.c.b16 %v2772, %v2768
        %v3217 = vpack.c.b16 %v2773, %v2769
        %v3218 = vpack.c.b16 %v2778, %v2774
        %v3219 = vpack.c.b16 %v2779, %v2775
        %v3220 = vpack.c.b16 %v2780, %v2776
        %v3221 = vpack.c.b16 %v2781, %v2777
        %v3222 = vpack.c.b16 %v2786, %v2782
        %v3223 = vpack.c.b16 %v2787, %v2783
        %v3224 = vpack.c.b16 %v2788, %v2784
        %v3225 = vpack.c.b16 %v2789, %v2785
        %v3226 = vpack.c.b16 %v2794, %v2790
        %v3227 = vpack.c.b16 %v2795, %v2791
        %v3228 = vpack.c.b16 %v2796, %v2792
        %v3229 = vpack.c.b16 %v2797, %v2793
        %v3230 = vpack.c.b16 %v2802, %v2798
        %v3231 = vpack.c.b16 %v2803, %v2799
        %v3232 = vpack.c.b16 %v2804, %v2800
        %v3233 = vpack.c.b16 %v2805, %v2801
        %v3234 = vpack.c.b16 %v2810, %v2806
        %v3235 = vpack.c.b16 %v2811, %v2807
        %v3236 = vpack.c.b16 %v2812, %v2808
        %v3237 = vpack.c.b16 %v2813, %v2809
        %v3238 = vpack.c.b16 %v2818, %v2814
        %v3239 = vpack.c.b16 %v2819, %v2815
        %v3240 = vpack.c.b16 %v2820, %v2816
        %v3241 = vpack.c.b16 %v2821, %v2817
        %v3242 = vpack.c.b16 %v2826, %v2822
        %v3243 = vpack.c.b16 %v2827, %v2823
        %v3244 = vpack.c.b16 %v2828, %v2824
        %v3245 = vpack.c.b16 %v2829, %v2825
        %v3246 = vpack.c.b16 %v2834, %v2830
        %v3247 = vpack.c.b16 %v2835, %v2831
        %v3248 = vpack.c.b16 %v2836, %v2832
        %v3249 = vpack.c.b16 %v2837, %v2833
        %v3250 = vpack.c.b16 %v2842, %v2838
        %v3251 = vpack.c.b16 %v2843, %v2839
        %v3252 = vpack.c.b16 %v2844, %v2840
        %v3253 = vpack.c.b16 %v2845, %v2841
        %v3254 = vpack.c.b16 %v2850, %v2846
        %v3255 = vpack.c.b16 %v2851, %v2847
        %v3256 = vpack.c.b16 %v2852, %v2848
        %v3257 = vpack.c.b16 %v2853, %v2849
        %v3258 = vpack.c.b16 %v2858, %v2854
        %v3259 = vpack.c.b16 %v2859, %v2855
        %v3260 = vpack.c.b16 %v2860, %v2856
        %v3261 = vpack.c.b16 %v2861, %v2857
        %v3262 = vpack.c.b16 %v2866, %v2862
        %v3263 = vpack.c.b16 %v2867, %v2863
        %v3264 = vpack.c.b16 %v2868, %v2864
        %v3265 = vpack.c.b16 %v2869, %v2865
        %v3266 = vpack.c.b16 %v2874, %v2870
        %v3267 = vpack.c.b16 %v2875, %v2871
        %v3268 = vpack.c.b16 %v2876, %v2872
        %v3269 = vpack.c.b16 %v2877, %v2873
        %v3270 = vpack.c.b16 %v2882, %v2878
        %v3271 = vpack.c.b16 %v2883, %v2879
        %v3272 = vpack.c.b16 %v2884, %v2880
        %v3273 = vpack.c.b16 %v2885, %v2881
        %v3274 = vpack.c.b16 %v2890, %v2886
        %v3275 = vpack.c.b16 %v2891, %v2887
        %v3276 = vpack.c.b16 %v2892, %v2888
        %v3277 = vpack.c.b16 %v2893, %v2889
        %v3278 = vpack.c.b16 %v2898, %v2894
        %v3279 = vpack.c.b16 %v2899, %v2895
        %v3280 = vpack.c.b16 %v2900, %v2896
        %v3281 = vpack.c.b16 %v2901, %v2897
        %v3282 = vpack.c.b16 %v2906, %v2902
        %v3283 = vpack.c.b16 %v2907, %v2903
        %v3284 = vpack.c.b16 %v2908, %v2904
        %v3285 = vpack.c.b16 %v2909, %v2905
        %v3286 = vpack.c.b16 %v2914, %v2910
        %v3287 = vpack.c.b16 %v2915, %v2911
        %v3288 = vpack.c.b16 %v2916, %v2912
        %v3289 = vpack.c.b16 %v2917, %v2913
        %v3290 = vpack.c.b16 %v2922, %v2918
        %v3291 = vpack.c.b16 %v2923, %v2919
        %v3292 = vpack.c.b16 %v2924, %v2920
        %v3293 = vpack.c.b16 %v2925, %v2921
        %v3294 = vpack.c.b16 %v2930, %v2926
        %v3295 = vpack.c.b16 %v2931, %v2927
        %v3296 = vpack.c.b16 %v2932, %v2928
        %v3297 = vpack.c.b16 %v2933, %v2929
        %v3298 = vpack.c.b16 %v2938, %v2934
        %v3299 = vpack.c.b16 %v2939, %v2935
        %v3300 = vpack.c.b16 %v2940, %v2936
        %v3301 = vpack.c.b16 %v2941, %v2937
        %v3302 = vpack.c.b16 %v2946, %v2942
        %v3303 = vpack.c.b16 %v2947, %v2943
        %v3304 = vpack.c.b16 %v2948, %v2944
        %v3305 = vpack.c.b16 %v2949, %v2945
        %v3306 = vpack.c.b16 %v2954, %v2950
        %v3307 = vpack.c.b16 %v2955, %v2951
        %v3308 = vpack.c.b16 %v2956, %v2952
        %v3309 = vpack.c.b16 %v2957, %v2953
        %v3310 = vpack.c.b16 %v2962, %v2958
        %v3311 = vpack.c.b16 %v2963, %v2959
        %v3312 = vpack.c.b16 %v2964, %v2960
        %v3313 = vpack.c.b16 %v2965, %v2961
        %v3314 = vpack.c.b16 %v2970, %v2966
        %v3315 = vpack.c.b16 %v2971, %v2967
        %v3316 = vpack.c.b16 %v2972, %v2968
        %v3317 = vpack.c.b16 %v2973, %v2969
        %v3318 = vpack.c.b16 %v2978, %v2974
        %v3319 = vpack.c.b16 %v2979, %v2975
        %v3320 = vpack.c.b16 %v2980, %v2976
        %v3321 = vpack.c.b16 %v2981, %v2977
        %v3322 = vpack.c.b16 %v2986, %v2982
        %v3323 = vpack.c.b16 %v2987, %v2983
        %v3324 = vpack.c.b16 %v2988, %v2984
        %v3325 = vpack.c.b16 %v2989, %v2985
        %v3326 = vpack.c.b16 %v2994, %v2990
        %v3327 = vpack.c.b16 %v2995, %v2991
        %v3328 = vpack.c.b16 %v2996, %v2992
        %v3329 = vpack.c.b16 %v2997, %v2993
        %v3330 = vpack.c.b16 %v3002, %v2998
        %v3331 = vpack.c.b16 %v3003, %v2999
        %v3332 = vpack.c.b16 %v3004, %v3000
        %v3333 = vpack.c.b16 %v3005, %v3001
        %v3334 = vpack.c.b16 %v3010, %v3006
        %v3335 = vpack.c.b16 %v3011, %v3007
        %v3336 = vpack.c.b16 %v3012, %v3008
        %v3337 = vpack.c.b16 %v3013, %v3009
        %v3338 = vpack.c.b16 %v3018, %v3014
        %v3339 = vpack.c.b16 %v3019, %v3015
        %v3340 = vpack.c.b16 %v3020, %v3016
        %v3341 = vpack.c.b16 %v3021, %v3017
        %v3342 = vpack.c.b16 %v3026, %v3022
        %v3343 = vpack.c.b16 %v3027, %v3023
        %v3344 = vpack.c.b16 %v3028, %v3024
        %v3345 = vpack.c.b16 %v3029, %v3025
        %v3346 = vpack.c.b16 %v3034, %v3030
        %v3347 = vpack.c.b16 %v3035, %v3031
        %v3348 = vpack.c.b16 %v3036, %v3032
        %v3349 = vpack.c.b16 %v3037, %v3033
        %v3350 = vpack.c.b16 %v3042, %v3038
        %v3351 = vpack.c.b16 %v3043, %v3039
        %v3352 = vpack.c.b16 %v3044, %v3040
        %v3353 = vpack.c.b16 %v3045, %v3041
        %v3354 = vpack.c.b16 %v3050, %v3046
        %v3355 = vpack.c.b16 %v3051, %v3047
        %v3356 = vpack.c.b16 %v3052, %v3048
        %v3357 = vpack.c.b16 %v3053, %v3049
        %v3358 = vpack.c.b16 %v3058, %v3054
        %v3359 = vpack.c.b16 %v3059, %v3055
        %v3360 = vpack.c.b16 %v3060, %v3056
        %v3361 = vpack.c.b16 %v3061, %v3057
        %v3362 = vpack.c.b16 %v3066, %v3062
        %v3363 = vpack.c.b16 %v3067, %v3063
        %v3364 = vpack.c.b16 %v3068, %v3064
        %v3365 = vpack.c.b16 %v3069, %v3065
        %v3366 = vpack.c.b16 %v3074, %v3070
        %v3367 = vpack.c.b16 %v3075, %v3071
        %v3368 = vpack.c.b16 %v3076, %v3072
        %v3369 = vpack.c.b16 %v3077, %v3073
        %v3370 = vpack.c.b16 %v3082, %v3078
        %v3371 = vpack.c.b16 %v3083, %v3079
        %v3372 = vpack.c.b16 %v3084, %v3080
        %v3373 = vpack.c.b16 %v3085, %v3081
        %v3374 = vpack.c.b16 %v3090, %v3086
        %v3375 = vpack.c.b16 %v3091, %v3087
        %v3376 = vpack.c.b16 %v3092, %v3088
        %v3377 = vpack.c.b16 %v3093, %v3089
        %v3378 = vpack.c.b16 %v3098, %v3094
        %v3379 = vpack.c.b16 %v3099, %v3095
        %v3380 = vpack.c.b16 %v3100, %v3096
        %v3381 = vpack.c.b16 %v3101, %v3097
        %v3382 = vpack.c.b16 %v3106, %v3102
        %v3383 = vpack.c.b16 %v3107, %v3103
        %v3384 = vpack.c.b16 %v3108, %v3104
        %v3385 = vpack.c.b16 %v3109, %v3105
        %v3386 = vpack.c.b16 %v3114, %v3110
        %v3387 = vpack.c.b16 %v3115, %v3111
        %v3388 = vpack.c.b16 %v3116, %v3112
        %v3389 = vpack.c.b16 %v3117, %v3113
        %v3390 = vpack.c.b16 %v3122, %v3118
        %v3391 = vpack.c.b16 %v3123, %v3119
        %v3392 = vpack.c.b16 %v3124, %v3120
        %v3393 = vpack.c.b16 %v3125, %v3121
        %v3394 = vpack.c.b16 %v3130, %v3126
        %v3395 = vpack.c.b16 %v3131, %v3127
        %v3396 = vpack.c.b16 %v3132, %v3128
        %v3397 = vpack.c.b16 %v3133, %v3129
        %v3398 = vpack.c.b16 %v3138, %v3134
        %v3399 = vpack.c.b16 %v3139, %v3135
        %v3400 = vpack.c.b16 %v3140, %v3136
        %v3401 = vpack.c.b16 %v3141, %v3137
        %v3402 = vpack.c.b16 %v3146, %v3142
        %v3403 = vpack.c.b16 %v3147, %v3143
        %v3404 = vpack.c.b16 %v3148, %v3144
        %v3405 = vpack.c.b16 %v3149, %v3145
        %3662 = vmatprep.subr.bf16.mxu0 %v3151
        %3663 = vmatpush1.bf16.msra.mxu0 %v3150
        %3664 = vmatprep.subr.bf16.mxu0 %v3155
        %3665 = vmatpush1.bf16.msra.mxu0 %v3154
        %3666 = vmatprep.subr.bf16.mxu0 %v3159
        %3667 = vmatpush1.bf16.msra.mxu0 %v3158
        %3668 = vmatprep.subr.bf16.mxu0 %v3163
        %3669 = vmatpush1.bf16.msra.mxu0 %v3162
        %3670 = vmatprep.subr.bf16.mxu0 %v3167
        %3671 = vmatpush1.bf16.msra.mxu0 %v3166
        %3672 = vmatprep.subr.bf16.mxu0 %v3171
        %3673 = vmatpush1.bf16.msra.mxu0 %v3170
        %3674 = vmatprep.subr.bf16.mxu0 %v3175
        %3675 = vmatpush1.bf16.msra.mxu0 %v3174
        %3676 = vmatprep.subr.bf16.mxu0 %v3179
        %3677 = vmatpush1.bf16.msra.mxu0 %v3178
        %3678 = vmatprep.subr.bf16.mxu0 %v3183
        %3679 = vmatpush1.bf16.msra.mxu0 %v3182
        %3680 = vmatprep.subr.bf16.mxu0 %v3187
        %3681 = vmatpush1.bf16.msra.mxu0 %v3186
        %3682 = vmatprep.subr.bf16.mxu0 %v3191
        %3683 = vmatpush1.bf16.msra.mxu0 %v3190
        %3684 = vmatprep.subr.bf16.mxu0 %v3195
        %3685 = vmatpush1.bf16.msra.mxu0 %v3194
        %3686 = vmatprep.subr.bf16.mxu0 %v3199
        %3687 = vmatpush1.bf16.msra.mxu0 %v3198
        %3688 = vmatprep.subr.bf16.mxu0 %v3203
        %3689 = vmatpush1.bf16.msra.mxu0 %v3202
        %3690 = vmatprep.subr.bf16.mxu0 %v3207
        %3691 = vmatpush1.bf16.msra.mxu0 %v3206
        %3692 = vmatprep.subr.bf16.mxu0 %v3211
        %3693 = vmatpush1.bf16.msra.mxu0 %v3210
        %3694 = vmatprep.mubr.bf16.mxu0 %v2025
        %3695 = vmatmul.mubr.bf16.gmra.mrb[0].mxu0 %v2024
        %v3696 = vpop.f32.mrb[0].mxu0
        %v3697 = vadd.f32 %v2365, %v3696
        %v3698 = vpop.f32.mrb[0].mxu0
        %v3699 = vadd.f32 %v2369, %v3698
        %v3700 = vpop.f32.mrb[0].mxu0
        %v3701 = vadd.f32 %v2365, %v3700
        %v3702 = vpop.f32.mrb[0].mxu0
        %v3703 = vadd.f32 %v2369, %v3702
        %3704 = vmatprep.mubr.bf16.mxu0 %v2033
        %3705 = vmatmul.mubr.bf16.gmra.mrb[0].mxu0 %v2032
        %v3706 = vpop.f32.mrb[0].mxu0
        %v3707 = vadd.f32 %v2365, %v3706
        %v3708 = vpop.f32.mrb[0].mxu0
        %v3709 = vadd.f32 %v2369, %v3708
        %v3710 = vpop.f32.mrb[0].mxu0
        %v3711 = vadd.f32 %v2365, %v3710
        %v3712 = vpop.f32.mrb[0].mxu0
        %v3713 = vadd.f32 %v2369, %v3712
        %3714 = vmatprep.mubr.bf16.mxu0 %v2041
        %3715 = vmatmul.mubr.bf16.gmra.mrb[0].mxu0 %v2040
        %v3716 = vpop.f32.mrb[0].mxu0
        %v3717 = vadd.f32 %v2365, %v3716
        %v3718 = vpop.f32.mrb[0].mxu0
        %v3719 = vadd.f32 %v2369, %v3718
        %v3720 = vpop.f32.mrb[0].mxu0
        %v3721 = vadd.f32 %v2365, %v3720
        %v3722 = vpop.f32.mrb[0].mxu0
        %v3723 = vadd.f32 %v2369, %v3722
        %3724 = vmatprep.mubr.bf16.mxu0 %v2049
        %3725 = vmatmul.mubr.bf16.gmra.mrb[0].mxu0 %v2048
        %v3726 = vpop.f32.mrb[0].mxu0
        %v3727 = vadd.f32 %v2365, %v3726
        %v3728 = vpop.f32.mrb[0].mxu0
        %v3729 = vadd.f32 %v2369, %v3728
        %v3730 = vpop.f32.mrb[0].mxu0
        %v3731 = vadd.f32 %v2365, %v3730
        %v3732 = vpop.f32.mrb[0].mxu0
        %v3733 = vadd.f32 %v2369, %v3732
        %3734 = vmatprep.mubr.bf16.mxu0 %v2057
        %3735 = vmatmul.mubr.bf16.gmra.mrb[0].mxu0 %v2056
        %v3736 = vpop.f32.mrb[0].mxu0
        %v3737 = vadd.f32 %v2365, %v3736
        %v3738 = vpop.f32.mrb[0].mxu0
        %v3739 = vadd.f32 %v2369, %v3738
        %v3740 = vpop.f32.mrb[0].mxu0
        %v3741 = vadd.f32 %v2365, %v3740
        %v3742 = vpop.f32.mrb[0].mxu0
        %v3743 = vadd.f32 %v2369, %v3742
        %3744 = vmatprep.mubr.bf16.mxu0 %v2065
        %3745 = vmatmul.mubr.bf16.gmra.mrb[0].mxu0 %v2064
        %v3746 = vpop.f32.mrb[0].mxu0
        %v3747 = vadd.f32 %v2365, %v3746
        %v3748 = vpop.f32.mrb[0].mxu0
        %v3749 = vadd.f32 %v2369, %v3748
        %v3750 = vpop.f32.mrb[0].mxu0
        %v3751 = vadd.f32 %v2365, %v3750
        %v3752 = vpop.f32.mrb[0].mxu0
        %v3753 = vadd.f32 %v2369, %v3752
        %3754 = vmatprep.mubr.bf16.mxu0 %v2073
        %3755 = vmatmul.mubr.bf16.gmra.mrb[0].mxu0 %v2072
        %v3756 = vpop.f32.mrb[0].mxu0
        %v3757 = vadd.f32 %v2365, %v3756
        %v3758 = vpop.f32.mrb[0].mxu0
        %v3759 = vadd.f32 %v2369, %v3758
        %v3760 = vpop.f32.mrb[0].mxu0
        %v3761 = vadd.f32 %v2365, %v3760
        %v3762 = vpop.f32.mrb[0].mxu0
        %v3763 = vadd.f32 %v2369, %v3762
        %3764 = vmatprep.mubr.bf16.mxu0 %v2081
        %3765 = vmatmul.mubr.bf16.gmra.mrb[0].mxu0 %v2080
        %v3766 = vpop.f32.mrb[0].mxu0
        %v3767 = vadd.f32 %v2365, %v3766
        %v3768 = vpop.f32.mrb[0].mxu0
        %v3769 = vadd.f32 %v2369, %v3768
        %v3770 = vpop.f32.mrb[0].mxu0
        %v3771 = vadd.f32 %v2365, %v3770
        %v3772 = vpop.f32.mrb[0].mxu0
        %v3773 = vadd.f32 %v2369, %v3772
        %3774 = vmatprep.mubr.bf16.mxu0 %v2089
        %3775 = vmatmul.mubr.bf16.gmra.mrb[0].mxu0 %v2088
        %v3776 = vpop.f32.mrb[0].mxu0
        %v3777 = vadd.f32 %v2365, %v3776
        %v3778 = vpop.f32.mrb[0].mxu0
        %v3779 = vadd.f32 %v2369, %v3778
        %v3780 = vpop.f32.mrb[0].mxu0
        %v3781 = vadd.f32 %v2365, %v3780
        %v3782 = vpop.f32.mrb[0].mxu0
        %v3783 = vadd.f32 %v2369, %v3782
        %3784 = vmatprep.mubr.bf16.mxu0 %v2097
        %3785 = vmatmul.mubr.bf16.gmra.mrb[0].mxu0 %v2096
        %v3786 = vpop.f32.mrb[0].mxu0
        %v3787 = vadd.f32 %v2365, %v3786
        %v3788 = vpop.f32.mrb[0].mxu0
        %v3789 = vadd.f32 %v2369, %v3788
        %v3790 = vpop.f32.mrb[0].mxu0
        %v3791 = vadd.f32 %v2365, %v3790
        %v3792 = vpop.f32.mrb[0].mxu0
        %v3793 = vadd.f32 %v2369, %v3792
        %3794 = vdwg.mxu0
        %3795 = vmatprep.subr.bf16.mxu0 %v3215
        %3796 = vmatpush1.bf16.msra.mxu0 %v3214
        %3797 = vmatprep.subr.bf16.mxu0 %v3219
        %3798 = vmatpush1.bf16.msra.mxu0 %v3218
        %3799 = vmatprep.subr.bf16.mxu0 %v3223
        %3800 = vmatpush1.bf16.msra.mxu0 %v3222
        %3801 = vmatprep.subr.bf16.mxu0 %v3227
        %3802 = vmatpush1.bf16.msra.mxu0 %v3226
        %3803 = vmatprep.subr.bf16.mxu0 %v3231
        %3804 = vmatpush1.bf16.msra.mxu0 %v3230
        %3805 = vmatprep.subr.bf16.mxu0 %v3235
        %3806 = vmatpush1.bf16.msra.mxu0 %v3234
        %3807 = vmatprep.subr.bf16.mxu0 %v3239
        %3808 = vmatpush1.bf16.msra.mxu0 %v3238
        %3809 = vmatprep.subr.bf16.mxu0 %v3243
        %3810 = vmatpush1.bf16.msra.mxu0 %v3242
        %3811 = vmatprep.subr.bf16.mxu0 %v3247
        %3812 = vmatpush1.bf16.msra.mxu0 %v3246
        %3813 = vmatprep.subr.bf16.mxu0 %v3251
        %3814 = vmatpush1.bf16.msra.mxu0 %v3250
        %3815 = vmatprep.subr.bf16.mxu0 %v3255
        %3816 = vmatpush1.bf16.msra.mxu0 %v3254
        %3817 = vmatprep.subr.bf16.mxu0 %v3259
        %3818 = vmatpush1.bf16.msra.mxu0 %v3258
        %3819 = vmatprep.subr.bf16.mxu0 %v3263
        %3820 = vmatpush1.bf16.msra.mxu0 %v3262
        %3821 = vmatprep.subr.bf16.mxu0 %v3267
        %3822 = vmatpush1.bf16.msra.mxu0 %v3266
        %3823 = vmatprep.subr.bf16.mxu0 %v3271
        %3824 = vmatpush1.bf16.msra.mxu0 %v3270
        %3825 = vmatprep.subr.bf16.mxu0 %v3275
        %3826 = vmatpush1.bf16.msra.mxu0 %v3274
        %3827 = vmatprep.mubr.bf16.mxu0 %v2027
        %3828 = vmatmul.mubr.bf16.gmra.mrb[0].mxu0 %v2026
        %v3829 = vpop.f32.mrb[0].mxu0
        %v3830 = vadd.f32 %v3697, %v3829
        %v3831 = vpop.f32.mrb[0].mxu0
        %v3832 = vadd.f32 %v3699, %v3831
        %v3833 = vpop.f32.mrb[0].mxu0
        %v3834 = vadd.f32 %v3701, %v3833
        %v3835 = vpop.f32.mrb[0].mxu0
        %v3836 = vadd.f32 %v3703, %v3835
        %3837 = vmatprep.mubr.bf16.mxu0 %v2035
        %3838 = vmatmul.mubr.bf16.gmra.mrb[0].mxu0 %v2034
        %v3839 = vpop.f32.mrb[0].mxu0
        %v3840 = vadd.f32 %v3707, %v3839
        %v3841 = vpop.f32.mrb[0].mxu0
        %v3842 = vadd.f32 %v3709, %v3841
        %v3843 = vpop.f32.mrb[0].mxu0
        %v3844 = vadd.f32 %v3711, %v3843
        %v3845 = vpop.f32.mrb[0].mxu0
        %v3846 = vadd.f32 %v3713, %v3845
        %3847 = vmatprep.mubr.bf16.mxu0 %v2043
        %3848 = vmatmul.mubr.bf16.gmra.mrb[0].mxu0 %v2042
        %v3849 = vpop.f32.mrb[0].mxu0
        %v3850 = vadd.f32 %v3717, %v3849
        %v3851 = vpop.f32.mrb[0].mxu0
        %v3852 = vadd.f32 %v3719, %v3851
        %v3853 = vpop.f32.mrb[0].mxu0
        %v3854 = vadd.f32 %v3721, %v3853
        %v3855 = vpop.f32.mrb[0].mxu0
        %v3856 = vadd.f32 %v3723, %v3855
        %3857 = vmatprep.mubr.bf16.mxu0 %v2051
        %3858 = vmatmul.mubr.bf16.gmra.mrb[0].mxu0 %v2050
        %v3859 = vpop.f32.mrb[0].mxu0
        %v3860 = vadd.f32 %v3727, %v3859
        %v3861 = vpop.f32.mrb[0].mxu0
        %v3862 = vadd.f32 %v3729, %v3861
        %v3863 = vpop.f32.mrb[0].mxu0
        %v3864 = vadd.f32 %v3731, %v3863
        %v3865 = vpop.f32.mrb[0].mxu0
        %v3866 = vadd.f32 %v3733, %v3865
        %3867 = vmatprep.mubr.bf16.mxu0 %v2059
        %3868 = vmatmul.mubr.bf16.gmra.mrb[0].mxu0 %v2058
        %v3869 = vpop.f32.mrb[0].mxu0
        %v3870 = vadd.f32 %v3737, %v3869
        %v3871 = vpop.f32.mrb[0].mxu0
        %v3872 = vadd.f32 %v3739, %v3871
        %v3873 = vpop.f32.mrb[0].mxu0
        %v3874 = vadd.f32 %v3741, %v3873
        %v3875 = vpop.f32.mrb[0].mxu0
        %v3876 = vadd.f32 %v3743, %v3875
        %3877 = vmatprep.mubr.bf16.mxu0 %v2067
        %3878 = vmatmul.mubr.bf16.gmra.mrb[0].mxu0 %v2066
        %v3879 = vpop.f32.mrb[0].mxu0
        %v3880 = vadd.f32 %v3747, %v3879
        %v3881 = vpop.f32.mrb[0].mxu0
        %v3882 = vadd.f32 %v3749, %v3881
        %v3883 = vpop.f32.mrb[0].mxu0
        %v3884 = vadd.f32 %v3751, %v3883
        %v3885 = vpop.f32.mrb[0].mxu0
        %v3886 = vadd.f32 %v3753, %v3885
        %3887 = vmatprep.mubr.bf16.mxu0 %v2075
        %3888 = vmatmul.mubr.bf16.gmra.mrb[0].mxu0 %v2074
        %v3889 = vpop.f32.mrb[0].mxu0
        %v3890 = vadd.f32 %v3757, %v3889
        %v3891 = vpop.f32.mrb[0].mxu0
        %v3892 = vadd.f32 %v3759, %v3891
        %v3893 = vpop.f32.mrb[0].mxu0
        %v3894 = vadd.f32 %v3761, %v3893
        %v3895 = vpop.f32.mrb[0].mxu0
        %v3896 = vadd.f32 %v3763, %v3895
        %3897 = vmatprep.mubr.bf16.mxu0 %v2083
        %3898 = vmatmul.mubr.bf16.gmra.mrb[0].mxu0 %v2082
        %v3899 = vpop.f32.mrb[0].mxu0
        %v3900 = vadd.f32 %v3767, %v3899
        %v3901 = vpop.f32.mrb[0].mxu0
        %v3902 = vadd.f32 %v3769, %v3901
        %v3903 = vpop.f32.mrb[0].mxu0
        %v3904 = vadd.f32 %v3771, %v3903
        %v3905 = vpop.f32.mrb[0].mxu0
        %v3906 = vadd.f32 %v3773, %v3905
        %3907 = vmatprep.mubr.bf16.mxu0 %v2091
        %3908 = vmatmul.mubr.bf16.gmra.mrb[0].mxu0 %v2090
        %v3909 = vpop.f32.mrb[0].mxu0
        %v3910 = vadd.f32 %v3777, %v3909
        %v3911 = vpop.f32.mrb[0].mxu0
        %v3912 = vadd.f32 %v3779, %v3911
        %v3913 = vpop.f32.mrb[0].mxu0
        %v3914 = vadd.f32 %v3781, %v3913
        %v3915 = vpop.f32.mrb[0].mxu0
        %v3916 = vadd.f32 %v3783, %v3915
        %3917 = vmatprep.mubr.bf16.mxu0 %v2099
        %3918 = vmatmul.mubr.bf16.gmra.mrb[0].mxu0 %v2098
        %v3919 = vpop.f32.mrb[0].mxu0
        %v3920 = vadd.f32 %v3787, %v3919
        %v3921 = vpop.f32.mrb[0].mxu0
        %v3922 = vadd.f32 %v3789, %v3921
        %v3923 = vpop.f32.mrb[0].mxu0
        %v3924 = vadd.f32 %v3791, %v3923
        %v3925 = vpop.f32.mrb[0].mxu0
        %v3926 = vadd.f32 %v3793, %v3925
        %3927 = vdwg.mxu0
        %3928 = vmatprep.subr.bf16.mxu0 %v3279
        %3929 = vmatpush1.bf16.msra.mxu0 %v3278
        %3930 = vmatprep.subr.bf16.mxu0 %v3283
        %3931 = vmatpush1.bf16.msra.mxu0 %v3282
        %3932 = vmatprep.subr.bf16.mxu0 %v3287
        %3933 = vmatpush1.bf16.msra.mxu0 %v3286
        %3934 = vmatprep.subr.bf16.mxu0 %v3291
        %3935 = vmatpush1.bf16.msra.mxu0 %v3290
        %3936 = vmatprep.subr.bf16.mxu0 %v3295
        %3937 = vmatpush1.bf16.msra.mxu0 %v3294
        %3938 = vmatprep.subr.bf16.mxu0 %v3299
        %3939 = vmatpush1.bf16.msra.mxu0 %v3298
        %3940 = vmatprep.subr.bf16.mxu0 %v3303
        %3941 = vmatpush1.bf16.msra.mxu0 %v3302
        %3942 = vmatprep.subr.bf16.mxu0 %v3307
        %3943 = vmatpush1.bf16.msra.mxu0 %v3306
        %3944 = vmatprep.subr.bf16.mxu0 %v3311
        %3945 = vmatpush1.bf16.msra.mxu0 %v3310
        %3946 = vmatprep.subr.bf16.mxu0 %v3315
        %3947 = vmatpush1.bf16.msra.mxu0 %v3314
        %3948 = vmatprep.subr.bf16.mxu0 %v3319
        %3949 = vmatpush1.bf16.msra.mxu0 %v3318
        %3950 = vmatprep.subr.bf16.mxu0 %v3323
        %3951 = vmatpush1.bf16.msra.mxu0 %v3322
        %3952 = vmatprep.subr.bf16.mxu0 %v3327
        %3953 = vmatpush1.bf16.msra.mxu0 %v3326
        %3954 = vmatprep.subr.bf16.mxu0 %v3331
        %3955 = vmatpush1.bf16.msra.mxu0 %v3330
        %3956 = vmatprep.subr.bf16.mxu0 %v3335
        %3957 = vmatpush1.bf16.msra.mxu0 %v3334
        %3958 = vmatprep.subr.bf16.mxu0 %v3339
        %3959 = vmatpush1.bf16.msra.mxu0 %v3338
        %3960 = vmatprep.mubr.bf16.mxu0 %v2029
        %3961 = vmatmul.mubr.bf16.gmra.mrb[0].mxu0 %v2028
        %v3962 = vpop.f32.mrb[0].mxu0
        %v3963 = vadd.f32 %v3830, %v3962
        %v3964 = vpop.f32.mrb[0].mxu0
        %v3965 = vadd.f32 %v3832, %v3964
        %v3966 = vpop.f32.mrb[0].mxu0
        %v3967 = vadd.f32 %v3834, %v3966
        %v3968 = vpop.f32.mrb[0].mxu0
        %v3969 = vadd.f32 %v3836, %v3968
        %3970 = vmatprep.mubr.bf16.mxu0 %v2037
        %3971 = vmatmul.mubr.bf16.gmra.mrb[0].mxu0 %v2036
        %v3972 = vpop.f32.mrb[0].mxu0
        %v3973 = vadd.f32 %v3840, %v3972
        %v3974 = vpop.f32.mrb[0].mxu0
        %v3975 = vadd.f32 %v3842, %v3974
        %v3976 = vpop.f32.mrb[0].mxu0
        %v3977 = vadd.f32 %v3844, %v3976
        %v3978 = vpop.f32.mrb[0].mxu0
        %v3979 = vadd.f32 %v3846, %v3978
        %3980 = vmatprep.mubr.bf16.mxu0 %v2045
        %3981 = vmatmul.mubr.bf16.gmra.mrb[0].mxu0 %v2044
        %v3982 = vpop.f32.mrb[0].mxu0
        %v3983 = vadd.f32 %v3850, %v3982
        %v3984 = vpop.f32.mrb[0].mxu0
        %v3985 = vadd.f32 %v3852, %v3984
        %v3986 = vpop.f32.mrb[0].mxu0
        %v3987 = vadd.f32 %v3854, %v3986
        %v3988 = vpop.f32.mrb[0].mxu0
        %v3989 = vadd.f32 %v3856, %v3988
        %3990 = vmatprep.mubr.bf16.mxu0 %v2053
        %3991 = vmatmul.mubr.bf16.gmra.mrb[0].mxu0 %v2052
        %v3992 = vpop.f32.mrb[0].mxu0
        %v3993 = vadd.f32 %v3860, %v3992
        %v3994 = vpop.f32.mrb[0].mxu0
        %v3995 = vadd.f32 %v3862, %v3994
        %v3996 = vpop.f32.mrb[0].mxu0
        %v3997 = vadd.f32 %v3864, %v3996
        %v3998 = vpop.f32.mrb[0].mxu0
        %v3999 = vadd.f32 %v3866, %v3998
        %4000 = vmatprep.mubr.bf16.mxu0 %v2061
        %4001 = vmatmul.mubr.bf16.gmra.mrb[0].mxu0 %v2060
        %v4002 = vpop.f32.mrb[0].mxu0
        %v4003 = vadd.f32 %v3870, %v4002
        %v4004 = vpop.f32.mrb[0].mxu0
        %v4005 = vadd.f32 %v3872, %v4004
        %v4006 = vpop.f32.mrb[0].mxu0
        %v4007 = vadd.f32 %v3874, %v4006
        %v4008 = vpop.f32.mrb[0].mxu0
        %v4009 = vadd.f32 %v3876, %v4008
        %4010 = vmatprep.mubr.bf16.mxu0 %v2069
        %4011 = vmatmul.mubr.bf16.gmra.mrb[0].mxu0 %v2068
        %v4012 = vpop.f32.mrb[0].mxu0
        %v4013 = vadd.f32 %v3880, %v4012
        %v4014 = vpop.f32.mrb[0].mxu0
        %v4015 = vadd.f32 %v3882, %v4014
        %v4016 = vpop.f32.mrb[0].mxu0
        %v4017 = vadd.f32 %v3884, %v4016
        %v4018 = vpop.f32.mrb[0].mxu0
        %v4019 = vadd.f32 %v3886, %v4018
        %4020 = vmatprep.mubr.bf16.mxu0 %v2077
        %4021 = vmatmul.mubr.bf16.gmra.mrb[0].mxu0 %v2076
        %v4022 = vpop.f32.mrb[0].mxu0
        %v4023 = vadd.f32 %v3890, %v4022
        %v4024 = vpop.f32.mrb[0].mxu0
        %v4025 = vadd.f32 %v3892, %v4024
        %v4026 = vpop.f32.mrb[0].mxu0
        %v4027 = vadd.f32 %v3894, %v4026
        %v4028 = vpop.f32.mrb[0].mxu0
        %v4029 = vadd.f32 %v3896, %v4028
        %4030 = vmatprep.mubr.bf16.mxu0 %v2085
        %4031 = vmatmul.mubr.bf16.gmra.mrb[0].mxu0 %v2084
        %v4032 = vpop.f32.mrb[0].mxu0
        %v4033 = vadd.f32 %v3900, %v4032
        %v4034 = vpop.f32.mrb[0].mxu0
        %v4035 = vadd.f32 %v3902, %v4034
        %v4036 = vpop.f32.mrb[0].mxu0
        %v4037 = vadd.f32 %v3904, %v4036
        %v4038 = vpop.f32.mrb[0].mxu0
        %v4039 = vadd.f32 %v3906, %v4038
        %4040 = vmatprep.mubr.bf16.mxu0 %v2093
        %4041 = vmatmul.mubr.bf16.gmra.mrb[0].mxu0 %v2092
        %v4042 = vpop.f32.mrb[0].mxu0
        %v4043 = vadd.f32 %v3910, %v4042
        %v4044 = vpop.f32.mrb[0].mxu0
        %v4045 = vadd.f32 %v3912, %v4044
        %v4046 = vpop.f32.mrb[0].mxu0
        %v4047 = vadd.f32 %v3914, %v4046
        %v4048 = vpop.f32.mrb[0].mxu0
        %v4049 = vadd.f32 %v3916, %v4048
        %4050 = vmatprep.mubr.bf16.mxu0 %v2101
        %4051 = vmatmul.mubr.bf16.gmra.mrb[0].mxu0 %v2100
        %v4052 = vpop.f32.mrb[0].mxu0
        %v4053 = vadd.f32 %v3920, %v4052
        %v4054 = vpop.f32.mrb[0].mxu0
        %v4055 = vadd.f32 %v3922, %v4054
        %v4056 = vpop.f32.mrb[0].mxu0
        %v4057 = vadd.f32 %v3924, %v4056
        %v4058 = vpop.f32.mrb[0].mxu0
        %v4059 = vadd.f32 %v3926, %v4058
        %4060 = vdwg.mxu0
        %4061 = vmatprep.subr.bf16.mxu0 %v3343
        %4062 = vmatpush1.bf16.msra.mxu0 %v3342
        %4063 = vmatprep.subr.bf16.mxu0 %v3347
        %4064 = vmatpush1.bf16.msra.mxu0 %v3346
        %4065 = vmatprep.subr.bf16.mxu0 %v3351
        %4066 = vmatpush1.bf16.msra.mxu0 %v3350
        %4067 = vmatprep.subr.bf16.mxu0 %v3355
        %4068 = vmatpush1.bf16.msra.mxu0 %v3354
        %4069 = vmatprep.subr.bf16.mxu0 %v3359
        %4070 = vmatpush1.bf16.msra.mxu0 %v3358
        %4071 = vmatprep.subr.bf16.mxu0 %v3363
        %4072 = vmatpush1.bf16.msra.mxu0 %v3362
        %4073 = vmatprep.subr.bf16.mxu0 %v3367
        %4074 = vmatpush1.bf16.msra.mxu0 %v3366
        %4075 = vmatprep.subr.bf16.mxu0 %v3371
        %4076 = vmatpush1.bf16.msra.mxu0 %v3370
        %4077 = vmatprep.subr.bf16.mxu0 %v3375
        %4078 = vmatpush1.bf16.msra.mxu0 %v3374
        %4079 = vmatprep.subr.bf16.mxu0 %v3379
        %4080 = vmatpush1.bf16.msra.mxu0 %v3378
        %4081 = vmatprep.subr.bf16.mxu0 %v3383
        %4082 = vmatpush1.bf16.msra.mxu0 %v3382
        %4083 = vmatprep.subr.bf16.mxu0 %v3387
        %4084 = vmatpush1.bf16.msra.mxu0 %v3386
        %4085 = vmatprep.subr.bf16.mxu0 %v3391
        %4086 = vmatpush1.bf16.msra.mxu0 %v3390
        %4087 = vmatprep.subr.bf16.mxu0 %v3395
        %4088 = vmatpush1.bf16.msra.mxu0 %v3394
        %4089 = vmatprep.subr.bf16.mxu0 %v3399
        %4090 = vmatpush1.bf16.msra.mxu0 %v3398
        %4091 = vmatprep.subr.bf16.mxu0 %v3403
        %4092 = vmatpush1.bf16.msra.mxu0 %v3402
        %4093 = vmatprep.mubr.bf16.mxu0 %v2031
        %4094 = vmatmul.mubr.bf16.gmra.mrb[0].mxu0 %v2030
        %v4095 = vpop.f32.mrb[0].mxu0
        %v4096 = vadd.f32 %v3963, %v4095
        %v4097 = vpop.f32.mrb[0].mxu0
        %v4098 = vadd.f32 %v3965, %v4097
        %v4099 = vpop.f32.mrb[0].mxu0
        %v4100 = vadd.f32 %v3967, %v4099
        %v4101 = vpop.f32.mrb[0].mxu0
        %v4102 = vadd.f32 %v3969, %v4101
        %4103 = vmatprep.mubr.bf16.mxu0 %v2039
        %4104 = vmatmul.mubr.bf16.gmra.mrb[0].mxu0 %v2038
        %v4105 = vpop.f32.mrb[0].mxu0
        %v4106 = vadd.f32 %v3973, %v4105
        %v4107 = vpop.f32.mrb[0].mxu0
        %v4108 = vadd.f32 %v3975, %v4107
        %v4109 = vpop.f32.mrb[0].mxu0
        %v4110 = vadd.f32 %v3977, %v4109
        %v4111 = vpop.f32.mrb[0].mxu0
        %v4112 = vadd.f32 %v3979, %v4111
        %4113 = vmatprep.mubr.bf16.mxu0 %v2047
        %4114 = vmatmul.mubr.bf16.gmra.mrb[0].mxu0 %v2046
        %v4115 = vpop.f32.mrb[0].mxu0
        %v4116 = vadd.f32 %v3983, %v4115
        %v4117 = vpop.f32.mrb[0].mxu0
        %v4118 = vadd.f32 %v3985, %v4117
        %v4119 = vpop.f32.mrb[0].mxu0
        %v4120 = vadd.f32 %v3987, %v4119
        %v4121 = vpop.f32.mrb[0].mxu0
        %v4122 = vadd.f32 %v3989, %v4121
        %4123 = vmatprep.mubr.bf16.mxu0 %v2055
        %4124 = vmatmul.mubr.bf16.gmra.mrb[0].mxu0 %v2054
        %v4125 = vpop.f32.mrb[0].mxu0
        %v4126 = vadd.f32 %v3993, %v4125
        %v4127 = vpop.f32.mrb[0].mxu0
        %v4128 = vadd.f32 %v3995, %v4127
        %v4129 = vpop.f32.mrb[0].mxu0
        %v4130 = vadd.f32 %v3997, %v4129
        %v4131 = vpop.f32.mrb[0].mxu0
        %v4132 = vadd.f32 %v3999, %v4131
        %4133 = vmatprep.mubr.bf16.mxu0 %v2063
        %4134 = vmatmul.mubr.bf16.gmra.mrb[0].mxu0 %v2062
        %v4135 = vpop.f32.mrb[0].mxu0
        %v4136 = vadd.f32 %v4003, %v4135
        %v4137 = vpop.f32.mrb[0].mxu0
        %v4138 = vadd.f32 %v4005, %v4137
        %v4139 = vpop.f32.mrb[0].mxu0
        %v4140 = vadd.f32 %v4007, %v4139
        %v4141 = vpop.f32.mrb[0].mxu0
        %v4142 = vadd.f32 %v4009, %v4141
        %4143 = vmatprep.mubr.bf16.mxu0 %v2071
        %4144 = vmatmul.mubr.bf16.gmra.mrb[0].mxu0 %v2070
        %v4145 = vpop.f32.mrb[0].mxu0
        %v4146 = vadd.f32 %v4013, %v4145
        %v4147 = vpop.f32.mrb[0].mxu0
        %v4148 = vadd.f32 %v4015, %v4147
        %v4149 = vpop.f32.mrb[0].mxu0
        %v4150 = vadd.f32 %v4017, %v4149
        %v4151 = vpop.f32.mrb[0].mxu0
        %v4152 = vadd.f32 %v4019, %v4151
        %4153 = vmatprep.mubr.bf16.mxu0 %v2079
        %4154 = vmatmul.mubr.bf16.gmra.mrb[0].mxu0 %v2078
        %v4155 = vpop.f32.mrb[0].mxu0
        %v4156 = vadd.f32 %v4023, %v4155
        %v4157 = vpop.f32.mrb[0].mxu0
        %v4158 = vadd.f32 %v4025, %v4157
        %v4159 = vpop.f32.mrb[0].mxu0
        %v4160 = vadd.f32 %v4027, %v4159
        %v4161 = vpop.f32.mrb[0].mxu0
        %v4162 = vadd.f32 %v4029, %v4161
        %4163 = vmatprep.mubr.bf16.mxu0 %v2087
        %4164 = vmatmul.mubr.bf16.gmra.mrb[0].mxu0 %v2086
        %v4165 = vpop.f32.mrb[0].mxu0
        %v4166 = vadd.f32 %v4033, %v4165
        %v4167 = vpop.f32.mrb[0].mxu0
        %v4168 = vadd.f32 %v4035, %v4167
        %v4169 = vpop.f32.mrb[0].mxu0
        %v4170 = vadd.f32 %v4037, %v4169
        %v4171 = vpop.f32.mrb[0].mxu0
        %v4172 = vadd.f32 %v4039, %v4171
        %4173 = vmatprep.mubr.bf16.mxu0 %v2095
        %4174 = vmatmul.mubr.bf16.gmra.mrb[0].mxu0 %v2094
        %v4175 = vpop.f32.mrb[0].mxu0
        %v4176 = vadd.f32 %v4043, %v4175
        %v4177 = vpop.f32.mrb[0].mxu0
        %v4178 = vadd.f32 %v4045, %v4177
        %v4179 = vpop.f32.mrb[0].mxu0
        %v4180 = vadd.f32 %v4047, %v4179
        %v4181 = vpop.f32.mrb[0].mxu0
        %v4182 = vadd.f32 %v4049, %v4181
        %4183 = vmatprep.mubr.bf16.mxu0 %v2103
        %4184 = vmatmul.mubr.bf16.gmra.mrb[0].mxu0 %v2102
        %v4185 = vpop.f32.mrb[0].mxu0
        %v4186 = vadd.f32 %v4053, %v4185
        %v4187 = vpop.f32.mrb[0].mxu0
        %v4188 = vadd.f32 %v4055, %v4187
        %v4189 = vpop.f32.mrb[0].mxu0
        %v4190 = vadd.f32 %v4057, %v4189
        %v4191 = vpop.f32.mrb[0].mxu0
        %v4192 = vadd.f32 %v4059, %v4191
        %4193 = vdwg.mxu0
        %4194 = vmatprep.subr.bf16.mxu0 %v3153
        %4195 = vmatpush1.bf16.msra.mxu0 %v3152
        %4196 = vmatprep.subr.bf16.mxu0 %v3157
        %4197 = vmatpush1.bf16.msra.mxu0 %v3156
        %4198 = vmatprep.subr.bf16.mxu0 %v3161
        %4199 = vmatpush1.bf16.msra.mxu0 %v3160
        %4200 = vmatprep.subr.bf16.mxu0 %v3165
        %4201 = vmatpush1.bf16.msra.mxu0 %v3164
        %4202 = vmatprep.subr.bf16.mxu0 %v3169
        %4203 = vmatpush1.bf16.msra.mxu0 %v3168
        %4204 = vmatprep.subr.bf16.mxu0 %v3173
        %4205 = vmatpush1.bf16.msra.mxu0 %v3172
        %4206 = vmatprep.subr.bf16.mxu0 %v3177
        %4207 = vmatpush1.bf16.msra.mxu0 %v3176
        %4208 = vmatprep.subr.bf16.mxu0 %v3181
        %4209 = vmatpush1.bf16.msra.mxu0 %v3180
        %4210 = vmatprep.subr.bf16.mxu0 %v3185
        %4211 = vmatpush1.bf16.msra.mxu0 %v3184
        %4212 = vmatprep.subr.bf16.mxu0 %v3189
        %4213 = vmatpush1.bf16.msra.mxu0 %v3188
        %4214 = vmatprep.subr.bf16.mxu0 %v3193
        %4215 = vmatpush1.bf16.msra.mxu0 %v3192
        %4216 = vmatprep.subr.bf16.mxu0 %v3197
        %4217 = vmatpush1.bf16.msra.mxu0 %v3196
        %4218 = vmatprep.subr.bf16.mxu0 %v3201
        %4219 = vmatpush1.bf16.msra.mxu0 %v3200
        %4220 = vmatprep.subr.bf16.mxu0 %v3205
        %4221 = vmatpush1.bf16.msra.mxu0 %v3204
        %4222 = vmatprep.subr.bf16.mxu0 %v3209
        %4223 = vmatpush1.bf16.msra.mxu0 %v3208
        %4224 = vmatprep.subr.bf16.mxu0 %v3213
        %4225 = vmatpush1.bf16.msra.mxu0 %v3212
        %4226 = vmatprep.mubr.bf16.mxu0 %v2025
        %4227 = vmatmul.mubr.bf16.gmra.mrb[0].mxu0 %v2024
        %v4228 = vpop.f32.mrb[0].mxu0
        %v4229 = vadd.f32 %v2373, %v4228
        %v4230 = vpop.f32.mrb[0].mxu0
        %v4231 = vadd.f32 %v2377, %v4230
        %v4232 = vpop.f32.mrb[0].mxu0
        %v4233 = vadd.f32 %v2373, %v4232
        %v4234 = vpop.f32.mrb[0].mxu0
        %v4235 = vadd.f32 %v2377, %v4234
        %4236 = vmatprep.mubr.bf16.mxu0 %v2033
        %4237 = vmatmul.mubr.bf16.gmra.mrb[0].mxu0 %v2032
        %v4238 = vpop.f32.mrb[0].mxu0
        %v4239 = vadd.f32 %v2373, %v4238
        %v4240 = vpop.f32.mrb[0].mxu0
        %v4241 = vadd.f32 %v2377, %v4240
        %v4242 = vpop.f32.mrb[0].mxu0
        %v4243 = vadd.f32 %v2373, %v4242
        %v4244 = vpop.f32.mrb[0].mxu0
        %v4245 = vadd.f32 %v2377, %v4244
        %4246 = vmatprep.mubr.bf16.mxu0 %v2041
        %4247 = vmatmul.mubr.bf16.gmra.mrb[0].mxu0 %v2040
        %v4248 = vpop.f32.mrb[0].mxu0
        %v4249 = vadd.f32 %v2373, %v4248
        %v4250 = vpop.f32.mrb[0].mxu0
        %v4251 = vadd.f32 %v2377, %v4250
        %v4252 = vpop.f32.mrb[0].mxu0
        %v4253 = vadd.f32 %v2373, %v4252
        %v4254 = vpop.f32.mrb[0].mxu0
        %v4255 = vadd.f32 %v2377, %v4254
        %4256 = vmatprep.mubr.bf16.mxu0 %v2049
        %4257 = vmatmul.mubr.bf16.gmra.mrb[0].mxu0 %v2048
        %v4258 = vpop.f32.mrb[0].mxu0
        %v4259 = vadd.f32 %v2373, %v4258
        %v4260 = vpop.f32.mrb[0].mxu0
        %v4261 = vadd.f32 %v2377, %v4260
        %v4262 = vpop.f32.mrb[0].mxu0
        %v4263 = vadd.f32 %v2373, %v4262
        %v4264 = vpop.f32.mrb[0].mxu0
        %v4265 = vadd.f32 %v2377, %v4264
        %4266 = vmatprep.mubr.bf16.mxu0 %v2057
        %4267 = vmatmul.mubr.bf16.gmra.mrb[0].mxu0 %v2056
        %v4268 = vpop.f32.mrb[0].mxu0
        %v4269 = vadd.f32 %v2373, %v4268
        %v4270 = vpop.f32.mrb[0].mxu0
        %v4271 = vadd.f32 %v2377, %v4270
        %v4272 = vpop.f32.mrb[0].mxu0
        %v4273 = vadd.f32 %v2373, %v4272
        %v4274 = vpop.f32.mrb[0].mxu0
        %v4275 = vadd.f32 %v2377, %v4274
        %4276 = vmatprep.mubr.bf16.mxu0 %v2065
        %4277 = vmatmul.mubr.bf16.gmra.mrb[0].mxu0 %v2064
        %v4278 = vpop.f32.mrb[0].mxu0
        %v4279 = vadd.f32 %v2373, %v4278
        %v4280 = vpop.f32.mrb[0].mxu0
        %v4281 = vadd.f32 %v2377, %v4280
        %v4282 = vpop.f32.mrb[0].mxu0
        %v4283 = vadd.f32 %v2373, %v4282
        %v4284 = vpop.f32.mrb[0].mxu0
        %v4285 = vadd.f32 %v2377, %v4284
        %4286 = vmatprep.mubr.bf16.mxu0 %v2073
        %4287 = vmatmul.mubr.bf16.gmra.mrb[0].mxu0 %v2072
        %v4288 = vpop.f32.mrb[0].mxu0
        %v4289 = vadd.f32 %v2373, %v4288
        %v4290 = vpop.f32.mrb[0].mxu0
        %v4291 = vadd.f32 %v2377, %v4290
        %v4292 = vpop.f32.mrb[0].mxu0
        %v4293 = vadd.f32 %v2373, %v4292
        %v4294 = vpop.f32.mrb[0].mxu0
        %v4295 = vadd.f32 %v2377, %v4294
        %4296 = vmatprep.mubr.bf16.mxu0 %v2081
        %4297 = vmatmul.mubr.bf16.gmra.mrb[0].mxu0 %v2080
        %v4298 = vpop.f32.mrb[0].mxu0
        %v4299 = vadd.f32 %v2373, %v4298
        %v4300 = vpop.f32.mrb[0].mxu0
        %v4301 = vadd.f32 %v2377, %v4300
        %v4302 = vpop.f32.mrb[0].mxu0
        %v4303 = vadd.f32 %v2373, %v4302
        %v4304 = vpop.f32.mrb[0].mxu0
        %v4305 = vadd.f32 %v2377, %v4304
        %4306 = vmatprep.mubr.bf16.mxu0 %v2089
        %4307 = vmatmul.mubr.bf16.gmra.mrb[0].mxu0 %v2088
        %v4308 = vpop.f32.mrb[0].mxu0
        %v4309 = vadd.f32 %v2373, %v4308
        %v4310 = vpop.f32.mrb[0].mxu0
        %v4311 = vadd.f32 %v2377, %v4310
        %v4312 = vpop.f32.mrb[0].mxu0
        %v4313 = vadd.f32 %v2373, %v4312
        %v4314 = vpop.f32.mrb[0].mxu0
        %v4315 = vadd.f32 %v2377, %v4314
        %4316 = vmatprep.mubr.bf16.mxu0 %v2097
        %4317 = vmatmul.mubr.bf16.gmra.mrb[0].mxu0 %v2096
        %v4318 = vpop.f32.mrb[0].mxu0
        %v4319 = vadd.f32 %v2373, %v4318
        %v4320 = vpop.f32.mrb[0].mxu0
        %v4321 = vadd.f32 %v2377, %v4320
        %v4322 = vpop.f32.mrb[0].mxu0
        %v4323 = vadd.f32 %v2373, %v4322
        %v4324 = vpop.f32.mrb[0].mxu0
        %v4325 = vadd.f32 %v2377, %v4324
        %4326 = vdwg.mxu0
        %4327 = vmatprep.subr.bf16.mxu0 %v3217
        %4328 = vmatpush1.bf16.msra.mxu0 %v3216
        %4329 = vmatprep.subr.bf16.mxu0 %v3221
        %4330 = vmatpush1.bf16.msra.mxu0 %v3220
        %4331 = vmatprep.subr.bf16.mxu0 %v3225
        %4332 = vmatpush1.bf16.msra.mxu0 %v3224
        %4333 = vmatprep.subr.bf16.mxu0 %v3229
        %4334 = vmatpush1.bf16.msra.mxu0 %v3228
        %4335 = vmatprep.subr.bf16.mxu0 %v3233
        %4336 = vmatpush1.bf16.msra.mxu0 %v3232
        %4337 = vmatprep.subr.bf16.mxu0 %v3237
        %4338 = vmatpush1.bf16.msra.mxu0 %v3236
        %4339 = vmatprep.subr.bf16.mxu0 %v3241
        %4340 = vmatpush1.bf16.msra.mxu0 %v3240
        %4341 = vmatprep.subr.bf16.mxu0 %v3245
        %4342 = vmatpush1.bf16.msra.mxu0 %v3244
        %4343 = vmatprep.subr.bf16.mxu0 %v3249
        %4344 = vmatpush1.bf16.msra.mxu0 %v3248
        %4345 = vmatprep.subr.bf16.mxu0 %v3253
        %4346 = vmatpush1.bf16.msra.mxu0 %v3252
        %4347 = vmatprep.subr.bf16.mxu0 %v3257
        %4348 = vmatpush1.bf16.msra.mxu0 %v3256
        %4349 = vmatprep.subr.bf16.mxu0 %v3261
        %4350 = vmatpush1.bf16.msra.mxu0 %v3260
        %4351 = vmatprep.subr.bf16.mxu0 %v3265
        %4352 = vmatpush1.bf16.msra.mxu0 %v3264
        %4353 = vmatprep.subr.bf16.mxu0 %v3269
        %4354 = vmatpush1.bf16.msra.mxu0 %v3268
        %4355 = vmatprep.subr.bf16.mxu0 %v3273
        %4356 = vmatpush1.bf16.msra.mxu0 %v3272
        %4357 = vmatprep.subr.bf16.mxu0 %v3277
        %4358 = vmatpush1.bf16.msra.mxu0 %v3276
        %4359 = vmatprep.mubr.bf16.mxu0 %v2027
        %4360 = vmatmul.mubr.bf16.gmra.mrb[0].mxu0 %v2026
        %v4361 = vpop.f32.mrb[0].mxu0
        %v4362 = vadd.f32 %v4229, %v4361
        %v4363 = vpop.f32.mrb[0].mxu0
        %v4364 = vadd.f32 %v4231, %v4363
        %v4365 = vpop.f32.mrb[0].mxu0
        %v4366 = vadd.f32 %v4233, %v4365
        %v4367 = vpop.f32.mrb[0].mxu0
        %v4368 = vadd.f32 %v4235, %v4367
        %4369 = vmatprep.mubr.bf16.mxu0 %v2035
        %4370 = vmatmul.mubr.bf16.gmra.mrb[0].mxu0 %v2034
        %v4371 = vpop.f32.mrb[0].mxu0
        %v4372 = vadd.f32 %v4239, %v4371
        %v4373 = vpop.f32.mrb[0].mxu0
        %v4374 = vadd.f32 %v4241, %v4373
        %v4375 = vpop.f32.mrb[0].mxu0
        %v4376 = vadd.f32 %v4243, %v4375
        %v4377 = vpop.f32.mrb[0].mxu0
        %v4378 = vadd.f32 %v4245, %v4377
        %4379 = vmatprep.mubr.bf16.mxu0 %v2043
        %4380 = vmatmul.mubr.bf16.gmra.mrb[0].mxu0 %v2042
        %v4381 = vpop.f32.mrb[0].mxu0
        %v4382 = vadd.f32 %v4249, %v4381
        %v4383 = vpop.f32.mrb[0].mxu0
        %v4384 = vadd.f32 %v4251, %v4383
        %v4385 = vpop.f32.mrb[0].mxu0
        %v4386 = vadd.f32 %v4253, %v4385
        %v4387 = vpop.f32.mrb[0].mxu0
        %v4388 = vadd.f32 %v4255, %v4387
        %4389 = vmatprep.mubr.bf16.mxu0 %v2051
        %4390 = vmatmul.mubr.bf16.gmra.mrb[0].mxu0 %v2050
        %v4391 = vpop.f32.mrb[0].mxu0
        %v4392 = vadd.f32 %v4259, %v4391
        %v4393 = vpop.f32.mrb[0].mxu0
        %v4394 = vadd.f32 %v4261, %v4393
        %v4395 = vpop.f32.mrb[0].mxu0
        %v4396 = vadd.f32 %v4263, %v4395
        %v4397 = vpop.f32.mrb[0].mxu0
        %v4398 = vadd.f32 %v4265, %v4397
        %4399 = vmatprep.mubr.bf16.mxu0 %v2059
        %4400 = vmatmul.mubr.bf16.gmra.mrb[0].mxu0 %v2058
        %v4401 = vpop.f32.mrb[0].mxu0
        %v4402 = vadd.f32 %v4269, %v4401
        %v4403 = vpop.f32.mrb[0].mxu0
        %v4404 = vadd.f32 %v4271, %v4403
        %v4405 = vpop.f32.mrb[0].mxu0
        %v4406 = vadd.f32 %v4273, %v4405
        %v4407 = vpop.f32.mrb[0].mxu0
        %v4408 = vadd.f32 %v4275, %v4407
        %4409 = vmatprep.mubr.bf16.mxu0 %v2067
        %4410 = vmatmul.mubr.bf16.gmra.mrb[0].mxu0 %v2066
        %v4411 = vpop.f32.mrb[0].mxu0
        %v4412 = vadd.f32 %v4279, %v4411
        %v4413 = vpop.f32.mrb[0].mxu0
        %v4414 = vadd.f32 %v4281, %v4413
        %v4415 = vpop.f32.mrb[0].mxu0
        %v4416 = vadd.f32 %v4283, %v4415
        %v4417 = vpop.f32.mrb[0].mxu0
        %v4418 = vadd.f32 %v4285, %v4417
        %4419 = vmatprep.mubr.bf16.mxu0 %v2075
        %4420 = vmatmul.mubr.bf16.gmra.mrb[0].mxu0 %v2074
        %v4421 = vpop.f32.mrb[0].mxu0
        %v4422 = vadd.f32 %v4289, %v4421
        %v4423 = vpop.f32.mrb[0].mxu0
        %v4424 = vadd.f32 %v4291, %v4423
        %v4425 = vpop.f32.mrb[0].mxu0
        %v4426 = vadd.f32 %v4293, %v4425
        %v4427 = vpop.f32.mrb[0].mxu0
        %v4428 = vadd.f32 %v4295, %v4427
        %4429 = vmatprep.mubr.bf16.mxu0 %v2083
        %4430 = vmatmul.mubr.bf16.gmra.mrb[0].mxu0 %v2082
        %v4431 = vpop.f32.mrb[0].mxu0
        %v4432 = vadd.f32 %v4299, %v4431
        %v4433 = vpop.f32.mrb[0].mxu0
        %v4434 = vadd.f32 %v4301, %v4433
        %v4435 = vpop.f32.mrb[0].mxu0
        %v4436 = vadd.f32 %v4303, %v4435
        %v4437 = vpop.f32.mrb[0].mxu0
        %v4438 = vadd.f32 %v4305, %v4437
        %4439 = vmatprep.mubr.bf16.mxu0 %v2091
        %4440 = vmatmul.mubr.bf16.gmra.mrb[0].mxu0 %v2090
        %v4441 = vpop.f32.mrb[0].mxu0
        %v4442 = vadd.f32 %v4309, %v4441
        %v4443 = vpop.f32.mrb[0].mxu0
        %v4444 = vadd.f32 %v4311, %v4443
        %v4445 = vpop.f32.mrb[0].mxu0
        %v4446 = vadd.f32 %v4313, %v4445
        %v4447 = vpop.f32.mrb[0].mxu0
        %v4448 = vadd.f32 %v4315, %v4447
        %4449 = vmatprep.mubr.bf16.mxu0 %v2099
        %4450 = vmatmul.mubr.bf16.gmra.mrb[0].mxu0 %v2098
        %v4451 = vpop.f32.mrb[0].mxu0
        %v4452 = vadd.f32 %v4319, %v4451
        %v4453 = vpop.f32.mrb[0].mxu0
        %v4454 = vadd.f32 %v4321, %v4453
        %v4455 = vpop.f32.mrb[0].mxu0
        %v4456 = vadd.f32 %v4323, %v4455
        %v4457 = vpop.f32.mrb[0].mxu0
        %v4458 = vadd.f32 %v4325, %v4457
        %4459 = vdwg.mxu0
        %4460 = vmatprep.subr.bf16.mxu0 %v3281
        %4461 = vmatpush1.bf16.msra.mxu0 %v3280
        %4462 = vmatprep.subr.bf16.mxu0 %v3285
        %4463 = vmatpush1.bf16.msra.mxu0 %v3284
        %4464 = vmatprep.subr.bf16.mxu0 %v3289
        %4465 = vmatpush1.bf16.msra.mxu0 %v3288
        %4466 = vmatprep.subr.bf16.mxu0 %v3293
        %4467 = vmatpush1.bf16.msra.mxu0 %v3292
        %4468 = vmatprep.subr.bf16.mxu0 %v3297
        %4469 = vmatpush1.bf16.msra.mxu0 %v3296
        %4470 = vmatprep.subr.bf16.mxu0 %v3301
        %4471 = vmatpush1.bf16.msra.mxu0 %v3300
        %4472 = vmatprep.subr.bf16.mxu0 %v3305
        %4473 = vmatpush1.bf16.msra.mxu0 %v3304
        %4474 = vmatprep.subr.bf16.mxu0 %v3309
        %4475 = vmatpush1.bf16.msra.mxu0 %v3308
        %4476 = vmatprep.subr.bf16.mxu0 %v3313
        %4477 = vmatpush1.bf16.msra.mxu0 %v3312
        %4478 = vmatprep.subr.bf16.mxu0 %v3317
        %4479 = vmatpush1.bf16.msra.mxu0 %v3316
        %4480 = vmatprep.subr.bf16.mxu0 %v3321
        %4481 = vmatpush1.bf16.msra.mxu0 %v3320
        %4482 = vmatprep.subr.bf16.mxu0 %v3325
        %4483 = vmatpush1.bf16.msra.mxu0 %v3324
        %4484 = vmatprep.subr.bf16.mxu0 %v3329
        %4485 = vmatpush1.bf16.msra.mxu0 %v3328
        %4486 = vmatprep.subr.bf16.mxu0 %v3333
        %4487 = vmatpush1.bf16.msra.mxu0 %v3332
        %4488 = vmatprep.subr.bf16.mxu0 %v3337
        %4489 = vmatpush1.bf16.msra.mxu0 %v3336
        %4490 = vmatprep.subr.bf16.mxu0 %v3341
        %4491 = vmatpush1.bf16.msra.mxu0 %v3340
        %4492 = vmatprep.mubr.bf16.mxu0 %v2029
        %4493 = vmatmul.mubr.bf16.gmra.mrb[0].mxu0 %v2028
        %v4494 = vpop.f32.mrb[0].mxu0
        %v4495 = vadd.f32 %v4362, %v4494
        %v4496 = vpop.f32.mrb[0].mxu0
        %v4497 = vadd.f32 %v4364, %v4496
        %v4498 = vpop.f32.mrb[0].mxu0
        %v4499 = vadd.f32 %v4366, %v4498
        %v4500 = vpop.f32.mrb[0].mxu0
        %v4501 = vadd.f32 %v4368, %v4500
        %4502 = vmatprep.mubr.bf16.mxu0 %v2037
        %4503 = vmatmul.mubr.bf16.gmra.mrb[0].mxu0 %v2036
        %v4504 = vpop.f32.mrb[0].mxu0
        %v4505 = vadd.f32 %v4372, %v4504
        %v4506 = vpop.f32.mrb[0].mxu0
        %v4507 = vadd.f32 %v4374, %v4506
        %v4508 = vpop.f32.mrb[0].mxu0
        %v4509 = vadd.f32 %v4376, %v4508
        %v4510 = vpop.f32.mrb[0].mxu0
        %v4511 = vadd.f32 %v4378, %v4510
        %4512 = vmatprep.mubr.bf16.mxu0 %v2045
        %4513 = vmatmul.mubr.bf16.gmra.mrb[0].mxu0 %v2044
        %v4514 = vpop.f32.mrb[0].mxu0
        %v4515 = vadd.f32 %v4382, %v4514
        %v4516 = vpop.f32.mrb[0].mxu0
        %v4517 = vadd.f32 %v4384, %v4516
        %v4518 = vpop.f32.mrb[0].mxu0
        %v4519 = vadd.f32 %v4386, %v4518
        %v4520 = vpop.f32.mrb[0].mxu0
        %v4521 = vadd.f32 %v4388, %v4520
        %4522 = vmatprep.mubr.bf16.mxu0 %v2053
        %4523 = vmatmul.mubr.bf16.gmra.mrb[0].mxu0 %v2052
        %v4524 = vpop.f32.mrb[0].mxu0
        %v4525 = vadd.f32 %v4392, %v4524
        %v4526 = vpop.f32.mrb[0].mxu0
        %v4527 = vadd.f32 %v4394, %v4526
        %v4528 = vpop.f32.mrb[0].mxu0
        %v4529 = vadd.f32 %v4396, %v4528
        %v4530 = vpop.f32.mrb[0].mxu0
        %v4531 = vadd.f32 %v4398, %v4530
        %4532 = vmatprep.mubr.bf16.mxu0 %v2061
        %4533 = vmatmul.mubr.bf16.gmra.mrb[0].mxu0 %v2060
        %v4534 = vpop.f32.mrb[0].mxu0
        %v4535 = vadd.f32 %v4402, %v4534
        %v4536 = vpop.f32.mrb[0].mxu0
        %v4537 = vadd.f32 %v4404, %v4536
        %v4538 = vpop.f32.mrb[0].mxu0
        %v4539 = vadd.f32 %v4406, %v4538
        %v4540 = vpop.f32.mrb[0].mxu0
        %v4541 = vadd.f32 %v4408, %v4540
        %4542 = vmatprep.mubr.bf16.mxu0 %v2069
        %4543 = vmatmul.mubr.bf16.gmra.mrb[0].mxu0 %v2068
        %v4544 = vpop.f32.mrb[0].mxu0
        %v4545 = vadd.f32 %v4412, %v4544
        %v4546 = vpop.f32.mrb[0].mxu0
        %v4547 = vadd.f32 %v4414, %v4546
        %v4548 = vpop.f32.mrb[0].mxu0
        %v4549 = vadd.f32 %v4416, %v4548
        %v4550 = vpop.f32.mrb[0].mxu0
        %v4551 = vadd.f32 %v4418, %v4550
        %4552 = vmatprep.mubr.bf16.mxu0 %v2077
        %4553 = vmatmul.mubr.bf16.gmra.mrb[0].mxu0 %v2076
        %v4554 = vpop.f32.mrb[0].mxu0
        %v4555 = vadd.f32 %v4422, %v4554
        %v4556 = vpop.f32.mrb[0].mxu0
        %v4557 = vadd.f32 %v4424, %v4556
        %v4558 = vpop.f32.mrb[0].mxu0
        %v4559 = vadd.f32 %v4426, %v4558
        %v4560 = vpop.f32.mrb[0].mxu0
        %v4561 = vadd.f32 %v4428, %v4560
        %4562 = vmatprep.mubr.bf16.mxu0 %v2085
        %4563 = vmatmul.mubr.bf16.gmra.mrb[0].mxu0 %v2084
        %v4564 = vpop.f32.mrb[0].mxu0
        %v4565 = vadd.f32 %v4432, %v4564
        %v4566 = vpop.f32.mrb[0].mxu0
        %v4567 = vadd.f32 %v4434, %v4566
        %v4568 = vpop.f32.mrb[0].mxu0
        %v4569 = vadd.f32 %v4436, %v4568
        %v4570 = vpop.f32.mrb[0].mxu0
        %v4571 = vadd.f32 %v4438, %v4570
        %4572 = vmatprep.mubr.bf16.mxu0 %v2093
        %4573 = vmatmul.mubr.bf16.gmra.mrb[0].mxu0 %v2092
        %v4574 = vpop.f32.mrb[0].mxu0
        %v4575 = vadd.f32 %v4442, %v4574
        %v4576 = vpop.f32.mrb[0].mxu0
        %v4577 = vadd.f32 %v4444, %v4576
        %v4578 = vpop.f32.mrb[0].mxu0
        %v4579 = vadd.f32 %v4446, %v4578
        %v4580 = vpop.f32.mrb[0].mxu0
        %v4581 = vadd.f32 %v4448, %v4580
        %4582 = vmatprep.mubr.bf16.mxu0 %v2101
        %4583 = vmatmul.mubr.bf16.gmra.mrb[0].mxu0 %v2100
        %v4584 = vpop.f32.mrb[0].mxu0
        %v4585 = vadd.f32 %v4452, %v4584
        %v4586 = vpop.f32.mrb[0].mxu0
        %v4587 = vadd.f32 %v4454, %v4586
        %v4588 = vpop.f32.mrb[0].mxu0
        %v4589 = vadd.f32 %v4456, %v4588
        %v4590 = vpop.f32.mrb[0].mxu0
        %v4591 = vadd.f32 %v4458, %v4590
        %4592 = vdwg.mxu0
        %4593 = vmatprep.subr.bf16.mxu0 %v3345
        %4594 = vmatpush1.bf16.msra.mxu0 %v3344
        %4595 = vmatprep.subr.bf16.mxu0 %v3349
        %4596 = vmatpush1.bf16.msra.mxu0 %v3348
        %4597 = vmatprep.subr.bf16.mxu0 %v3353
        %4598 = vmatpush1.bf16.msra.mxu0 %v3352
        %4599 = vmatprep.subr.bf16.mxu0 %v3357
        %4600 = vmatpush1.bf16.msra.mxu0 %v3356
        %4601 = vmatprep.subr.bf16.mxu0 %v3361
        %4602 = vmatpush1.bf16.msra.mxu0 %v3360
        %4603 = vmatprep.subr.bf16.mxu0 %v3365
        %4604 = vmatpush1.bf16.msra.mxu0 %v3364
        %4605 = vmatprep.subr.bf16.mxu0 %v3369
        %4606 = vmatpush1.bf16.msra.mxu0 %v3368
        %4607 = vmatprep.subr.bf16.mxu0 %v3373
        %4608 = vmatpush1.bf16.msra.mxu0 %v3372
        %4609 = vmatprep.subr.bf16.mxu0 %v3377
        %4610 = vmatpush1.bf16.msra.mxu0 %v3376
        %4611 = vmatprep.subr.bf16.mxu0 %v3381
        %4612 = vmatpush1.bf16.msra.mxu0 %v3380
        %4613 = vmatprep.subr.bf16.mxu0 %v3385
        %4614 = vmatpush1.bf16.msra.mxu0 %v3384
        %4615 = vmatprep.subr.bf16.mxu0 %v3389
        %4616 = vmatpush1.bf16.msra.mxu0 %v3388
        %4617 = vmatprep.subr.bf16.mxu0 %v3393
        %4618 = vmatpush1.bf16.msra.mxu0 %v3392
        %4619 = vmatprep.subr.bf16.mxu0 %v3397
        %4620 = vmatpush1.bf16.msra.mxu0 %v3396
        %4621 = vmatprep.subr.bf16.mxu0 %v3401
        %4622 = vmatpush1.bf16.msra.mxu0 %v3400
        %4623 = vmatprep.subr.bf16.mxu0 %v3405
        %4624 = vmatpush1.bf16.msra.mxu0 %v3404
        %4625 = vmatprep.mubr.bf16.mxu0 %v2031
        %4626 = vmatmul.mubr.bf16.gmra.mrb[0].mxu0 %v2030
        %v4627 = vpop.f32.mrb[0].mxu0
        %v4628 = vadd.f32 %v4495, %v4627
        %v4629 = vpop.f32.mrb[0].mxu0
        %v4630 = vadd.f32 %v4497, %v4629
        %v4631 = vpop.f32.mrb[0].mxu0
        %v4632 = vadd.f32 %v4499, %v4631
        %v4633 = vpop.f32.mrb[0].mxu0
        %v4634 = vadd.f32 %v4501, %v4633
        %4635 = vmatprep.mubr.bf16.mxu0 %v2039
        %4636 = vmatmul.mubr.bf16.gmra.mrb[0].mxu0 %v2038
        %v4637 = vpop.f32.mrb[0].mxu0
        %v4638 = vadd.f32 %v4505, %v4637
        %v4639 = vpop.f32.mrb[0].mxu0
        %v4640 = vadd.f32 %v4507, %v4639
        %v4641 = vpop.f32.mrb[0].mxu0
        %v4642 = vadd.f32 %v4509, %v4641
        %v4643 = vpop.f32.mrb[0].mxu0
        %v4644 = vadd.f32 %v4511, %v4643
        %4645 = vmatprep.mubr.bf16.mxu0 %v2047
        %4646 = vmatmul.mubr.bf16.gmra.mrb[0].mxu0 %v2046
        %v4647 = vpop.f32.mrb[0].mxu0
        %v4648 = vadd.f32 %v4515, %v4647
        %v4649 = vpop.f32.mrb[0].mxu0
        %v4650 = vadd.f32 %v4517, %v4649
        %v4651 = vpop.f32.mrb[0].mxu0
        %v4652 = vadd.f32 %v4519, %v4651
        %v4653 = vpop.f32.mrb[0].mxu0
        %v4654 = vadd.f32 %v4521, %v4653
        %4655 = vmatprep.mubr.bf16.mxu0 %v2055
        %4656 = vmatmul.mubr.bf16.gmra.mrb[0].mxu0 %v2054
        %v4657 = vpop.f32.mrb[0].mxu0
        %v4658 = vadd.f32 %v4525, %v4657
        %v4659 = vpop.f32.mrb[0].mxu0
        %v4660 = vadd.f32 %v4527, %v4659
        %v4661 = vpop.f32.mrb[0].mxu0
        %v4662 = vadd.f32 %v4529, %v4661
        %v4663 = vpop.f32.mrb[0].mxu0
        %v4664 = vadd.f32 %v4531, %v4663
        %4665 = vmatprep.mubr.bf16.mxu0 %v2063
        %4666 = vmatmul.mubr.bf16.gmra.mrb[0].mxu0 %v2062
        %v4667 = vpop.f32.mrb[0].mxu0
        %v4668 = vadd.f32 %v4535, %v4667
        %v4669 = vpop.f32.mrb[0].mxu0
        %v4670 = vadd.f32 %v4537, %v4669
        %v4671 = vpop.f32.mrb[0].mxu0
        %v4672 = vadd.f32 %v4539, %v4671
        %v4673 = vpop.f32.mrb[0].mxu0
        %v4674 = vadd.f32 %v4541, %v4673
        %4675 = vmatprep.mubr.bf16.mxu0 %v2071
        %4676 = vmatmul.mubr.bf16.gmra.mrb[0].mxu0 %v2070
        %v4677 = vpop.f32.mrb[0].mxu0
        %v4678 = vadd.f32 %v4545, %v4677
        %v4679 = vpop.f32.mrb[0].mxu0
        %v4680 = vadd.f32 %v4547, %v4679
        %v4681 = vpop.f32.mrb[0].mxu0
        %v4682 = vadd.f32 %v4549, %v4681
        %v4683 = vpop.f32.mrb[0].mxu0
        %v4684 = vadd.f32 %v4551, %v4683
        %4685 = vmatprep.mubr.bf16.mxu0 %v2079
        %4686 = vmatmul.mubr.bf16.gmra.mrb[0].mxu0 %v2078
        %v4687 = vpop.f32.mrb[0].mxu0
        %v4688 = vadd.f32 %v4555, %v4687
        %v4689 = vpop.f32.mrb[0].mxu0
        %v4690 = vadd.f32 %v4557, %v4689
        %v4691 = vpop.f32.mrb[0].mxu0
        %v4692 = vadd.f32 %v4559, %v4691
        %v4693 = vpop.f32.mrb[0].mxu0
        %v4694 = vadd.f32 %v4561, %v4693
        %4695 = vmatprep.mubr.bf16.mxu0 %v2087
        %4696 = vmatmul.mubr.bf16.gmra.mrb[0].mxu0 %v2086
        %v4697 = vpop.f32.mrb[0].mxu0
        %v4698 = vadd.f32 %v4565, %v4697
        %v4699 = vpop.f32.mrb[0].mxu0
        %v4700 = vadd.f32 %v4567, %v4699
        %v4701 = vpop.f32.mrb[0].mxu0
        %v4702 = vadd.f32 %v4569, %v4701
        %v4703 = vpop.f32.mrb[0].mxu0
        %v4704 = vadd.f32 %v4571, %v4703
        %4705 = vmatprep.mubr.bf16.mxu0 %v2095
        %4706 = vmatmul.mubr.bf16.gmra.mrb[0].mxu0 %v2094
        %v4707 = vpop.f32.mrb[0].mxu0
        %v4708 = vadd.f32 %v4575, %v4707
        %v4709 = vpop.f32.mrb[0].mxu0
        %v4710 = vadd.f32 %v4577, %v4709
        %v4711 = vpop.f32.mrb[0].mxu0
        %v4712 = vadd.f32 %v4579, %v4711
        %v4713 = vpop.f32.mrb[0].mxu0
        %v4714 = vadd.f32 %v4581, %v4713
        %4715 = vmatprep.mubr.bf16.mxu0 %v2103
        %4716 = vmatmul.mubr.bf16.gmra.mrb[0].mxu0 %v2102
        %v4717 = vpop.f32.mrb[0].mxu0
        %v4718 = vadd.f32 %v4585, %v4717
        %v4719 = vpop.f32.mrb[0].mxu0
        %v4720 = vadd.f32 %v4587, %v4719
        %v4721 = vpop.f32.mrb[0].mxu0
        %v4722 = vadd.f32 %v4589, %v4721
        %v4723 = vpop.f32.mrb[0].mxu0
        %v4724 = vadd.f32 %v4591, %v4723
        %4725 = vdwg.mxu0
        %v4726 = vmul.f32 %v4096, 0.01
        %v4727 = vmul.f32 %v4098, 0.01
        %v4728 = vmul.f32 %v4628, 0.01
        %v4729 = vmul.f32 %v4630, 0.01
        %v4730 = vmul.f32 %v4100, 0.01
        %v4731 = vmul.f32 %v4102, 0.01
        %v4732 = vmul.f32 %v4632, 0.01
        %v4733 = vmul.f32 %v4634, 0.01
        %v4734 = vmul.f32 %v4106, 0.01
        %v4735 = vmul.f32 %v4108, 0.01
        %v4736 = vmul.f32 %v4638, 0.01
        %v4737 = vmul.f32 %v4640, 0.01
        %v4738 = vmul.f32 %v4110, 0.01
        %v4739 = vmul.f32 %v4112, 0.01
        %v4740 = vmul.f32 %v4642, 0.01
        %v4741 = vmul.f32 %v4644, 0.01
        %v4742 = vmul.f32 %v4116, 0.01
        %v4743 = vmul.f32 %v4118, 0.01
        %v4744 = vmul.f32 %v4648, 0.01
        %v4745 = vmul.f32 %v4650, 0.01
        %v4746 = vmul.f32 %v4120, 0.01
        %v4747 = vmul.f32 %v4122, 0.01
        %v4748 = vmul.f32 %v4652, 0.01
        %v4749 = vmul.f32 %v4654, 0.01
        %v4750 = vmul.f32 %v4126, 0.01
        %v4751 = vmul.f32 %v4128, 0.01
        %v4752 = vmul.f32 %v4658, 0.01
        %v4753 = vmul.f32 %v4660, 0.01
        %v4754 = vmul.f32 %v4130, 0.01
        %v4755 = vmul.f32 %v4132, 0.01
        %v4756 = vmul.f32 %v4662, 0.01
        %v4757 = vmul.f32 %v4664, 0.01
        %v4758 = vmul.f32 %v4136, 0.01
        %v4759 = vmul.f32 %v4138, 0.01
        %v4760 = vmul.f32 %v4668, 0.01
        %v4761 = vmul.f32 %v4670, 0.01
        %v4762 = vmul.f32 %v4140, 0.01
        %v4763 = vmul.f32 %v4142, 0.01
        %v4764 = vmul.f32 %v4672, 0.01
        %v4765 = vmul.f32 %v4674, 0.01
        %v4766 = vmul.f32 %v4146, 0.01
        %v4767 = vmul.f32 %v4148, 0.01
        %v4768 = vmul.f32 %v4678, 0.01
        %v4769 = vmul.f32 %v4680, 0.01
        %v4770 = vmul.f32 %v4150, 0.01
        %v4771 = vmul.f32 %v4152, 0.01
        %v4772 = vmul.f32 %v4682, 0.01
        %v4773 = vmul.f32 %v4684, 0.01
        %v4774 = vmul.f32 %v4156, 0.01
        %v4775 = vmul.f32 %v4158, 0.01
        %v4776 = vmul.f32 %v4688, 0.01
        %v4777 = vmul.f32 %v4690, 0.01
        %v4778 = vmul.f32 %v4160, 0.01
        %v4779 = vmul.f32 %v4162, 0.01
        %v4780 = vmul.f32 %v4692, 0.01
        %v4781 = vmul.f32 %v4694, 0.01
        %v4782 = vmul.f32 %v4166, 0.01
        %v4783 = vmul.f32 %v4168, 0.01
        %v4784 = vmul.f32 %v4698, 0.01
        %v4785 = vmul.f32 %v4700, 0.01
        %v4786 = vmul.f32 %v4170, 0.01
        %v4787 = vmul.f32 %v4172, 0.01
        %v4788 = vmul.f32 %v4702, 0.01
        %v4789 = vmul.f32 %v4704, 0.01
        %v4790 = vmul.f32 %v4176, 0.01
        %v4791 = vmul.f32 %v4178, 0.01
        %v4792 = vmul.f32 %v4708, 0.01
        %v4793 = vmul.f32 %v4710, 0.01
        %v4794 = vmul.f32 %v4180, 0.01
        %v4795 = vmul.f32 %v4182, 0.01
        %v4796 = vmul.f32 %v4712, 0.01
        %v4797 = vmul.f32 %v4714, 0.01
        %v4798 = vmul.f32 %v4186, 0.01
        %v4799 = vmul.f32 %v4188, 0.01
        %v4800 = vmul.f32 %v4718, 0.01
        %v4801 = vmul.f32 %v4720, 0.01
        %v4802 = vmul.f32 %v4190, 0.01
        %v4803 = vmul.f32 %v4192, 0.01
        %v4804 = vmul.f32 %v4722, 0.01
        %v4805 = vmul.f32 %v4724, 0.01
        %v4806 = vmax.f32 %v4096, %v4726
        %v4807 = vmax.f32 %v4098, %v4727
        %v4808 = vmax.f32 %v4628, %v4728
        %v4809 = vmax.f32 %v4630, %v4729
        %v4810 = vmax.f32 %v4100, %v4730
        %v4811 = vmax.f32 %v4102, %v4731
        %v4812 = vmax.f32 %v4632, %v4732
        %v4813 = vmax.f32 %v4634, %v4733
        %v4814 = vmax.f32 %v4106, %v4734
        %v4815 = vmax.f32 %v4108, %v4735
        %v4816 = vmax.f32 %v4638, %v4736
        %v4817 = vmax.f32 %v4640, %v4737
        %v4818 = vmax.f32 %v4110, %v4738
        %v4819 = vmax.f32 %v4112, %v4739
        %v4820 = vmax.f32 %v4642, %v4740
        %v4821 = vmax.f32 %v4644, %v4741
        %v4822 = vmax.f32 %v4116, %v4742
        %v4823 = vmax.f32 %v4118, %v4743
        %v4824 = vmax.f32 %v4648, %v4744
        %v4825 = vmax.f32 %v4650, %v4745
        %v4826 = vmax.f32 %v4120, %v4746
        %v4827 = vmax.f32 %v4122, %v4747
        %v4828 = vmax.f32 %v4652, %v4748
        %v4829 = vmax.f32 %v4654, %v4749
        %v4830 = vmax.f32 %v4126, %v4750
        %v4831 = vmax.f32 %v4128, %v4751
        %v4832 = vmax.f32 %v4658, %v4752
        %v4833 = vmax.f32 %v4660, %v4753
        %v4834 = vmax.f32 %v4130, %v4754
        %v4835 = vmax.f32 %v4132, %v4755
        %v4836 = vmax.f32 %v4662, %v4756
        %v4837 = vmax.f32 %v4664, %v4757
        %v4838 = vmax.f32 %v4136, %v4758
        %v4839 = vmax.f32 %v4138, %v4759
        %v4840 = vmax.f32 %v4668, %v4760
        %v4841 = vmax.f32 %v4670, %v4761
        %v4842 = vmax.f32 %v4140, %v4762
        %v4843 = vmax.f32 %v4142, %v4763
        %v4844 = vmax.f32 %v4672, %v4764
        %v4845 = vmax.f32 %v4674, %v4765
        %v4846 = vmax.f32 %v4146, %v4766
        %v4847 = vmax.f32 %v4148, %v4767
        %v4848 = vmax.f32 %v4678, %v4768
        %v4849 = vmax.f32 %v4680, %v4769
        %v4850 = vmax.f32 %v4150, %v4770
        %v4851 = vmax.f32 %v4152, %v4771
        %v4852 = vmax.f32 %v4682, %v4772
        %v4853 = vmax.f32 %v4684, %v4773
        %v4854 = vmax.f32 %v4156, %v4774
        %v4855 = vmax.f32 %v4158, %v4775
        %v4856 = vmax.f32 %v4688, %v4776
        %v4857 = vmax.f32 %v4690, %v4777
        %v4858 = vmax.f32 %v4160, %v4778
        %v4859 = vmax.f32 %v4162, %v4779
        %v4860 = vmax.f32 %v4692, %v4780
        %v4861 = vmax.f32 %v4694, %v4781
        %v4862 = vmax.f32 %v4166, %v4782
        %v4863 = vmax.f32 %v4168, %v4783
        %v4864 = vmax.f32 %v4698, %v4784
        %v4865 = vmax.f32 %v4700, %v4785
        %v4866 = vmax.f32 %v4170, %v4786
        %v4867 = vmax.f32 %v4172, %v4787
        %v4868 = vmax.f32 %v4702, %v4788
        %v4869 = vmax.f32 %v4704, %v4789
        %v4870 = vmax.f32 %v4176, %v4790
        %v4871 = vmax.f32 %v4178, %v4791
        %v4872 = vmax.f32 %v4708, %v4792
        %v4873 = vmax.f32 %v4710, %v4793
        %v4874 = vmax.f32 %v4180, %v4794
        %v4875 = vmax.f32 %v4182, %v4795
        %v4876 = vmax.f32 %v4712, %v4796
        %v4877 = vmax.f32 %v4714, %v4797
        %v4878 = vmax.f32 %v4186, %v4798
        %v4879 = vmax.f32 %v4188, %v4799
        %v4880 = vmax.f32 %v4718, %v4800
        %v4881 = vmax.f32 %v4720, %v4801
        %v4882 = vmax.f32 %v4190, %v4802
        %v4883 = vmax.f32 %v4192, %v4803
        %v4884 = vmax.f32 %v4722, %v4804
        %v4885 = vmax.f32 %v4724, %v4805
        %v4886 = vld [vmem:[%s5] sm:$0xf]
        %v4888 = vlaneseq
        %v4889 = vshrl.u32 %v4888, 7
        %v4890 = vsub.s32 0, %v4889
        %v4891 = vrot.slane %v4886, %v4890
        %v4892 = vlaneseq
        %v4893 = vshrl.u32 %v4892, 7
        %v4894 = vsub.s32 1, %v4893
        %v4895 = vrot.slane %v4886, %v4894
        %v4896 = vlaneseq
        %v4897 = vshrl.u32 %v4896, 7
        %v4898 = vsub.s32 2, %v4897
        %v4899 = vrot.slane %v4886, %v4898
        %v4900 = vlaneseq
        %v4901 = vshrl.u32 %v4900, 7
        %v4902 = vsub.s32 3, %v4901
        %v4903 = vrot.slane %v4886, %v4902
        %v4908 = vmul.f32 %v4806, %v4891
        %v4909 = vmul.f32 %v4807, %v4895
        %v4910 = vmul.f32 %v4808, %v4899
        %v4911 = vmul.f32 %v4809, %v4903
        %v4912 = vmul.f32 %v4810, %v4891
        %v4913 = vmul.f32 %v4811, %v4895
        %v4914 = vmul.f32 %v4812, %v4899
        %v4915 = vmul.f32 %v4813, %v4903
        %v4916 = vmul.f32 %v4814, %v4891
        %v4917 = vmul.f32 %v4815, %v4895
        %v4918 = vmul.f32 %v4816, %v4899
        %v4919 = vmul.f32 %v4817, %v4903
        %v4920 = vmul.f32 %v4818, %v4891
        %v4921 = vmul.f32 %v4819, %v4895
        %v4922 = vmul.f32 %v4820, %v4899
        %v4923 = vmul.f32 %v4821, %v4903
        %v4924 = vmul.f32 %v4822, %v4891
        %v4925 = vmul.f32 %v4823, %v4895
        %v4926 = vmul.f32 %v4824, %v4899
        %v4927 = vmul.f32 %v4825, %v4903
        %v4928 = vmul.f32 %v4826, %v4891
        %v4929 = vmul.f32 %v4827, %v4895
        %v4930 = vmul.f32 %v4828, %v4899
        %v4931 = vmul.f32 %v4829, %v4903
        %v4932 = vmul.f32 %v4830, %v4891
        %v4933 = vmul.f32 %v4831, %v4895
        %v4934 = vmul.f32 %v4832, %v4899
        %v4935 = vmul.f32 %v4833, %v4903
        %v4936 = vmul.f32 %v4834, %v4891
        %v4937 = vmul.f32 %v4835, %v4895
        %v4938 = vmul.f32 %v4836, %v4899
        %v4939 = vmul.f32 %v4837, %v4903
        %v4940 = vmul.f32 %v4838, %v4891
        %v4941 = vmul.f32 %v4839, %v4895
        %v4942 = vmul.f32 %v4840, %v4899
        %v4943 = vmul.f32 %v4841, %v4903
        %v4944 = vmul.f32 %v4842, %v4891
        %v4945 = vmul.f32 %v4843, %v4895
        %v4946 = vmul.f32 %v4844, %v4899
        %v4947 = vmul.f32 %v4845, %v4903
        %v4948 = vmul.f32 %v4846, %v4891
        %v4949 = vmul.f32 %v4847, %v4895
        %v4950 = vmul.f32 %v4848, %v4899
        %v4951 = vmul.f32 %v4849, %v4903
        %v4952 = vmul.f32 %v4850, %v4891
        %v4953 = vmul.f32 %v4851, %v4895
        %v4954 = vmul.f32 %v4852, %v4899
        %v4955 = vmul.f32 %v4853, %v4903
        %v4956 = vmul.f32 %v4854, %v4891
        %v4957 = vmul.f32 %v4855, %v4895
        %v4958 = vmul.f32 %v4856, %v4899
        %v4959 = vmul.f32 %v4857, %v4903
        %v4960 = vmul.f32 %v4858, %v4891
        %v4961 = vmul.f32 %v4859, %v4895
        %v4962 = vmul.f32 %v4860, %v4899
        %v4963 = vmul.f32 %v4861, %v4903
        %v4964 = vmul.f32 %v4862, %v4891
        %v4965 = vmul.f32 %v4863, %v4895
        %v4966 = vmul.f32 %v4864, %v4899
        %v4967 = vmul.f32 %v4865, %v4903
        %v4968 = vmul.f32 %v4866, %v4891
        %v4969 = vmul.f32 %v4867, %v4895
        %v4970 = vmul.f32 %v4868, %v4899
        %v4971 = vmul.f32 %v4869, %v4903
        %v4972 = vmul.f32 %v4870, %v4891
        %v4973 = vmul.f32 %v4871, %v4895
        %v4974 = vmul.f32 %v4872, %v4899
        %v4975 = vmul.f32 %v4873, %v4903
        %v4976 = vmul.f32 %v4874, %v4891
        %v4977 = vmul.f32 %v4875, %v4895
        %v4978 = vmul.f32 %v4876, %v4899
        %v4979 = vmul.f32 %v4877, %v4903
        %v4980 = vmul.f32 %v4878, %v4891
        %v4981 = vmul.f32 %v4879, %v4895
        %v4982 = vmul.f32 %v4880, %v4899
        %v4983 = vmul.f32 %v4881, %v4903
        %v4984 = vmul.f32 %v4882, %v4891
        %v4985 = vmul.f32 %v4883, %v4895
        %v4986 = vmul.f32 %v4884, %v4899
        %v4987 = vmul.f32 %v4885, %v4903
        %v4988 = vadd.f32 %v4908, %v4909
        %v4989 = vadd.f32 %v4988, %v4910
        %v4990 = vadd.f32 %v4989, %v4911
        %4991 = vadd.xlane.f32.xlu0 %v4990
        %v4992 = vpop.xlane.xlu0 %4991
        %v4993 = vadd.f32 %v4912, %v4913
        %v4994 = vadd.f32 %v4993, %v4914
        %v4995 = vadd.f32 %v4994, %v4915
        %4996 = vadd.xlane.f32.xlu0 %v4995
        %v4997 = vpop.xlane.xlu0 %4996
        %v4998 = vadd.f32 %v4916, %v4917
        %v4999 = vadd.f32 %v4998, %v4918
        %v5000 = vadd.f32 %v4999, %v4919
        %5001 = vadd.xlane.f32.xlu0 %v5000
        %v5002 = vpop.xlane.xlu0 %5001
        %v5003 = vadd.f32 %v4920, %v4921
        %v5004 = vadd.f32 %v5003, %v4922
        %v5005 = vadd.f32 %v5004, %v4923
        %5006 = vadd.xlane.f32.xlu0 %v5005
        %v5007 = vpop.xlane.xlu0 %5006
        %v5008 = vadd.f32 %v4924, %v4925
        %v5009 = vadd.f32 %v5008, %v4926
        %v5010 = vadd.f32 %v5009, %v4927
        %5011 = vadd.xlane.f32.xlu0 %v5010
        %v5012 = vpop.xlane.xlu0 %5011
        %v5013 = vadd.f32 %v4928, %v4929
        %v5014 = vadd.f32 %v5013, %v4930
        %v5015 = vadd.f32 %v5014, %v4931
        %5016 = vadd.xlane.f32.xlu0 %v5015
        %v5017 = vpop.xlane.xlu0 %5016
        %v5018 = vadd.f32 %v4932, %v4933
        %v5019 = vadd.f32 %v5018, %v4934
        %v5020 = vadd.f32 %v5019, %v4935
        %5021 = vadd.xlane.f32.xlu0 %v5020
        %v5022 = vpop.xlane.xlu0 %5021
        %v5023 = vadd.f32 %v4936, %v4937
        %v5024 = vadd.f32 %v5023, %v4938
        %v5025 = vadd.f32 %v5024, %v4939
        %5026 = vadd.xlane.f32.xlu0 %v5025
        %v5027 = vpop.xlane.xlu0 %5026
        %v5028 = vadd.f32 %v4940, %v4941
        %v5029 = vadd.f32 %v5028, %v4942
        %v5030 = vadd.f32 %v5029, %v4943
        %5031 = vadd.xlane.f32.xlu0 %v5030
        %v5032 = vpop.xlane.xlu0 %5031
        %v5033 = vadd.f32 %v4944, %v4945
        %v5034 = vadd.f32 %v5033, %v4946
        %v5035 = vadd.f32 %v5034, %v4947
        %5036 = vadd.xlane.f32.xlu0 %v5035
        %v5037 = vpop.xlane.xlu0 %5036
        %v5038 = vadd.f32 %v4948, %v4949
        %v5039 = vadd.f32 %v5038, %v4950
        %v5040 = vadd.f32 %v5039, %v4951
        %5041 = vadd.xlane.f32.xlu0 %v5040
        %v5042 = vpop.xlane.xlu0 %5041
        %v5043 = vadd.f32 %v4952, %v4953
        %v5044 = vadd.f32 %v5043, %v4954
        %v5045 = vadd.f32 %v5044, %v4955
        %5046 = vadd.xlane.f32.xlu0 %v5045
        %v5047 = vpop.xlane.xlu0 %5046
        %v5048 = vadd.f32 %v4956, %v4957
        %v5049 = vadd.f32 %v5048, %v4958
        %v5050 = vadd.f32 %v5049, %v4959
        %5051 = vadd.xlane.f32.xlu0 %v5050
        %v5052 = vpop.xlane.xlu0 %5051
        %v5053 = vadd.f32 %v4960, %v4961
        %v5054 = vadd.f32 %v5053, %v4962
        %v5055 = vadd.f32 %v5054, %v4963
        %5056 = vadd.xlane.f32.xlu0 %v5055
        %v5057 = vpop.xlane.xlu0 %5056
        %v5058 = vadd.f32 %v4964, %v4965
        %v5059 = vadd.f32 %v5058, %v4966
        %v5060 = vadd.f32 %v5059, %v4967
        %5061 = vadd.xlane.f32.xlu0 %v5060
        %v5062 = vpop.xlane.xlu0 %5061
        %v5063 = vadd.f32 %v4968, %v4969
        %v5064 = vadd.f32 %v5063, %v4970
        %v5065 = vadd.f32 %v5064, %v4971
        %5066 = vadd.xlane.f32.xlu0 %v5065
        %v5067 = vpop.xlane.xlu0 %5066
        %v5068 = vadd.f32 %v4972, %v4973
        %v5069 = vadd.f32 %v5068, %v4974
        %v5070 = vadd.f32 %v5069, %v4975
        %5071 = vadd.xlane.f32.xlu0 %v5070
        %v5072 = vpop.xlane.xlu0 %5071
        %v5073 = vadd.f32 %v4976, %v4977
        %v5074 = vadd.f32 %v5073, %v4978
        %v5075 = vadd.f32 %v5074, %v4979
        %5076 = vadd.xlane.f32.xlu0 %v5075
        %v5077 = vpop.xlane.xlu0 %5076
        %v5078 = vadd.f32 %v4980, %v4981
        %v5079 = vadd.f32 %v5078, %v4982
        %v5080 = vadd.f32 %v5079, %v4983
        %5081 = vadd.xlane.f32.xlu0 %v5080
        %v5082 = vpop.xlane.xlu0 %5081
        %v5083 = vadd.f32 %v4984, %v4985
        %v5084 = vadd.f32 %v5083, %v4986
        %v5085 = vadd.f32 %v5084, %v4987
        %5086 = vadd.xlane.f32.xlu0 %v5085
        %v5087 = vpop.xlane.xlu0 %5086
        %v5088 = vld [vmem:[#allocation2] sm:$0x1]
        %v5090 = vlaneseq
        %v5091 = vshrl.u32 %v5090, 7
        %v5092 = vsub.s32 0, %v5091
        %v5093 = vrot.slane %v5088, %v5092
        %v5095 = vadd.f32 %v4992, %v5093
        %v5096 = vadd.f32 %v4997, %v5093
        %v5097 = vadd.f32 %v5002, %v5093
        %v5098 = vadd.f32 %v5007, %v5093
        %v5099 = vadd.f32 %v5012, %v5093
        %v5100 = vadd.f32 %v5017, %v5093
        %v5101 = vadd.f32 %v5022, %v5093
        %v5102 = vadd.f32 %v5027, %v5093
        %v5103 = vadd.f32 %v5032, %v5093
        %v5104 = vadd.f32 %v5037, %v5093
        %v5105 = vadd.f32 %v5042, %v5093
        %v5106 = vadd.f32 %v5047, %v5093
        %v5107 = vadd.f32 %v5052, %v5093
        %v5108 = vadd.f32 %v5057, %v5093
        %v5109 = vadd.f32 %v5062, %v5093
        %v5110 = vadd.f32 %v5067, %v5093
        %v5111 = vadd.f32 %v5072, %v5093
        %v5112 = vadd.f32 %v5077, %v5093
        %v5113 = vadd.f32 %v5082, %v5093
        %v5114 = vadd.f32 %v5087, %v5093
        %v5115 = vsub.f32 0.0, %v5095
        %v5116 = vsub.f32 0.0, %v5096
        %v5117 = vsub.f32 0.0, %v5097
        %v5118 = vsub.f32 0.0, %v5098
        %v5119 = vsub.f32 0.0, %v5099
        %v5120 = vsub.f32 0.0, %v5100
        %v5121 = vsub.f32 0.0, %v5101
        %v5122 = vsub.f32 0.0, %v5102
        %v5123 = vsub.f32 0.0, %v5103
        %v5124 = vsub.f32 0.0, %v5104
        %v5125 = vsub.f32 0.0, %v5105
        %v5126 = vsub.f32 0.0, %v5106
        %v5127 = vsub.f32 0.0, %v5107
        %v5128 = vsub.f32 0.0, %v5108
        %v5129 = vsub.f32 0.0, %v5109
        %v5130 = vsub.f32 0.0, %v5110
        %v5131 = vsub.f32 0.0, %v5111
        %v5132 = vsub.f32 0.0, %v5112
        %v5133 = vsub.f32 0.0, %v5113
        %v5134 = vsub.f32 0.0, %v5114
        %v5135 = vmul.f32 %v5115, 1.442695
        %v5136 = vpow.pop %v5135
        %v5137 = vmul.f32 %v5116, 1.442695
        %v5138 = vpow.pop %v5137
        %v5139 = vmul.f32 %v5117, 1.442695
        %v5140 = vpow.pop %v5139
        %v5141 = vmul.f32 %v5118, 1.442695
        %v5142 = vpow.pop %v5141
        %v5143 = vmul.f32 %v5119, 1.442695
        %v5144 = vpow.pop %v5143
        %v5145 = vmul.f32 %v5120, 1.442695
        %v5146 = vpow.pop %v5145
        %v5147 = vmul.f32 %v5121, 1.442695
        %v5148 = vpow.pop %v5147
        %v5149 = vmul.f32 %v5122, 1.442695
        %v5150 = vpow.pop %v5149
        %v5151 = vmul.f32 %v5123, 1.442695
        %v5152 = vpow.pop %v5151
        %v5153 = vmul.f32 %v5124, 1.442695
        %v5154 = vpow.pop %v5153
        %v5155 = vmul.f32 %v5125, 1.442695
        %v5156 = vpow.pop %v5155
        %v5157 = vmul.f32 %v5126, 1.442695
        %v5158 = vpow.pop %v5157
        %v5159 = vmul.f32 %v5127, 1.442695
        %v5160 = vpow.pop %v5159
        %v5161 = vmul.f32 %v5128, 1.442695
        %v5162 = vpow.pop %v5161
        %v5163 = vmul.f32 %v5129, 1.442695
        %v5164 = vpow.pop %v5163
        %v5165 = vmul.f32 %v5130, 1.442695
        %v5166 = vpow.pop %v5165
        %v5167 = vmul.f32 %v5131, 1.442695
        %v5168 = vpow.pop %v5167
        %v5169 = vmul.f32 %v5132, 1.442695
        %v5170 = vpow.pop %v5169
        %v5171 = vmul.f32 %v5133, 1.442695
        %v5172 = vpow.pop %v5171
        %v5173 = vmul.f32 %v5134, 1.442695
        %v5174 = vpow.pop %v5173
        %v5175 = vadd.f32 %v5136, 1.0
        %v5176 = vadd.f32 %v5138, 1.0
        %v5177 = vadd.f32 %v5140, 1.0
        %v5178 = vadd.f32 %v5142, 1.0
        %v5179 = vadd.f32 %v5144, 1.0
        %v5180 = vadd.f32 %v5146, 1.0
        %v5181 = vadd.f32 %v5148, 1.0
        %v5182 = vadd.f32 %v5150, 1.0
        %v5183 = vadd.f32 %v5152, 1.0
        %v5184 = vadd.f32 %v5154, 1.0
        %v5185 = vadd.f32 %v5156, 1.0
        %v5186 = vadd.f32 %v5158, 1.0
        %v5187 = vadd.f32 %v5160, 1.0
        %v5188 = vadd.f32 %v5162, 1.0
        %v5189 = vadd.f32 %v5164, 1.0
        %v5190 = vadd.f32 %v5166, 1.0
        %v5191 = vadd.f32 %v5168, 1.0
        %v5192 = vadd.f32 %v5170, 1.0
        %v5193 = vadd.f32 %v5172, 1.0
        %v5194 = vadd.f32 %v5174, 1.0
        %v5195 = vrcp.pop %v5175
        %v5196 = vmul.f32 1.0, %v5195
        %v5197 = vrcp.pop %v5176
        %v5198 = vmul.f32 1.0, %v5197
        %v5199 = vrcp.pop %v5177
        %v5200 = vmul.f32 1.0, %v5199
        %v5201 = vrcp.pop %v5178
        %v5202 = vmul.f32 1.0, %v5201
        %v5203 = vrcp.pop %v5179
        %v5204 = vmul.f32 1.0, %v5203
        %v5205 = vrcp.pop %v5180
        %v5206 = vmul.f32 1.0, %v5205
        %v5207 = vrcp.pop %v5181
        %v5208 = vmul.f32 1.0, %v5207
        %v5209 = vrcp.pop %v5182
        %v5210 = vmul.f32 1.0, %v5209
        %v5211 = vrcp.pop %v5183
        %v5212 = vmul.f32 1.0, %v5211
        %v5213 = vrcp.pop %v5184
        %v5214 = vmul.f32 1.0, %v5213
        %v5215 = vrcp.pop %v5185
        %v5216 = vmul.f32 1.0, %v5215
        %v5217 = vrcp.pop %v5186
        %v5218 = vmul.f32 1.0, %v5217
        %v5219 = vrcp.pop %v5187
        %v5220 = vmul.f32 1.0, %v5219
        %v5221 = vrcp.pop %v5188
        %v5222 = vmul.f32 1.0, %v5221
        %v5223 = vrcp.pop %v5189
        %v5224 = vmul.f32 1.0, %v5223
        %v5225 = vrcp.pop %v5190
        %v5226 = vmul.f32 1.0, %v5225
        %v5227 = vrcp.pop %v5191
        %v5228 = vmul.f32 1.0, %v5227
        %v5229 = vrcp.pop %v5192
        %v5230 = vmul.f32 1.0, %v5229
        %v5231 = vrcp.pop %v5193
        %v5232 = vmul.f32 1.0, %v5231
        %v5233 = vrcp.pop %v5194
        %v5234 = vmul.f32 1.0, %v5233
        %vm5235 = vcmask 7168
        %5236 = vst.msk [vmem:[%s300] sm:$0xff] %vm5235, %v5196
        %5237 = vst.msk [vmem:[%s300 + $0x8] sm:$0xff] %vm5235, %v5198
        %5238 = vst.msk [vmem:[%s300 + $0x10] sm:$0xff] %vm5235, %v5200
        %5239 = vst.msk [vmem:[%s300 + $0x18] sm:$0xff] %vm5235, %v5202
        %5240 = vst.msk [vmem:[%s300 + $0x20] sm:$0xff] %vm5235, %v5204
        %5241 = vst.msk [vmem:[%s300 + $0x28] sm:$0xff] %vm5235, %v5206
        %5242 = vst.msk [vmem:[%s300 + $0x30] sm:$0xff] %vm5235, %v5208
        %5243 = vst.msk [vmem:[%s300 + $0x38] sm:$0xff] %vm5235, %v5210
        %5244 = vst.msk [vmem:[%s300 + $0x40] sm:$0xff] %vm5235, %v5212
        %5245 = vst.msk [vmem:[%s300 + $0x48] sm:$0xff] %vm5235, %v5214
        %5246 = vst.msk [vmem:[%s300 + $0x50] sm:$0xff] %vm5235, %v5216
        %5247 = vst.msk [vmem:[%s300 + $0x58] sm:$0xff] %vm5235, %v5218
        %5248 = vst.msk [vmem:[%s300 + $0x60] sm:$0xff] %vm5235, %v5220
        %5249 = vst.msk [vmem:[%s300 + $0x68] sm:$0xff] %vm5235, %v5222
        %5250 = vst.msk [vmem:[%s300 + $0x70] sm:$0xff] %vm5235, %v5224
        %5251 = vst.msk [vmem:[%s300 + $0x78] sm:$0xff] %vm5235, %v5226
        %5252 = vst.msk [vmem:[%s300 + $0x80] sm:$0xff] %vm5235, %v5228
        %5253 = vst.msk [vmem:[%s300 + $0x88] sm:$0xff] %vm5235, %v5230
        %5254 = vst.msk [vmem:[%s300 + $0x90] sm:$0xff] %vm5235, %v5232
        %5255 = vst.msk [vmem:[%s300 + $0x98] sm:$0xff] %vm5235, %v5234
        %s5256 = smul.u32 20, %s21
        %p5257 = scmp.lt.s32.totalorder %s5256, 39
        %s5258 = scalar_select %p5257, %s5256, 39
        %s5259 = smul.addr %s5258, 8
        %s5260 = scalar_lea.vmem %s7, %s5259
        // Predicated region
        $region53: #{adversarial_network.1} parent=47 // pred_check
          %p5261 = pneg %p191
        $region54: #{adversarial_network.1} parent=47 // pred_check_branch
          %5263 = sbr.rel (%p5261) target = $region56
        $region55: #{adversarial_network.1} parent=47 // pred_region
          %s5264 = smul.u32 20, %s21
        $region56: #{adversarial_network.1} parent=47 // pred_fallthru
          _
      $region48: #{adversarial_network.1} parent=5 // pred_fallthru
        _
      %p5265 = scmp.le.s32.totalorder 2, %s16
      // Predicated region
      $region57: #{adversarial_network.1} parent=5 // pred_check
        %p5266 = pneg %p5265
      $region58: #{adversarial_network.1} parent=5 // pred_check_branch
        %5268 = sbr.rel (%p5266) target = $region60
      $region59: #{adversarial_network.1} parent=5 // pred_region
        %s5269 = ssub.s32 %s16, 2
        // Predicated region
        $region61: #{adversarial_network.1} parent=59 // pred_check
          %p5270 = pneg %p197
        $region62: #{adversarial_network.1} parent=59 // pred_check_branch
          %5272 = sbr.rel (%p5270) target = $region64
        $region63: #{adversarial_network.1} parent=59 // pred_region
          %s5273 = smul.u32 20, %s22
          %p5274 = scmp.lt.s32.totalorder %s5273, 39
          %s5275 = scalar_select %p5274, %s5273, 39
          %s5276 = smul.addr %s5275, 8
          %s5277 = scalar_lea.vmem %s7, %s5276
        $region64: #{adversarial_network.1} parent=59 // pred_fallthru
          _
      $region60: #{adversarial_network.1} parent=5 // pred_fallthru
        _
    $region6: #{adversarial_network.1} parent=1 // loop_footer
      %s20 = sadd.s32 1, %s16
    $region7: #{adversarial_network.1} parent=1 // loop_footer_branch
      %15 = sbr.rel target = $region3
    $region8: #{adversarial_network.1} parent=1 // loop_exit
      _
    %5278 = vsyncpa [#allocation4], 1
    %s5279 = scalar_lea.sflag [#allocation4], 1
    %5280 = vsyncpa %s5279, 1

</llo_original>
